<compile_context>
chip_gen: v7x
topology: tpu7x:2x2x1
jax: 0.10.0
libtpu: 0.0.40
codegen_flags: <defaults>
</compile_context>

<pallas_src>
import functools

import jax
import jax.numpy as jnp
from jax.experimental import pallas as pl
from jax.experimental.pallas import tpu as pltpu


# ----------------------------- parameter setup (glue) -----------------------------

def dct_mat(size: int) -> jnp.ndarray:
    """Type-II DCT matrix, identical to the PyTorch DCT_mat()."""
    i = jnp.arange(size, dtype=jnp.float32)[:, None]
    j = jnp.arange(size, dtype=jnp.float32)[None, :]
    scale = jnp.where(i == 0.0,
                      jnp.sqrt(1.0 / size).astype(jnp.float32),
                      jnp.sqrt(2.0 / size).astype(jnp.float32))
    return (scale * jnp.cos((j + 0.5) * jnp.pi * i / size)).astype(jnp.float32)


def create_filter(img_size: int, diagonal: int) -> jnp.ndarray:
    """torch.fliplr(torch.triu(torch.ones(img_size, img_size), diagonal))."""
    f = jnp.triu(jnp.ones((img_size, img_size), jnp.float32), k=diagonal)
    return jnp.fliplr(f)


def norm_sigma(x: jnp.ndarray) -> jnp.ndarray:
    return 2.0 * jax.nn.sigmoid(x) - 1.0


# --------------------------------- Pallas kernel ----------------------------------

def fad_kernel(d_ref, dt_ref, flow_ref, fhigh_ref, x_ref, out_ref, a_ref,
               *, filters_bf16: bool):
    """One grid step = one (batch, plane): out[n, :, c] = D^T (D x D^T * filt) D."""
    S = d_ref.shape[0]

    d_bf = d_ref[...]          # (S, S) bf16   DCT
    dt_bf = dt_ref[...]        # (S, S) bf16   DCT^T

    x = x_ref[0, 0]            # (S, S) f32 image plane

    # stage 1: x_freq = D @ (x @ D^T)       (bf16 MXU operands, f32 accumulation)
    t1 = jnp.dot(x.astype(jnp.bfloat16), dt_bf,
                 preferred_element_type=jnp.float32)                   # (S, S) f32
    x_freq = jnp.dot(d_bf, t1.astype(jnp.bfloat16),
                     preferred_element_type=jnp.float32)               # (S, S) f32

    # frequency-domain filtering, slice-stored into the persistent (S, 2S) scratch
    if filters_bf16:           # v6e / v7x: packed-bf16 VALU multiply, bf16 constants
        xf_bf = x_freq.astype(jnp.bfloat16)
        a_ref[:, :S] = xf_bf * flow_ref[...]
        a_ref[:, S:] = xf_bf * fhigh_ref[...]
    else:                      # v5e (no bf16 VPU) / unknown: multiply in f32
        a_ref[:, :S] = (x_freq * flow_ref[...]).astype(jnp.bfloat16)
        a_ref[:, S:] = (x_freq * fhigh_ref[...]).astype(jnp.bfloat16)

    # stage 2a: left-multiply fused across low/high filters:  D^T @ [low | high]
    p = jnp.dot(dt_bf, a_ref[...], preferred_element_type=jnp.float32)  # (S, 2S) f32

    # stage 2b: right-multiply by D, write straight into the (N, 2, C, S, S) output
    y_low = jnp.dot(p[:, :S].astype(jnp.bfloat16), d_bf,
                    preferred_element_type=jnp.float32)
    y_high = jnp.dot(p[:, S:].astype(jnp.bfloat16), d_bf,
                     preferred_element_type=jnp.float32)

    out_ref[0, 0, 0] = y_low.astype(out_ref.dtype)
    out_ref[0, 1, 0] = y_high.astype(out_ref.dtype)


def fad_head_forward(x, dct, dct_t, filt_low, filt_high, *,
                     filters_bf16=False, out_dtype=jnp.float32):
    """x: (N, C, S, S) f32 -> (N, 2*C, S, S) == torch.cat([low, high], dim=1).

    out_dtype=jnp.bfloat16 halves the dominant HBM write if the consumer accepts it;
    the f32 default matches the PyTorch module exactly.
    """
    N, C, S, S2 = x.shape
    assert S == S2 and S % 128 == 0, "spatial size must be lane-aligned (multiple of 128)"
    assert dct.shape == (S, S) and dct_t.shape == (S, S)
    assert filt_low.shape == (S, S) and filt_high.shape == (S, S), \
        "module hard-codes 256x256 filters; size must match"

    # constants cast ONCE in the wrapper (not per grid step)
    dct_bf = dct.astype(jnp.bfloat16)
    dct_t_bf = dct_t.astype(jnp.bfloat16)
    filt_dtype = jnp.bfloat16 if filters_bf16 else jnp.float32
    filt_low_c = filt_low.astype(filt_dtype)
    filt_high_c = filt_high.astype(filt_dtype)

    out_itemsize = jnp.dtype(out_dtype).itemsize
    flops = 12 * N * C * (S ** 3)                          # 6 matmuls/plane * 2 flops/MAC
    bytes_accessed = (N * C * S * S * 4                    # x read
                      + N * 2 * C * S * S * out_itemsize   # out write
                      + 2 * S * S * 2                      # bf16 DCT matrices
                      + 2 * S * S * jnp.dtype(filt_dtype).itemsize)

    def run(single_buffer_consts: bool):
        if single_buffer_consts:
            # Constants revisit block (0, 0) every step -> one pipeline buffer suffices.
            const_spec = pl.BlockSpec((S, S), lambda n, c: (0, 0),
                                      pipeline_mode=pl.Buffered(1))
        else:
            const_spec = pl.BlockSpec((S, S), lambda n, c: (0, 0))

        # Output produced as (N, 2, C, S, S) — a layout-identical view of
        # torch.cat([low, high], dim=1) — and reshaped back to (N, 2C, S, S) for free.
        return pl.pallas_call(
            functools.partial(fad_kernel, filters_bf16=filters_bf16),
            out_shape=jax.ShapeDtypeStruct((N, 2, C, S, S), out_dtype),
            grid=(N, C),
            in_specs=[const_spec, const_spec, const_spec, const_spec,
                      pl.BlockSpec((1, 1, S, S), lambda n, c: (n, c, 0, 0))],
            out_specs=pl.BlockSpec((1, 2, 1, S, S), lambda n, c: (n, 0, c, 0, 0)),
            scratch_shapes=[pltpu.VMEM((S, 2 * S), jnp.bfloat16)],
            compiler_params=pltpu.CompilerParams(
                dimension_semantics=("parallel", "parallel")),
            cost_estimate=pl.CostEstimate(flops=flops, transcendentals=0,
                                          bytes_accessed=bytes_accessed),
        )(dct_bf, dct_t_bf, filt_low_c, filt_high_c, x)

    try:
        out = run(True)
    except Exception:
        # Fallback for lowerings without pl.Buffered support; semantics identical,
        # only the constants' second pipeline buffer (~0.75 MiB VMEM) comes back.
        out = run(False)

    return out.reshape(N, 2 * C, S, S)


# ------------------------------------ main -----------------------------------------

if __name__ == "__main__":
    size = 256        # forced by the hard-coded create_filter(img_size=256, ...)
    diagonal = 2
    N, C = 2, 2

    # filter-multiply precision per chip generation: bf16 on v6e/v7x, f32 on v5e/unknown
    try:
        kind = jax.devices()[0].device_kind.lower()
    except Exception:
        kind = ""
    filters_bf16 = any(tag in kind for tag in ("v6", "v7", "7x"))

    key = jax.random.PRNGKey(0)
    k_x, k_low, k_high = jax.random.split(key, 3)

    # input (NCHW)
    x = jax.random.normal(k_x, (N, C, size, size), dtype=jnp.float32)

    # FAD_Head parameters (deterministic synthetic init)
    dct = dct_mat(size)                       # _DCT_all
    dct_t = dct.T                             # _DCT_all_T

    low_base = create_filter(256, diagonal)   # LFilter base
    high_base = create_filter(256, 2)         # HFilter base
    low_learnable = 0.1 * jax.random.normal(k_low, (size, size), dtype=jnp.float32)
    high_learnable = 0.1 * jax.random.normal(k_high, (size, size), dtype=jnp.float32)
    filt_low = low_base + norm_sigma(low_learnable)     # use_learnable=True, norm=False
    filt_high = high_base + norm_sigma(high_learnable)

    out = fad_head_forward(x, dct, dct_t, filt_low, filt_high,
                           filters_bf16=filters_bf16)
    out = jax.block_until_ready(out)
    assert out.shape == (N, 2 * C, size, size), out.shape

    # --- matched-precision reference (same bf16 rounding points as the kernel) ---
    d_bf = dct.astype(jnp.bfloat16)
    dt_bf = dct_t.astype(jnp.bfloat16)
    t1 = jnp.matmul(x.astype(jnp.bfloat16), dt_bf, preferred_element_type=jnp.float32)
    xf = jnp.matmul(d_bf, t1.astype(jnp.bfloat16), preferred_element_type=jnp.float32)

    def second_stage(filt):
        if filters_bf16:
            a = xf.astype(jnp.bfloat16) * filt.astype(jnp.bfloat16)
        else:
            a = (xf * filt).astype(jnp.bfloat16)
        p = jnp.matmul(dt_bf, a, preferred_element_type=jnp.float32)
        return jnp.matmul(p.astype(jnp.bfloat16), d_bf,
                          preferred_element_type=jnp.float32)

    ref_bf16 = jnp.concatenate([second_stage(filt_low), second_stage(filt_high)], axis=1)
    assert jnp.allclose(out, ref_bf16, atol=1e-2, rtol=1e-2), \
        float(jnp.max(jnp.abs(out - ref_bf16)))

    # --- full-f32 reference: loose sanity bound on bf16-MXU quantization error ---
    xf32 = jnp.matmul(jnp.matmul(dct, x), dct_t)
    ref_f32 = jnp.concatenate(
        [jnp.matmul(jnp.matmul(dct_t, xf32 * filt_low), dct),
         jnp.matmul(jnp.matmul(dct_t, xf32 * filt_high), dct)], axis=1)
    assert float(jnp.max(jnp.abs(out - ref_f32))) < 0.25

    print("KERNEL_OK")
</pallas_src>

<mosaic_0001>
module attributes {stable_mosaic.version = 11 : i64} {
  func.func @fad_kernel(%arg0: i32, %arg1: i32, %arg2: memref<256x256xbf16, #tpu.memory_space<vmem>>, %arg3: memref<256x256xbf16, #tpu.memory_space<vmem>>, %arg4: memref<256x256xf32, #tpu.memory_space<vmem>>, %arg5: memref<256x256xf32, #tpu.memory_space<vmem>>, %arg6: memref<1x1x256x256xf32, #tpu.memory_space<vmem>>, %arg7: memref<1x2x1x256x256xf32, #tpu.memory_space<vmem>>, %arg8: memref<256x512xbf16, #tpu.memory_space<vmem>>) attributes {dimension_semantics = [#tpu.dimension_semantics<parallel>, #tpu.dimension_semantics<parallel>], iteration_bounds = array<i64: 2, 2>, scalar_prefetch = 0 : i64, scratch_operands = 1 : i64, tpu.core_type = #tpu.core_type<tc>, window_params = [{pipeline_mode = #tpu.pipeline_mode<synchronous>, transform_indices = @transform_0, window_bounds = array<i64: 256, 256>}, {pipeline_mode = #tpu.pipeline_mode<synchronous>, transform_indices = @transform_1, window_bounds = array<i64: 256, 256>}, {pipeline_mode = #tpu.pipeline_mode<synchronous>, transform_indices = @transform_2, window_bounds = array<i64: 256, 256>}, {pipeline_mode = #tpu.pipeline_mode<synchronous>, transform_indices = @transform_3, window_bounds = array<i64: 256, 256>}, {transform_indices = @transform_4, window_bounds = array<i64: 1, 1, 256, 256>}, {transform_indices = @transform_5, window_bounds = array<i64: 1, 2, 1, 256, 256>}]} {
    %c0 = arith.constant 0 : index
    %c0_0 = arith.constant 0 : index
    %0 = vector.load %arg2[%c0, %c0_0] : memref<256x256xbf16, #tpu.memory_space<vmem>>, vector<256x256xbf16>
    %c0_1 = arith.constant 0 : index
    %c0_2 = arith.constant 0 : index
    %1 = vector.load %arg3[%c0_1, %c0_2] : memref<256x256xbf16, #tpu.memory_space<vmem>>, vector<256x256xbf16>
    %c0_3 = arith.constant 0 : index
    %c0_4 = arith.constant 0 : index
    %c0_5 = arith.constant 0 : index
    %c0_6 = arith.constant 0 : index
    %2 = vector.load %arg6[%c0_3, %c0_4, %c0_5, %c0_6] : memref<1x1x256x256xf32, #tpu.memory_space<vmem>>, vector<1x1x256x256xf32>
    %3 = vector.shape_cast %2 : vector<1x1x256x256xf32> to vector<256x256xf32>
    %4 = arith.truncf %3 : vector<256x256xf32> to vector<256x256xbf16>
    %cst = arith.constant dense<0.000000e+00> : vector<256x256xf32>
    %5 = tpu.matmul %4, %1, %cst {dimension_numbers = #tpu.dot_dimension_numbers<[1], [0], [0], [1], [0, 0, 1, 1], [], []>} : vector<256x256xbf16>, vector<256x256xbf16>, vector<256x256xf32> -> vector<256x256xf32>
    %6 = arith.truncf %5 : vector<256x256xf32> to vector<256x256xbf16>
    %cst_7 = arith.constant dense<0.000000e+00> : vector<256x256xf32>
    %7 = tpu.matmul %0, %6, %cst_7 {dimension_numbers = #tpu.dot_dimension_numbers<[1], [0], [0], [1], [0, 0, 1, 1], [], []>} : vector<256x256xbf16>, vector<256x256xbf16>, vector<256x256xf32> -> vector<256x256xf32>
    %c0_8 = arith.constant 0 : index
    %c0_9 = arith.constant 0 : index
    %8 = vector.load %arg4[%c0_8, %c0_9] : memref<256x256xf32, #tpu.memory_space<vmem>>, vector<256x256xf32>
    %9 = arith.mulf %7, %8 : vector<256x256xf32>
    %10 = arith.truncf %9 : vector<256x256xf32> to vector<256x256xbf16>
    %c0_10 = arith.constant 0 : index
    %c0_11 = arith.constant 0 : index
    %11 = vector.load %arg8[%c0_10, %c0_11] : memref<256x512xbf16, #tpu.memory_space<vmem>>, vector<256x256xbf16>
    tpu.vector_store %arg8[%c0_10, %c0_11], %10 {strides = array<i32>} : memref<256x512xbf16, #tpu.memory_space<vmem>>, vector<256x256xbf16>,
    %c0_12 = arith.constant 0 : index
    %c0_13 = arith.constant 0 : index
    %12 = vector.load %arg5[%c0_12, %c0_13] : memref<256x256xf32, #tpu.memory_space<vmem>>, vector<256x256xf32>
    %13 = arith.mulf %7, %12 : vector<256x256xf32>
    %14 = arith.truncf %13 : vector<256x256xf32> to vector<256x256xbf16>
    %c0_14 = arith.constant 0 : index
    %c256 = arith.constant 256 : index
    %15 = vector.load %arg8[%c0_14, %c256] : memref<256x512xbf16, #tpu.memory_space<vmem>>, vector<256x256xbf16>
    tpu.vector_store %arg8[%c0_14, %c256], %14 {strides = array<i32>} : memref<256x512xbf16, #tpu.memory_space<vmem>>, vector<256x256xbf16>,
    %c0_15 = arith.constant 0 : index
    %c0_16 = arith.constant 0 : index
    %16 = vector.load %arg8[%c0_15, %c0_16] : memref<256x512xbf16, #tpu.memory_space<vmem>>, vector<256x512xbf16>
    %cst_17 = arith.constant dense<0.000000e+00> : vector<256x512xf32>
    %17 = tpu.matmul %1, %16, %cst_17 {dimension_numbers = #tpu.dot_dimension_numbers<[1], [0], [0], [1], [0, 0, 1, 1], [], []>} : vector<256x256xbf16>, vector<256x512xbf16>, vector<256x512xf32> -> vector<256x512xf32>
    %18 = vector.extract_strided_slice %17 {offsets = [0, 0], sizes = [256, 256], strides = [1, 1]} : vector<256x512xf32> to vector<256x256xf32>
    %19 = arith.truncf %18 : vector<256x256xf32> to vector<256x256xbf16>
    %cst_18 = arith.constant dense<0.000000e+00> : vector<256x256xf32>
    %20 = tpu.matmul %19, %0, %cst_18 {dimension_numbers = #tpu.dot_dimension_numbers<[1], [0], [0], [1], [0, 0, 1, 1], [], []>} : vector<256x256xbf16>, vector<256x256xbf16>, vector<256x256xf32> -> vector<256x256xf32>
    %21 = vector.extract_strided_slice %17 {offsets = [0, 256], sizes = [256, 256], strides = [1, 1]} : vector<256x512xf32> to vector<256x256xf32>
    %22 = arith.truncf %21 : vector<256x256xf32> to vector<256x256xbf16>
    %cst_19 = arith.constant dense<0.000000e+00> : vector<256x256xf32>
    %23 = tpu.matmul %22, %0, %cst_19 {dimension_numbers = #tpu.dot_dimension_numbers<[1], [0], [0], [1], [0, 0, 1, 1], [], []>} : vector<256x256xbf16>, vector<256x256xbf16>, vector<256x256xf32> -> vector<256x256xf32>
    %c0_20 = arith.constant 0 : index
    %c0_21 = arith.constant 0 : index
    %c0_22 = arith.constant 0 : index
    %c0_23 = arith.constant 0 : index
    %c0_24 = arith.constant 0 : index
    %24 = vector.load %arg7[%c0_20, %c0_21, %c0_22, %c0_23, %c0_24] : memref<1x2x1x256x256xf32, #tpu.memory_space<vmem>>, vector<1x1x1x256x256xf32>
    %25 = vector.shape_cast %24 : vector<1x1x1x256x256xf32> to vector<256x256xf32>
    %26 = vector.shape_cast %20 : vector<256x256xf32> to vector<1x1x1x256x256xf32>
    tpu.vector_store %arg7[%c0_20, %c0_21, %c0_22, %c0_23, %c0_24], %26 {strides = array<i32>} : memref<1x2x1x256x256xf32, #tpu.memory_space<vmem>>, vector<1x1x1x256x256xf32>,
    %c0_25 = arith.constant 0 : index
    %c1 = arith.constant 1 : index
    %c0_26 = arith.constant 0 : index
    %c0_27 = arith.constant 0 : index
    %c0_28 = arith.constant 0 : index
    %27 = vector.load %arg7[%c0_25, %c1, %c0_26, %c0_27, %c0_28] : memref<1x2x1x256x256xf32, #tpu.memory_space<vmem>>, vector<1x1x1x256x256xf32>
    %28 = vector.shape_cast %27 : vector<1x1x1x256x256xf32> to vector<256x256xf32>
    %29 = vector.shape_cast %23 : vector<256x256xf32> to vector<1x1x1x256x256xf32>
    tpu.vector_store %arg7[%c0_25, %c1, %c0_26, %c0_27, %c0_28], %29 {strides = array<i32>} : memref<1x2x1x256x256xf32, #tpu.memory_space<vmem>>, vector<1x1x1x256x256xf32>,
    return
  }
  func.func @transform_0(%arg0: i32, %arg1: i32) -> (i32, i32) {
    %c0_i32 = arith.constant 0 : i32
    %c0_i32_0 = arith.constant 0 : i32
    %c0_i32_1 = arith.constant 0 : i32
    return %c0_i32, %c0_i32_0 : i32, i32
  }
  func.func @transform_1(%arg0: i32, %arg1: i32) -> (i32, i32) {
    %c0_i32 = arith.constant 0 : i32
    %c0_i32_0 = arith.constant 0 : i32
    %c0_i32_1 = arith.constant 0 : i32
    return %c0_i32, %c0_i32_0 : i32, i32
  }
  func.func @transform_2(%arg0: i32, %arg1: i32) -> (i32, i32) {
    %c0_i32 = arith.constant 0 : i32
    %c0_i32_0 = arith.constant 0 : i32
    %c0_i32_1 = arith.constant 0 : i32
    return %c0_i32, %c0_i32_0 : i32, i32
  }
  func.func @transform_3(%arg0: i32, %arg1: i32) -> (i32, i32) {
    %c0_i32 = arith.constant 0 : i32
    %c0_i32_0 = arith.constant 0 : i32
    %c0_i32_1 = arith.constant 0 : i32
    return %c0_i32, %c0_i32_0 : i32, i32
  }
  func.func @transform_4(%arg0: i32, %arg1: i32) -> (i32, i32, i32, i32) {
    %c0_i32 = arith.constant 0 : i32
    %c0_i32_0 = arith.constant 0 : i32
    %c0_i32_1 = arith.constant 0 : i32
    return %arg0, %arg1, %c0_i32, %c0_i32_0 : i32, i32, i32, i32
  }
  func.func @transform_5(%arg0: i32, %arg1: i32) -> (i32, i32, i32, i32, i32) {
    %c0_i32 = arith.constant 0 : i32
    %c0_i32_0 = arith.constant 0 : i32
    %c0_i32_1 = arith.constant 0 : i32
    %c0_i32_2 = arith.constant 0 : i32
    return %arg0, %c0_i32, %arg1, %c0_i32_0, %c0_i32_1 : i32, i32, i32, i32, i32
  }
}

module attributes {stable_mosaic.version = 11 : i64} {
  func.func @fad_kernel(%arg0: i32, %arg1: i32, %arg2: memref<256x256xbf16, #tpu.memory_space<vmem>>, %arg3: memref<256x256xbf16, #tpu.memory_space<vmem>>, %arg4: memref<256x256xf32, #tpu.memory_space<vmem>>, %arg5: memref<256x256xf32, #tpu.memory_space<vmem>>, %arg6: memref<1x1x256x256xf32, #tpu.memory_space<vmem>>, %arg7: memref<1x2x1x256x256xf32, #tpu.memory_space<vmem>>, %arg8: memref<256x512xbf16, #tpu.memory_space<vmem>>) attributes {dimension_semantics = [#tpu.dimension_semantics<parallel>, #tpu.dimension_semantics<parallel>], iteration_bounds = array<i64: 2, 2>, scalar_prefetch = 0 : i64, scratch_operands = 1 : i64, tpu.core_type = #tpu.core_type<tc>, window_params = [{pipeline_mode = #tpu.pipeline_mode<synchronous>, transform_indices = @transform_0, window_bounds = array<i64: 256, 256>}, {pipeline_mode = #tpu.pipeline_mode<synchronous>, transform_indices = @transform_1, window_bounds = array<i64: 256, 256>}, {pipeline_mode = #tpu.pipeline_mode<synchronous>, transform_indices = @transform_2, window_bounds = array<i64: 256, 256>}, {pipeline_mode = #tpu.pipeline_mode<synchronous>, transform_indices = @transform_3, window_bounds = array<i64: 256, 256>}, {transform_indices = @transform_4, window_bounds = array<i64: 1, 1, 256, 256>}, {transform_indices = @transform_5, window_bounds = array<i64: 1, 2, 1, 256, 256>}]} {
    %c0 = arith.constant 0 : index
    %c0_0 = arith.constant 0 : index
    %0 = vector.load %arg2[%c0, %c0_0] : memref<256x256xbf16, #tpu.memory_space<vmem>>, vector<256x256xbf16>
    %c0_1 = arith.constant 0 : index
    %c0_2 = arith.constant 0 : index
    %1 = vector.load %arg3[%c0_1, %c0_2] : memref<256x256xbf16, #tpu.memory_space<vmem>>, vector<256x256xbf16>
    %c0_3 = arith.constant 0 : index
    %c0_4 = arith.constant 0 : index
    %c0_5 = arith.constant 0 : index
    %c0_6 = arith.constant 0 : index
    %2 = vector.load %arg6[%c0_3, %c0_4, %c0_5, %c0_6] : memref<1x1x256x256xf32, #tpu.memory_space<vmem>>, vector<1x1x256x256xf32>
    %3 = vector.shape_cast %2 : vector<1x1x256x256xf32> to vector<256x256xf32>
    %4 = arith.truncf %3 : vector<256x256xf32> to vector<256x256xbf16>
    %cst = arith.constant dense<0.000000e+00> : vector<256x256xf32>
    %5 = tpu.matmul %4, %1, %cst {dimension_numbers = #tpu.dot_dimension_numbers<[1], [0], [0], [1], [0, 0, 1, 1], [], []>} : vector<256x256xbf16>, vector<256x256xbf16>, vector<256x256xf32> -> vector<256x256xf32>
    %6 = arith.truncf %5 : vector<256x256xf32> to vector<256x256xbf16>
    %cst_7 = arith.constant dense<0.000000e+00> : vector<256x256xf32>
    %7 = tpu.matmul %0, %6, %cst_7 {dimension_numbers = #tpu.dot_dimension_numbers<[1], [0], [0], [1], [0, 0, 1, 1], [], []>} : vector<256x256xbf16>, vector<256x256xbf16>, vector<256x256xf32> -> vector<256x256xf32>
    %c0_8 = arith.constant 0 : index
    %c0_9 = arith.constant 0 : index
    %8 = vector.load %arg4[%c0_8, %c0_9] : memref<256x256xf32, #tpu.memory_space<vmem>>, vector<256x256xf32>
    %9 = arith.mulf %7, %8 : vector<256x256xf32>
    %10 = arith.truncf %9 : vector<256x256xf32> to vector<256x256xbf16>
    %c0_10 = arith.constant 0 : index
    %c0_11 = arith.constant 0 : index
    %11 = vector.load %arg8[%c0_10, %c0_11] : memref<256x512xbf16, #tpu.memory_space<vmem>>, vector<256x256xbf16>
    tpu.vector_store %arg8[%c0_10, %c0_11], %10 {strides = array<i32>} : memref<256x512xbf16, #tpu.memory_space<vmem>>, vector<256x256xbf16>,
    %c0_12 = arith.constant 0 : index
    %c0_13 = arith.constant 0 : index
    %12 = vector.load %arg5[%c0_12, %c0_13] : memref<256x256xf32, #tpu.memory_space<vmem>>, vector<256x256xf32>
    %13 = arith.mulf %7, %12 : vector<256x256xf32>
    %14 = arith.truncf %13 : vector<256x256xf32> to vector<256x256xbf16>
    %c0_14 = arith.constant 0 : index
    %c256 = arith.constant 256 : index
    %15 = vector.load %arg8[%c0_14, %c256] : memref<256x512xbf16, #tpu.memory_space<vmem>>, vector<256x256xbf16>
    tpu.vector_store %arg8[%c0_14, %c256], %14 {strides = array<i32>} : memref<256x512xbf16, #tpu.memory_space<vmem>>, vector<256x256xbf16>,
    %c0_15 = arith.constant 0 : index
    %c0_16 = arith.constant 0 : index
    %16 = vector.load %arg8[%c0_15, %c0_16] : memref<256x512xbf16, #tpu.memory_space<vmem>>, vector<256x512xbf16>
    %cst_17 = arith.constant dense<0.000000e+00> : vector<256x512xf32>
    %17 = tpu.matmul %1, %16, %cst_17 {dimension_numbers = #tpu.dot_dimension_numbers<[1], [0], [0], [1], [0, 0, 1, 1], [], []>} : vector<256x256xbf16>, vector<256x512xbf16>, vector<256x512xf32> -> vector<256x512xf32>
    %18 = vector.extract_strided_slice %17 {offsets = [0, 0], sizes = [256, 256], strides = [1, 1]} : vector<256x512xf32> to vector<256x256xf32>
    %19 = arith.truncf %18 : vector<256x256xf32> to vector<256x256xbf16>
    %cst_18 = arith.constant dense<0.000000e+00> : vector<256x256xf32>
    %20 = tpu.matmul %19, %0, %cst_18 {dimension_numbers = #tpu.dot_dimension_numbers<[1], [0], [0], [1], [0, 0, 1, 1], [], []>} : vector<256x256xbf16>, vector<256x256xbf16>, vector<256x256xf32> -> vector<256x256xf32>
    %21 = vector.extract_strided_slice %17 {offsets = [0, 256], sizes = [256, 256], strides = [1, 1]} : vector<256x512xf32> to vector<256x256xf32>
    %22 = arith.truncf %21 : vector<256x256xf32> to vector<256x256xbf16>
    %cst_19 = arith.constant dense<0.000000e+00> : vector<256x256xf32>
    %23 = tpu.matmul %22, %0, %cst_19 {dimension_numbers = #tpu.dot_dimension_numbers<[1], [0], [0], [1], [0, 0, 1, 1], [], []>} : vector<256x256xbf16>, vector<256x256xbf16>, vector<256x256xf32> -> vector<256x256xf32>
    %c0_20 = arith.constant 0 : index
    %c0_21 = arith.constant 0 : index
    %c0_22 = arith.constant 0 : index
    %c0_23 = arith.constant 0 : index
    %c0_24 = arith.constant 0 : index
    %24 = vector.load %arg7[%c0_20, %c0_21, %c0_22, %c0_23, %c0_24] : memref<1x2x1x256x256xf32, #tpu.memory_space<vmem>>, vector<1x1x1x256x256xf32>
    %25 = vector.shape_cast %24 : vector<1x1x1x256x256xf32> to vector<256x256xf32>
    %26 = vector.shape_cast %20 : vector<256x256xf32> to vector<1x1x1x256x256xf32>
    tpu.vector_store %arg7[%c0_20, %c0_21, %c0_22, %c0_23, %c0_24], %26 {strides = array<i32>} : memref<1x2x1x256x256xf32, #tpu.memory_space<vmem>>, vector<1x1x1x256x256xf32>,
    %c0_25 = arith.constant 0 : index
    %c1 = arith.constant 1 : index
    %c0_26 = arith.constant 0 : index
    %c0_27 = arith.constant 0 : index
    %c0_28 = arith.constant 0 : index
    %27 = vector.load %arg7[%c0_25, %c1, %c0_26, %c0_27, %c0_28] : memref<1x2x1x256x256xf32, #tpu.memory_space<vmem>>, vector<1x1x1x256x256xf32>
    %28 = vector.shape_cast %27 : vector<1x1x1x256x256xf32> to vector<256x256xf32>
    %29 = vector.shape_cast %23 : vector<256x256xf32> to vector<1x1x1x256x256xf32>
    tpu.vector_store %arg7[%c0_25, %c1, %c0_26, %c0_27, %c0_28], %29 {strides = array<i32>} : memref<1x2x1x256x256xf32, #tpu.memory_space<vmem>>, vector<1x1x1x256x256xf32>,
    return
  }
  func.func @transform_0(%arg0: i32, %arg1: i32) -> (i32, i32) {
    %c0_i32 = arith.constant 0 : i32
    %c0_i32_0 = arith.constant 0 : i32
    %c0_i32_1 = arith.constant 0 : i32
    return %c0_i32, %c0_i32_0 : i32, i32
  }
  func.func @transform_1(%arg0: i32, %arg1: i32) -> (i32, i32) {
    %c0_i32 = arith.constant 0 : i32
    %c0_i32_0 = arith.constant 0 : i32
    %c0_i32_1 = arith.constant 0 : i32
    return %c0_i32, %c0_i32_0 : i32, i32
  }
  func.func @transform_2(%arg0: i32, %arg1: i32) -> (i32, i32) {
    %c0_i32 = arith.constant 0 : i32
    %c0_i32_0 = arith.constant 0 : i32
    %c0_i32_1 = arith.constant 0 : i32
    return %c0_i32, %c0_i32_0 : i32, i32
  }
  func.func @transform_3(%arg0: i32, %arg1: i32) -> (i32, i32) {
    %c0_i32 = arith.constant 0 : i32
    %c0_i32_0 = arith.constant 0 : i32
    %c0_i32_1 = arith.constant 0 : i32
    return %c0_i32, %c0_i32_0 : i32, i32
  }
  func.func @transform_4(%arg0: i32, %arg1: i32) -> (i32, i32, i32, i32) {
    %c0_i32 = arith.constant 0 : i32
    %c0_i32_0 = arith.constant 0 : i32
    %c0_i32_1 = arith.constant 0 : i32
    return %arg0, %arg1, %c0_i32, %c0_i32_0 : i32, i32, i32, i32
  }
  func.func @transform_5(%arg0: i32, %arg1: i32) -> (i32, i32, i32, i32, i32) {
    %c0_i32 = arith.constant 0 : i32
    %c0_i32_0 = arith.constant 0 : i32
    %c0_i32_1 = arith.constant 0 : i32
    %c0_i32_2 = arith.constant 0 : i32
    return %arg0, %c0_i32, %arg1, %c0_i32_0, %c0_i32_1 : i32, i32, i32, i32, i32
  }
}

</mosaic_0001>

<llo_original>
// kernel: tpu_custom_call.1
$region0: #{tpu_custom_call.1}
  #allocation0 [shape = 'u32[]', space=smem, size = 0x4, offset = 0x4, fixed_abs, tag = 'smem constant byte address 0x4 - core index']
  #allocation1 [shape = 'u32[144,128]{1,0:T(1,128)}', space=vmem, size = 0x12000, scoped, tag = 'internal scratch']
  #allocation2 [shape = 'bf16[256,512]{1,0:T(16,128)(2,1)}', space=vmem, size = 0x40000, scoped, tag = 'scratch operand']
  #allocation13 [shape = 's32[]', space=sflag, size = 0x4, offset = 0, fixed_abs, tag = 'sflag constant byte address 0x0 - dummy sync flag']
  %s0 = inlined_call_operand.hbm [shape: bf16[256,256], index: 0, kind: input, shape index: {}]
  %s1 = inlined_call_operand.hbm [shape: bf16[256,256], index: 1, kind: input, shape index: {}]
  %s2 = inlined_call_operand.hbm [shape: f32[256,256], index: 2, kind: input, shape index: {}]
  %s3 = inlined_call_operand.hbm [shape: f32[256,256], index: 3, kind: input, shape index: {}]
  %s4 = inlined_call_operand.hbm [shape: f32[2,2,256,256], index: 4, kind: input, shape index: {}]
  %s5 = inlined_call_operand.hbm [shape: f32[2,2,2,256,256], index: 5, kind: output, shape index: {}]
  %s6 = sld [smem:[#allocation0]]
  $region73: #{tpu_custom_call.1} parent=0
    _
  %s8 = ssub.s32 1, %s6
  %s9 = scalar_select 0, %s8, %s6
  $region1: #{tpu_custom_call.1} parent=0
    #allocation3 [shape = 'u8[131072]{0}', space=vmem, size = 0x20000, scoped, tag = 'input window, operand 0, single buffered']
    #allocation4 [shape = 's32[2]{0}', space=sflag, size = 0x8, scoped, tag = 'scoped memory for tpu_custom_call.1']
    #allocation5 [shape = 's32[2]{0}', space=sflag, size = 0x8, scoped, tag = 'scoped memory for tpu_custom_call.1']
    #allocation6 [shape = 'u8[131072]{0}', space=vmem, size = 0x20000, scoped, tag = 'input window, operand 1, single buffered']
    #allocation7 [shape = 's32[1]{0}', space=sflag, size = 0x4, scoped, tag = 'scoped memory for tpu_custom_call.1']
    #allocation8 [shape = 'u8[262144]{0}', space=vmem, size = 0x40000, scoped, tag = 'input window, operand 2, single buffered']
    #allocation9 [shape = 'u8[262144]{0}', space=vmem, size = 0x40000, scoped, tag = 'input window, operand 3, single buffered']
    #allocation10 [shape = 's32[1]{0}', space=sflag, size = 0x4, scoped, tag = 'scoped memory for tpu_custom_call.1']
    #allocation11 [shape = 'u8[524288]{0}', space=vmem, size = 0x80000, scoped, tag = 'input window, operand 4']
    #allocation12 [shape = 'u8[1048576]{0}', space=vmem, size = 0x100000, scoped, tag = 'output window, operand 0']
    %10 = vsyncpa [#allocation4], 0
    %11 = vsyncpa [#allocation7], 0
    %12 = vsyncpa [#allocation10], 0
    %13 = vsyncpa [#allocation5], 0
    %s14 = scalar_lea.sflag [#allocation5], 1
    %15 = vsyncpa %s14, 0
    loop: start=0, step=1, limit=6
    $region2: #{tpu_custom_call.1} parent=1 // loop_pre_header
      _
    $region3: #{tpu_custom_call.1} parent=1 // loop_header
      %s17 = sphi 0, %s21
      %p18 = scmp.ge.s32.totalorder %s17, 6
      %s24 = sphi 0, %s36
      %s25 = sphi 0, %s32
      %s26 = sphi 0, %s24
      %s27 = sphi 0, %s25
      %s28 = sphi 0, %s26
      %s29 = sphi 0, %s27
      %s37 = sphi 0, %s37
      %s39 = sphi 0, %s37
      %s40 = sphi 0, %s39
      %s54 = sphi 0, %s40
      %s58 = sphi 0, %s58
      %s60 = sphi 0, %s58
      %s61 = sphi 0, %s60
      %s75 = sphi 0, %s61
      %s79 = sphi 0, %s79
      %s81 = sphi 0, %s79
      %s82 = sphi 0, %s81
      %s96 = sphi 0, %s82
      %s100 = sphi 0, %s100
      %s102 = sphi 0, %s100
      %s103 = sphi 0, %s102
      %s117 = sphi 0, %s103
      %s125 = sphi 0, %s127
      %s128 = sphi 0, %s125
      %s129 = sphi 0, %s128
      %s145 = sphi 0, %s129
      %s153 = sphi 0, %s155
      %s156 = sphi 0, %s153
      %s157 = sphi 0, %s156
      %s173 = sphi 0, %s157
    $region4: #{tpu_custom_call.1} parent=1 // loop_header_branch
      %20 = sbr.rel (%p18) target = $region8
    $region5: #{tpu_custom_call.1} parent=1 // loop_body
      %s22 = ssub.s32 %s17, 1
      %s23 = ssub.s32 %s17, 2
      %s30 = sadd.s32 1, %s25
      %p31 = scmp.ge.s32.totalorder %s30, 2
      %s32 = scalar_select %p31, 0, %s30
      %s33 = sadd.s32 1, %s24
      %s34 = scalar_select %p31, %s33, %s24
      %p35 = scmp.ge.s32.totalorder %s34, 2
      %s36 = scalar_select %p35, 0, %s34
      %s38 = sadd.s32 %s37, 1
      %p41 = scmp.eq.s32.totalorder %s17, 3
      %p42 = scmp.ne.s32.totalorder %s37, %s39
      %p43 = scmp.eq.s32.totalorder %s17, 0
      %p44 = por %p42, %p43
      %p45 = scmp.ne.s32.totalorder %s37, %s39
      %p46 = scmp.eq.s32.totalorder %s22, 3
      %p47 = por %p45, %p46
      %p48 = scmp.ne.s32.totalorder %s39, %s40
      %p49 = scmp.eq.s32.totalorder %s22, 0
      %p50 = por %p48, %p49
      %p51 = scmp.ne.s32.totalorder %s39, %s40
      %p52 = scmp.eq.s32.totalorder %s23, 3
      %p53 = por %p51, %p52
      %p55 = scmp.ne.s32.totalorder %s40, %s54
      %p56 = scmp.eq.s32.totalorder %s23, 0
      %p57 = por %p55, %p56
      %s59 = sadd.s32 %s58, 1
      %p62 = scmp.eq.s32.totalorder %s17, 3
      %p63 = scmp.ne.s32.totalorder %s58, %s60
      %p64 = scmp.eq.s32.totalorder %s17, 0
      %p65 = por %p63, %p64
      %p66 = scmp.ne.s32.totalorder %s58, %s60
      %p67 = scmp.eq.s32.totalorder %s22, 3
      %p68 = por %p66, %p67
      %p69 = scmp.ne.s32.totalorder %s60, %s61
      %p70 = scmp.eq.s32.totalorder %s22, 0
      %p71 = por %p69, %p70
      %p72 = scmp.ne.s32.totalorder %s60, %s61
      %p73 = scmp.eq.s32.totalorder %s23, 3
      %p74 = por %p72, %p73
      %p76 = scmp.ne.s32.totalorder %s61, %s75
      %p77 = scmp.eq.s32.totalorder %s23, 0
      %p78 = por %p76, %p77
      %s80 = sadd.s32 %s79, 1
      %p83 = scmp.eq.s32.totalorder %s17, 3
      %p84 = scmp.ne.s32.totalorder %s79, %s81
      %p85 = scmp.eq.s32.totalorder %s17, 0
      %p86 = por %p84, %p85
      %p87 = scmp.ne.s32.totalorder %s79, %s81
      %p88 = scmp.eq.s32.totalorder %s22, 3
      %p89 = por %p87, %p88
      %p90 = scmp.ne.s32.totalorder %s81, %s82
      %p91 = scmp.eq.s32.totalorder %s22, 0
      %p92 = por %p90, %p91
      %p93 = scmp.ne.s32.totalorder %s81, %s82
      %p94 = scmp.eq.s32.totalorder %s23, 3
      %p95 = por %p93, %p94
      %p97 = scmp.ne.s32.totalorder %s82, %s96
      %p98 = scmp.eq.s32.totalorder %s23, 0
      %p99 = por %p97, %p98
      %s101 = sadd.s32 %s100, 1
      %p104 = scmp.eq.s32.totalorder %s17, 3
      %p105 = scmp.ne.s32.totalorder %s100, %s102
      %p106 = scmp.eq.s32.totalorder %s17, 0
      %p107 = por %p105, %p106
      %p108 = scmp.ne.s32.totalorder %s100, %s102
      %p109 = scmp.eq.s32.totalorder %s22, 3
      %p110 = por %p108, %p109
      %p111 = scmp.ne.s32.totalorder %s102, %s103
      %p112 = scmp.eq.s32.totalorder %s22, 0
      %p113 = por %p111, %p112
      %p114 = scmp.ne.s32.totalorder %s102, %s103
      %p115 = scmp.eq.s32.totalorder %s23, 3
      %p116 = por %p114, %p115
      %p118 = scmp.ne.s32.totalorder %s103, %s117
      %p119 = scmp.eq.s32.totalorder %s23, 0
      %p120 = por %p118, %p119
      %s121 = ssub.s32 %s24, %s36
      %s122 = ssub.s32 %s25, %s32
      %s123 = sor.u32 %s121, %s122
      %p124 = scmp.eq.s32.totalorder %s123, 0
      %s126 = sadd.s32 %s125, 1
      %s127 = scalar_select %p124, %s125, %s126
      %p130 = pneg %p124
      %p131 = scmp.eq.s32.totalorder %s17, 3
      %p132 = por %p130, %p131
      %p133 = scmp.ne.s32.totalorder %s125, %s128
      %p134 = scmp.eq.s32.totalorder %s17, 0
      %p135 = por %p133, %p134
      %p136 = scmp.ne.s32.totalorder %s125, %s128
      %p137 = scmp.eq.s32.totalorder %s22, 3
      %p138 = por %p136, %p137
      %p139 = scmp.ne.s32.totalorder %s128, %s129
      %p140 = scmp.eq.s32.totalorder %s22, 0
      %p141 = por %p139, %p140
      %p142 = scmp.ne.s32.totalorder %s128, %s129
      %p143 = scmp.eq.s32.totalorder %s23, 3
      %p144 = por %p142, %p143
      %p146 = scmp.ne.s32.totalorder %s129, %s145
      %p147 = scmp.eq.s32.totalorder %s23, 0
      %p148 = por %p146, %p147
      %s149 = ssub.s32 %s24, %s36
      %s150 = ssub.s32 %s25, %s32
      %s151 = sor.u32 %s149, %s150
      %p152 = scmp.eq.s32.totalorder %s151, 0
      %s154 = sadd.s32 %s153, 1
      %s155 = scalar_select %p152, %s153, %s154
      %p158 = pneg %p152
      %p159 = scmp.eq.s32.totalorder %s17, 3
      %p160 = por %p158, %p159
      %p161 = scmp.ne.s32.totalorder %s153, %s156
      %p162 = scmp.eq.s32.totalorder %s17, 0
      %p163 = por %p161, %p162
      %p164 = scmp.ne.s32.totalorder %s153, %s156
      %p165 = scmp.eq.s32.totalorder %s22, 3
      %p166 = por %p164, %p165
      %p167 = scmp.ne.s32.totalorder %s156, %s157
      %p168 = scmp.eq.s32.totalorder %s22, 0
      %p169 = por %p167, %p168
      %p170 = scmp.ne.s32.totalorder %s156, %s157
      %p171 = scmp.eq.s32.totalorder %s23, 3
      %p172 = por %p170, %p171
      %p174 = scmp.ne.s32.totalorder %s157, %s173
      %p175 = scmp.eq.s32.totalorder %s23, 0
      %p176 = por %p174, %p175
      %p177 = scmp.le.s32.totalorder 1, %s17
      %p178 = scmp.lt.s32.totalorder %s17, 5
      %p179 = pnand %p177, %p178
      %p180 = pneg %p179
      // Predicated region
      $region9: #{tpu_custom_call.1} parent=5 // pred_check
        _
      $region10: #{tpu_custom_call.1} parent=5 // pred_check_branch
        %182 = sbr.rel (%p179) target = $region12
      $region11: #{tpu_custom_call.1} parent=5 // pred_region
        %s183 = ssub.s32 %s17, 1
        // Predicated region
        $region13: #{tpu_custom_call.1} parent=11 // pred_check
          %p184 = pneg %p50
        $region14: #{tpu_custom_call.1} parent=11 // pred_check_branch
          %186 = sbr.rel (%p184) target = $region16
        $region15: #{tpu_custom_call.1} parent=11 // pred_region
          %s188 = ssub.s32 4096, 4096
          %189 = vsyncadd [#allocation4], %s188
          %s190 = sshll.u32 [#allocation3], 4
          %s191 = int_to_ptr.vmem [resolvable:$true] %s190
          %196 = dma.hbm_to_vmem [thread:$0]  %s0, 4096, %s191, [#allocation4], 128, 128, 8
        $region16: #{tpu_custom_call.1} parent=11 // pred_fallthru
          _
        // Predicated region
        $region17: #{tpu_custom_call.1} parent=11 // pred_check
          %p197 = pneg %p71
        $region18: #{tpu_custom_call.1} parent=11 // pred_check_branch
          %199 = sbr.rel (%p197) target = $region20
        $region19: #{tpu_custom_call.1} parent=11 // pred_region
          %s201 = ssub.s32 4096, 4096
          %202 = vsyncadd [#allocation7], %s201
          %s203 = sshll.u32 [#allocation6], 4
          %s204 = int_to_ptr.vmem [resolvable:$true] %s203
          %209 = dma.hbm_to_vmem [thread:$0]  %s1, 4096, %s204, [#allocation7], 128, 128, 8
        $region20: #{tpu_custom_call.1} parent=11 // pred_fallthru
          _
        // Predicated region
        $region21: #{tpu_custom_call.1} parent=11 // pred_check
          %p210 = pneg %p92
        $region22: #{tpu_custom_call.1} parent=11 // pred_check_branch
          %212 = sbr.rel (%p210) target = $region24
        $region23: #{tpu_custom_call.1} parent=11 // pred_region
          %s214 = ssub.s32 8192, 8192
          %215 = vsyncadd [#allocation7], %s214
          %s216 = sshll.u32 [#allocation8], 4
          %s217 = int_to_ptr.vmem [resolvable:$true] %s216
          %222 = dma.hbm_to_vmem [thread:$0]  %s2, 8192, %s217, [#allocation7], 256, 256, 16
        $region24: #{tpu_custom_call.1} parent=11 // pred_fallthru
          _
        // Predicated region
        $region25: #{tpu_custom_call.1} parent=11 // pred_check
          %p223 = pneg %p113
        $region26: #{tpu_custom_call.1} parent=11 // pred_check_branch
          %225 = sbr.rel (%p223) target = $region28
        $region27: #{tpu_custom_call.1} parent=11 // pred_region
          %s227 = ssub.s32 8192, 8192
          %228 = vsyncadd [#allocation10], %s227
          %s229 = sshll.u32 [#allocation9], 4
          %s230 = int_to_ptr.vmem [resolvable:$true] %s229
          %235 = dma.hbm_to_vmem [thread:$0]  %s3, 8192, %s230, [#allocation10], 256, 256, 16
        $region28: #{tpu_custom_call.1} parent=11 // pred_fallthru
          _
      $region12: #{tpu_custom_call.1} parent=5 // pred_fallthru
        _
      %p236 = scmp.lt.s32.totalorder %s17, 4
      // Predicated region
      $region29: #{tpu_custom_call.1} parent=5 // pred_check
        %p237 = pneg %p236
      $region30: #{tpu_custom_call.1} parent=5 // pred_check_branch
        %239 = sbr.rel (%p237) target = $region32
      $region31: #{tpu_custom_call.1} parent=5 // pred_region
        // Predicated region
        $region33: #{tpu_custom_call.1} parent=31 // pred_check
          %p240 = pneg %p135
        $region34: #{tpu_custom_call.1} parent=31 // pred_check_branch
          %242 = sbr.rel (%p240) target = $region36
        $region35: #{tpu_custom_call.1} parent=31 // pred_region
          %s243 = sand.u32 %s17, 1
          %s244 = scalar_lea.sflag [#allocation4], %s243
          %s245 = sand.u32 %s125, 1
          %s246 = smul.addr %s245, 512
          %s247 = scalar_lea.vmem [#allocation11], %s246
          %s249 = ssub.s32 8192, 8192
          %250 = vsyncadd %s244, %s249
          %s251 = smul.addr %s25, 64
          %s252 = smul.addr %s24, 128
          %s253 = sadd.s32 %s251, %s252
          %s254 = smul.addr %s253, 128
          %s255 = scalar_lea.hbm %s4, %s254
          %s256 = sshll.u32 %s247, 4
          %s257 = int_to_ptr.vmem [resolvable:$true] %s256
          %262 = dma.hbm_to_vmem [thread:$0]  %s255, 8192, %s257, %s244, 256, 256, 16
        $region36: #{tpu_custom_call.1} parent=31 // pred_fallthru
          _
      $region32: #{tpu_custom_call.1} parent=5 // pred_fallthru
        _
      %p263 = scmp.le.s32.totalorder 1, %s17
      %p264 = scmp.lt.s32.totalorder %s17, 5
      %p265 = pnand %p263, %p264
      %p266 = pneg %p265
      // Predicated region
      $region37: #{tpu_custom_call.1} parent=5 // pred_check
        _
      $region38: #{tpu_custom_call.1} parent=5 // pred_check_branch
        %268 = sbr.rel (%p265) target = $region40
      $region39: #{tpu_custom_call.1} parent=5 // pred_region
        %s269 = ssub.s32 %s17, 1
        // Predicated region
        $region41: #{tpu_custom_call.1} parent=39 // pred_check
          %p270 = pneg %p50
        $region42: #{tpu_custom_call.1} parent=39 // pred_check_branch
          %272 = sbr.rel (%p270) target = $region44
        $region43: #{tpu_custom_call.1} parent=39 // pred_region
          %273 = dma.done [#allocation4], 4096
        $region44: #{tpu_custom_call.1} parent=39 // pred_fallthru
          _
        // Predicated region
        $region45: #{tpu_custom_call.1} parent=39 // pred_check
          %p274 = pneg %p71
        $region46: #{tpu_custom_call.1} parent=39 // pred_check_branch
          %276 = sbr.rel (%p274) target = $region48
        $region47: #{tpu_custom_call.1} parent=39 // pred_region
          %277 = dma.done [#allocation7], 4096
        $region48: #{tpu_custom_call.1} parent=39 // pred_fallthru
          _
        // Predicated region
        $region49: #{tpu_custom_call.1} parent=39 // pred_check
          %p278 = pneg %p92
        $region50: #{tpu_custom_call.1} parent=39 // pred_check_branch
          %280 = sbr.rel (%p278) target = $region52
        $region51: #{tpu_custom_call.1} parent=39 // pred_region
          %281 = dma.done [#allocation7], 8192
        $region52: #{tpu_custom_call.1} parent=39 // pred_fallthru
          _
        // Predicated region
        $region53: #{tpu_custom_call.1} parent=39 // pred_check
          %p282 = pneg %p113
        $region54: #{tpu_custom_call.1} parent=39 // pred_check_branch
          %284 = sbr.rel (%p282) target = $region56
        $region55: #{tpu_custom_call.1} parent=39 // pred_region
          %285 = dma.done [#allocation10], 8192
        $region56: #{tpu_custom_call.1} parent=39 // pred_fallthru
          _
        %s286 = sand.u32 %s22, 1
        %s287 = scalar_lea.sflag [#allocation4], %s286
        %s288 = sand.u32 %s128, 1
        %s289 = smul.addr %s288, 512
        %s290 = scalar_lea.vmem [#allocation11], %s289
        // Predicated region
        $region57: #{tpu_custom_call.1} parent=39 // pred_check
          %p291 = pneg %p141
        $region58: #{tpu_custom_call.1} parent=39 // pred_check_branch
          %293 = sbr.rel (%p291) target = $region60
        $region59: #{tpu_custom_call.1} parent=39 // pred_region
          %294 = dma.done %s287, 8192
        $region60: #{tpu_custom_call.1} parent=39 // pred_fallthru
          _
        %p295 = pneg %p50
        %p296 = pneg %p47
        %p297 = pneg %p71
        %p298 = pneg %p68
        %p299 = pneg %p92
        %p300 = pneg %p89
        %p301 = pneg %p113
        %p302 = pneg %p110
        %s303 = sand.u32 %s22, 1
        %s304 = scalar_lea.sflag [#allocation4], %s303
        %s305 = sand.u32 %s128, 1
        %s306 = smul.addr %s305, 512
        %s307 = scalar_lea.vmem [#allocation11], %s306
        %p308 = pneg %p141
        %p309 = pneg %p138
        %p310 = pneg %p169
        %p311 = pneg %p166
        %s312 = sand.u32 %s156, 1
        %s313 = scalar_lea.sflag [#allocation5], %s312
        %s314 = sand.u32 %s156, 1
        %s315 = smul.addr %s314, 1024
        %s316 = scalar_lea.vmem [#allocation12], %s315
        %v317 = vld [vmem:[#allocation3] sm:$0xff]
        %v318 = vld [vmem:[#allocation3 + $0x8] sm:$0xff]
        %v319 = vld [vmem:[#allocation3 + $0x10] sm:$0xff]
        %v320 = vld [vmem:[#allocation3 + $0x18] sm:$0xff]
        %v321 = vld [vmem:[#allocation3 + $0x20] sm:$0xff]
        %v322 = vld [vmem:[#allocation3 + $0x28] sm:$0xff]
        %v323 = vld [vmem:[#allocation3 + $0x30] sm:$0xff]
        %v324 = vld [vmem:[#allocation3 + $0x38] sm:$0xff]
        %v325 = vld [vmem:[#allocation3 + $0x40] sm:$0xff]
        %v326 = vld [vmem:[#allocation3 + $0x48] sm:$0xff]
        %v327 = vld [vmem:[#allocation3 + $0x50] sm:$0xff]
        %v328 = vld [vmem:[#allocation3 + $0x58] sm:$0xff]
        %v329 = vld [vmem:[#allocation3 + $0x60] sm:$0xff]
        %v330 = vld [vmem:[#allocation3 + $0x68] sm:$0xff]
        %v331 = vld [vmem:[#allocation3 + $0x70] sm:$0xff]
        %v332 = vld [vmem:[#allocation3 + $0x78] sm:$0xff]
        %v333 = vld [vmem:[#allocation3 + $0x80] sm:$0xff]
        %v334 = vld [vmem:[#allocation3 + $0x88] sm:$0xff]
        %v335 = vld [vmem:[#allocation3 + $0x90] sm:$0xff]
        %v336 = vld [vmem:[#allocation3 + $0x98] sm:$0xff]
        %v337 = vld [vmem:[#allocation3 + $0xa0] sm:$0xff]
        %v338 = vld [vmem:[#allocation3 + $0xa8] sm:$0xff]
        %v339 = vld [vmem:[#allocation3 + $0xb0] sm:$0xff]
        %v340 = vld [vmem:[#allocation3 + $0xb8] sm:$0xff]
        %v341 = vld [vmem:[#allocation3 + $0xc0] sm:$0xff]
        %v342 = vld [vmem:[#allocation3 + $0xc8] sm:$0xff]
        %v343 = vld [vmem:[#allocation3 + $0xd0] sm:$0xff]
        %v344 = vld [vmem:[#allocation3 + $0xd8] sm:$0xff]
        %v345 = vld [vmem:[#allocation3 + $0xe0] sm:$0xff]
        %v346 = vld [vmem:[#allocation3 + $0xe8] sm:$0xff]
        %v347 = vld [vmem:[#allocation3 + $0xf0] sm:$0xff]
        %v348 = vld [vmem:[#allocation3 + $0xf8] sm:$0xff]
        %v349 = vld [vmem:[#allocation6] sm:$0xff]
        %v350 = vld [vmem:[#allocation6 + $0x8] sm:$0xff]
        %v351 = vld [vmem:[#allocation6 + $0x10] sm:$0xff]
        %v352 = vld [vmem:[#allocation6 + $0x18] sm:$0xff]
        %v353 = vld [vmem:[#allocation6 + $0x20] sm:$0xff]
        %v354 = vld [vmem:[#allocation6 + $0x28] sm:$0xff]
        %v355 = vld [vmem:[#allocation6 + $0x30] sm:$0xff]
        %v356 = vld [vmem:[#allocation6 + $0x38] sm:$0xff]
        %v357 = vld [vmem:[#allocation6 + $0x40] sm:$0xff]
        %v358 = vld [vmem:[#allocation6 + $0x48] sm:$0xff]
        %v359 = vld [vmem:[#allocation6 + $0x50] sm:$0xff]
        %v360 = vld [vmem:[#allocation6 + $0x58] sm:$0xff]
        %v361 = vld [vmem:[#allocation6 + $0x60] sm:$0xff]
        %v362 = vld [vmem:[#allocation6 + $0x68] sm:$0xff]
        %v363 = vld [vmem:[#allocation6 + $0x70] sm:$0xff]
        %v364 = vld [vmem:[#allocation6 + $0x78] sm:$0xff]
        %v365 = vld [vmem:[#allocation6 + $0x80] sm:$0xff]
        %v366 = vld [vmem:[#allocation6 + $0x88] sm:$0xff]
        %v367 = vld [vmem:[#allocation6 + $0x90] sm:$0xff]
        %v368 = vld [vmem:[#allocation6 + $0x98] sm:$0xff]
        %v369 = vld [vmem:[#allocation6 + $0xa0] sm:$0xff]
        %v370 = vld [vmem:[#allocation6 + $0xa8] sm:$0xff]
        %v371 = vld [vmem:[#allocation6 + $0xb0] sm:$0xff]
        %v372 = vld [vmem:[#allocation6 + $0xb8] sm:$0xff]
        %v373 = vld [vmem:[#allocation6 + $0xc0] sm:$0xff]
        %v374 = vld [vmem:[#allocation6 + $0xc8] sm:$0xff]
        %v375 = vld [vmem:[#allocation6 + $0xd0] sm:$0xff]
        %v376 = vld [vmem:[#allocation6 + $0xd8] sm:$0xff]
        %v377 = vld [vmem:[#allocation6 + $0xe0] sm:$0xff]
        %v378 = vld [vmem:[#allocation6 + $0xe8] sm:$0xff]
        %v379 = vld [vmem:[#allocation6 + $0xf0] sm:$0xff]
        %v380 = vld [vmem:[#allocation6 + $0xf8] sm:$0xff]
        %v381 = vld [vmem:[%s290] sm:$0xff]
        %v382 = vld [vmem:[%s290 + $0x8] sm:$0xff]
        %v383 = vld [vmem:[%s290 + $0x10] sm:$0xff]
        %v384 = vld [vmem:[%s290 + $0x18] sm:$0xff]
        %v385 = vld [vmem:[%s290 + $0x20] sm:$0xff]
        %v386 = vld [vmem:[%s290 + $0x28] sm:$0xff]
        %v387 = vld [vmem:[%s290 + $0x30] sm:$0xff]
        %v388 = vld [vmem:[%s290 + $0x38] sm:$0xff]
        %v389 = vld [vmem:[%s290 + $0x40] sm:$0xff]
        %v390 = vld [vmem:[%s290 + $0x48] sm:$0xff]
        %v391 = vld [vmem:[%s290 + $0x50] sm:$0xff]
        %v392 = vld [vmem:[%s290 + $0x58] sm:$0xff]
        %v393 = vld [vmem:[%s290 + $0x60] sm:$0xff]
        %v394 = vld [vmem:[%s290 + $0x68] sm:$0xff]
        %v395 = vld [vmem:[%s290 + $0x70] sm:$0xff]
        %v396 = vld [vmem:[%s290 + $0x78] sm:$0xff]
        %v397 = vld [vmem:[%s290 + $0x80] sm:$0xff]
        %v398 = vld [vmem:[%s290 + $0x88] sm:$0xff]
        %v399 = vld [vmem:[%s290 + $0x90] sm:$0xff]
        %v400 = vld [vmem:[%s290 + $0x98] sm:$0xff]
        %v401 = vld [vmem:[%s290 + $0xa0] sm:$0xff]
        %v402 = vld [vmem:[%s290 + $0xa8] sm:$0xff]
        %v403 = vld [vmem:[%s290 + $0xb0] sm:$0xff]
        %v404 = vld [vmem:[%s290 + $0xb8] sm:$0xff]
        %v405 = vld [vmem:[%s290 + $0xc0] sm:$0xff]
        %v406 = vld [vmem:[%s290 + $0xc8] sm:$0xff]
        %v407 = vld [vmem:[%s290 + $0xd0] sm:$0xff]
        %v408 = vld [vmem:[%s290 + $0xd8] sm:$0xff]
        %v409 = vld [vmem:[%s290 + $0xe0] sm:$0xff]
        %v410 = vld [vmem:[%s290 + $0xe8] sm:$0xff]
        %v411 = vld [vmem:[%s290 + $0xf0] sm:$0xff]
        %v412 = vld [vmem:[%s290 + $0xf8] sm:$0xff]
        %v413 = vld [vmem:[%s290 + $0x100] sm:$0xff]
        %v414 = vld [vmem:[%s290 + $0x108] sm:$0xff]
        %v415 = vld [vmem:[%s290 + $0x110] sm:$0xff]
        %v416 = vld [vmem:[%s290 + $0x118] sm:$0xff]
        %v417 = vld [vmem:[%s290 + $0x120] sm:$0xff]
        %v418 = vld [vmem:[%s290 + $0x128] sm:$0xff]
        %v419 = vld [vmem:[%s290 + $0x130] sm:$0xff]
        %v420 = vld [vmem:[%s290 + $0x138] sm:$0xff]
        %v421 = vld [vmem:[%s290 + $0x140] sm:$0xff]
        %v422 = vld [vmem:[%s290 + $0x148] sm:$0xff]
        %v423 = vld [vmem:[%s290 + $0x150] sm:$0xff]
        %v424 = vld [vmem:[%s290 + $0x158] sm:$0xff]
        %v425 = vld [vmem:[%s290 + $0x160] sm:$0xff]
        %v426 = vld [vmem:[%s290 + $0x168] sm:$0xff]
        %v427 = vld [vmem:[%s290 + $0x170] sm:$0xff]
        %v428 = vld [vmem:[%s290 + $0x178] sm:$0xff]
        %v429 = vld [vmem:[%s290 + $0x180] sm:$0xff]
        %v430 = vld [vmem:[%s290 + $0x188] sm:$0xff]
        %v431 = vld [vmem:[%s290 + $0x190] sm:$0xff]
        %v432 = vld [vmem:[%s290 + $0x198] sm:$0xff]
        %v433 = vld [vmem:[%s290 + $0x1a0] sm:$0xff]
        %v434 = vld [vmem:[%s290 + $0x1a8] sm:$0xff]
        %v435 = vld [vmem:[%s290 + $0x1b0] sm:$0xff]
        %v436 = vld [vmem:[%s290 + $0x1b8] sm:$0xff]
        %v437 = vld [vmem:[%s290 + $0x1c0] sm:$0xff]
        %v438 = vld [vmem:[%s290 + $0x1c8] sm:$0xff]
        %v439 = vld [vmem:[%s290 + $0x1d0] sm:$0xff]
        %v440 = vld [vmem:[%s290 + $0x1d8] sm:$0xff]
        %v441 = vld [vmem:[%s290 + $0x1e0] sm:$0xff]
        %v442 = vld [vmem:[%s290 + $0x1e8] sm:$0xff]
        %v443 = vld [vmem:[%s290 + $0x1f0] sm:$0xff]
        %v444 = vld [vmem:[%s290 + $0x1f8] sm:$0xff]
        %v445 = vpack.c.bf16 %v383, %v381
        %v446 = vpack.c.bf16 %v384, %v382
        %v447 = vpack.c.bf16 %v387, %v385
        %v448 = vpack.c.bf16 %v388, %v386
        %v449 = vpack.c.bf16 %v391, %v389
        %v450 = vpack.c.bf16 %v392, %v390
        %v451 = vpack.c.bf16 %v395, %v393
        %v452 = vpack.c.bf16 %v396, %v394
        %v453 = vpack.c.bf16 %v399, %v397
        %v454 = vpack.c.bf16 %v400, %v398
        %v455 = vpack.c.bf16 %v403, %v401
        %v456 = vpack.c.bf16 %v404, %v402
        %v457 = vpack.c.bf16 %v407, %v405
        %v458 = vpack.c.bf16 %v408, %v406
        %v459 = vpack.c.bf16 %v411, %v409
        %v460 = vpack.c.bf16 %v412, %v410
        %v461 = vpack.c.bf16 %v415, %v413
        %v462 = vpack.c.bf16 %v416, %v414
        %v463 = vpack.c.bf16 %v419, %v417
        %v464 = vpack.c.bf16 %v420, %v418
        %v465 = vpack.c.bf16 %v423, %v421
        %v466 = vpack.c.bf16 %v424, %v422
        %v467 = vpack.c.bf16 %v427, %v425
        %v468 = vpack.c.bf16 %v428, %v426
        %v469 = vpack.c.bf16 %v431, %v429
        %v470 = vpack.c.bf16 %v432, %v430
        %v471 = vpack.c.bf16 %v435, %v433
        %v472 = vpack.c.bf16 %v436, %v434
        %v473 = vpack.c.bf16 %v439, %v437
        %v474 = vpack.c.bf16 %v440, %v438
        %v475 = vpack.c.bf16 %v443, %v441
        %v476 = vpack.c.bf16 %v444, %v442
        %v509 = vunpack.c.l.b16 %v349
        %v510 = vunpack.c.h.b16 %v349
        %v511 = vunpack.c.l.b16 %v350
        %v512 = vunpack.c.h.b16 %v350
        %v513 = vunpack.c.l.b16 %v351
        %v514 = vunpack.c.h.b16 %v351
        %v515 = vunpack.c.l.b16 %v352
        %v516 = vunpack.c.h.b16 %v352
        %v517 = vunpack.c.l.b16 %v353
        %v518 = vunpack.c.h.b16 %v353
        %v519 = vunpack.c.l.b16 %v354
        %v520 = vunpack.c.h.b16 %v354
        %v521 = vunpack.c.l.b16 %v355
        %v522 = vunpack.c.h.b16 %v355
        %v523 = vunpack.c.l.b16 %v356
        %v524 = vunpack.c.h.b16 %v356
        %v525 = vunpack.c.l.b16 %v357
        %v526 = vunpack.c.h.b16 %v357
        %v527 = vunpack.c.l.b16 %v358
        %v528 = vunpack.c.h.b16 %v358
        %v529 = vunpack.c.l.b16 %v359
        %v530 = vunpack.c.h.b16 %v359
        %v531 = vunpack.c.l.b16 %v360
        %v532 = vunpack.c.h.b16 %v360
        %v533 = vunpack.c.l.b16 %v361
        %v534 = vunpack.c.h.b16 %v361
        %v535 = vunpack.c.l.b16 %v362
        %v536 = vunpack.c.h.b16 %v362
        %v537 = vunpack.c.l.b16 %v363
        %v538 = vunpack.c.h.b16 %v363
        %v539 = vunpack.c.l.b16 %v364
        %v540 = vunpack.c.h.b16 %v364
        %v541 = vunpack.c.l.b16 %v365
        %v542 = vunpack.c.h.b16 %v365
        %v543 = vunpack.c.l.b16 %v366
        %v544 = vunpack.c.h.b16 %v366
        %v545 = vunpack.c.l.b16 %v367
        %v546 = vunpack.c.h.b16 %v367
        %v547 = vunpack.c.l.b16 %v368
        %v548 = vunpack.c.h.b16 %v368
        %v549 = vunpack.c.l.b16 %v369
        %v550 = vunpack.c.h.b16 %v369
        %v551 = vunpack.c.l.b16 %v370
        %v552 = vunpack.c.h.b16 %v370
        %v553 = vunpack.c.l.b16 %v371
        %v554 = vunpack.c.h.b16 %v371
        %v555 = vunpack.c.l.b16 %v372
        %v556 = vunpack.c.h.b16 %v372
        %v557 = vunpack.c.l.b16 %v373
        %v558 = vunpack.c.h.b16 %v373
        %v559 = vunpack.c.l.b16 %v374
        %v560 = vunpack.c.h.b16 %v374
        %v561 = vunpack.c.l.b16 %v375
        %v562 = vunpack.c.h.b16 %v375
        %v563 = vunpack.c.l.b16 %v376
        %v564 = vunpack.c.h.b16 %v376
        %v565 = vunpack.c.l.b16 %v377
        %v566 = vunpack.c.h.b16 %v377
        %v567 = vunpack.c.l.b16 %v378
        %v568 = vunpack.c.h.b16 %v378
        %v569 = vunpack.c.l.b16 %v379
        %v570 = vunpack.c.h.b16 %v379
        %v571 = vunpack.c.l.b16 %v380
        %v572 = vunpack.c.h.b16 %v380
        %v573 = vpack.c.b16 %v511, %v509
        %v574 = vpack.c.b16 %v512, %v510
        %v575 = vpack.c.b16 %v515, %v513
        %v576 = vpack.c.b16 %v516, %v514
        %v577 = vpack.c.b16 %v519, %v517
        %v578 = vpack.c.b16 %v520, %v518
        %v579 = vpack.c.b16 %v523, %v521
        %v580 = vpack.c.b16 %v524, %v522
        %v581 = vpack.c.b16 %v527, %v525
        %v582 = vpack.c.b16 %v528, %v526
        %v583 = vpack.c.b16 %v531, %v529
        %v584 = vpack.c.b16 %v532, %v530
        %v585 = vpack.c.b16 %v535, %v533
        %v586 = vpack.c.b16 %v536, %v534
        %v587 = vpack.c.b16 %v539, %v537
        %v588 = vpack.c.b16 %v540, %v538
        %v589 = vpack.c.b16 %v543, %v541
        %v590 = vpack.c.b16 %v544, %v542
        %v591 = vpack.c.b16 %v547, %v545
        %v592 = vpack.c.b16 %v548, %v546
        %v593 = vpack.c.b16 %v551, %v549
        %v594 = vpack.c.b16 %v552, %v550
        %v595 = vpack.c.b16 %v555, %v553
        %v596 = vpack.c.b16 %v556, %v554
        %v597 = vpack.c.b16 %v559, %v557
        %v598 = vpack.c.b16 %v560, %v558
        %v599 = vpack.c.b16 %v563, %v561
        %v600 = vpack.c.b16 %v564, %v562
        %v601 = vpack.c.b16 %v567, %v565
        %v602 = vpack.c.b16 %v568, %v566
        %v603 = vpack.c.b16 %v571, %v569
        %v604 = vpack.c.b16 %v572, %v570
        %637 = vmatprep.subr.bf16.mxu0 %v574
        %638 = vmatpush1.bf16.msra.mxu0 %v573
        %639 = vmatprep.subr.bf16.mxu0 %v576
        %640 = vmatpush1.bf16.msra.mxu0 %v575
        %641 = vmatprep.subr.bf16.mxu0 %v578
        %642 = vmatpush1.bf16.msra.mxu0 %v577
        %643 = vmatprep.subr.bf16.mxu0 %v580
        %644 = vmatpush1.bf16.msra.mxu0 %v579
        %645 = vmatprep.subr.bf16.mxu0 %v582
        %646 = vmatpush1.bf16.msra.mxu0 %v581
        %647 = vmatprep.subr.bf16.mxu0 %v584
        %648 = vmatpush1.bf16.msra.mxu0 %v583
        %649 = vmatprep.subr.bf16.mxu0 %v586
        %650 = vmatpush1.bf16.msra.mxu0 %v585
        %651 = vmatprep.subr.bf16.mxu0 %v588
        %652 = vmatpush1.bf16.msra.mxu0 %v587
        %653 = vmatprep.subr.bf16.mxu0 %v590
        %654 = vmatpush1.bf16.msra.mxu0 %v589
        %655 = vmatprep.subr.bf16.mxu0 %v592
        %656 = vmatpush1.bf16.msra.mxu0 %v591
        %657 = vmatprep.subr.bf16.mxu0 %v594
        %658 = vmatpush1.bf16.msra.mxu0 %v593
        %659 = vmatprep.subr.bf16.mxu0 %v596
        %660 = vmatpush1.bf16.msra.mxu0 %v595
        %661 = vmatprep.subr.bf16.mxu0 %v598
        %662 = vmatpush1.bf16.msra.mxu0 %v597
        %663 = vmatprep.subr.bf16.mxu0 %v600
        %664 = vmatpush1.bf16.msra.mxu0 %v599
        %665 = vmatprep.subr.bf16.mxu0 %v602
        %666 = vmatpush1.bf16.msra.mxu0 %v601
        %667 = vmatprep.subr.bf16.mxu0 %v604
        %668 = vmatpush1.bf16.msra.mxu0 %v603
        %669 = vmatprep.mubr.bf16.mxu0 %v446
        %670 = vmatmul.mubr.bf16.gmra.mrb[0].mxu0 %v445
        %v671 = vpop.f32.mrb[0].mxu0
        %v672 = vadd.f32 0.0, %v671
        %v673 = vpop.f32.mrb[0].mxu0
        %v674 = vadd.f32 0.0, %v673
        %v675 = vpop.f32.mrb[0].mxu0
        %v676 = vadd.f32 0.0, %v675
        %v677 = vpop.f32.mrb[0].mxu0
        %v678 = vadd.f32 0.0, %v677
        %679 = vmatprep.mubr.bf16.mxu0 %v448
        %680 = vmatmul.mubr.bf16.gmra.mrb[0].mxu0 %v447
        %v681 = vpop.f32.mrb[0].mxu0
        %v682 = vadd.f32 0.0, %v681
        %v683 = vpop.f32.mrb[0].mxu0
        %v684 = vadd.f32 0.0, %v683
        %v685 = vpop.f32.mrb[0].mxu0
        %v686 = vadd.f32 0.0, %v685
        %v687 = vpop.f32.mrb[0].mxu0
        %v688 = vadd.f32 0.0, %v687
        %689 = vmatprep.mubr.bf16.mxu0 %v450
        %690 = vmatmul.mubr.bf16.gmra.mrb[0].mxu0 %v449
        %v691 = vpop.f32.mrb[0].mxu0
        %v692 = vadd.f32 0.0, %v691
        %v693 = vpop.f32.mrb[0].mxu0
        %v694 = vadd.f32 0.0, %v693
        %v695 = vpop.f32.mrb[0].mxu0
        %v696 = vadd.f32 0.0, %v695
        %v697 = vpop.f32.mrb[0].mxu0
        %v698 = vadd.f32 0.0, %v697
        %699 = vmatprep.mubr.bf16.mxu0 %v452
        %700 = vmatmul.mubr.bf16.gmra.mrb[0].mxu0 %v451
        %v701 = vpop.f32.mrb[0].mxu0
        %v702 = vadd.f32 0.0, %v701
        %v703 = vpop.f32.mrb[0].mxu0
        %v704 = vadd.f32 0.0, %v703
        %v705 = vpop.f32.mrb[0].mxu0
        %v706 = vadd.f32 0.0, %v705
        %v707 = vpop.f32.mrb[0].mxu0
        %v708 = vadd.f32 0.0, %v707
        %709 = vmatprep.mubr.bf16.mxu0 %v454
        %710 = vmatmul.mubr.bf16.gmra.mrb[0].mxu0 %v453
        %v711 = vpop.f32.mrb[0].mxu0
        %v712 = vadd.f32 0.0, %v711
        %v713 = vpop.f32.mrb[0].mxu0
        %v714 = vadd.f32 0.0, %v713
        %v715 = vpop.f32.mrb[0].mxu0
        %v716 = vadd.f32 0.0, %v715
        %v717 = vpop.f32.mrb[0].mxu0
        %v718 = vadd.f32 0.0, %v717
        %719 = vmatprep.mubr.bf16.mxu0 %v456
        %720 = vmatmul.mubr.bf16.gmra.mrb[0].mxu0 %v455
        %v721 = vpop.f32.mrb[0].mxu0
        %v722 = vadd.f32 0.0, %v721
        %v723 = vpop.f32.mrb[0].mxu0
        %v724 = vadd.f32 0.0, %v723
        %v725 = vpop.f32.mrb[0].mxu0
        %v726 = vadd.f32 0.0, %v725
        %v727 = vpop.f32.mrb[0].mxu0
        %v728 = vadd.f32 0.0, %v727
        %729 = vmatprep.mubr.bf16.mxu0 %v458
        %730 = vmatmul.mubr.bf16.gmra.mrb[0].mxu0 %v457
        %v731 = vpop.f32.mrb[0].mxu0
        %v732 = vadd.f32 0.0, %v731
        %v733 = vpop.f32.mrb[0].mxu0
        %v734 = vadd.f32 0.0, %v733
        %v735 = vpop.f32.mrb[0].mxu0
        %v736 = vadd.f32 0.0, %v735
        %v737 = vpop.f32.mrb[0].mxu0
        %v738 = vadd.f32 0.0, %v737
        %739 = vmatprep.mubr.bf16.mxu0 %v460
        %740 = vmatmul.mubr.bf16.gmra.mrb[0].mxu0 %v459
        %v741 = vpop.f32.mrb[0].mxu0
        %v742 = vadd.f32 0.0, %v741
        %v743 = vpop.f32.mrb[0].mxu0
        %v744 = vadd.f32 0.0, %v743
        %v745 = vpop.f32.mrb[0].mxu0
        %v746 = vadd.f32 0.0, %v745
        %v747 = vpop.f32.mrb[0].mxu0
        %v748 = vadd.f32 0.0, %v747
        %749 = vmatprep.mubr.bf16.mxu0 %v462
        %750 = vmatmul.mubr.bf16.gmra.mrb[0].mxu0 %v461
        %v751 = vpop.f32.mrb[0].mxu0
        %v752 = vadd.f32 0.0, %v751
        %v753 = vpop.f32.mrb[0].mxu0
        %v754 = vadd.f32 0.0, %v753
        %v755 = vpop.f32.mrb[0].mxu0
        %v756 = vadd.f32 0.0, %v755
        %v757 = vpop.f32.mrb[0].mxu0
        %v758 = vadd.f32 0.0, %v757
        %759 = vmatprep.mubr.bf16.mxu0 %v464
        %760 = vmatmul.mubr.bf16.gmra.mrb[0].mxu0 %v463
        %v761 = vpop.f32.mrb[0].mxu0
        %v762 = vadd.f32 0.0, %v761
        %v763 = vpop.f32.mrb[0].mxu0
        %v764 = vadd.f32 0.0, %v763
        %v765 = vpop.f32.mrb[0].mxu0
        %v766 = vadd.f32 0.0, %v765
        %v767 = vpop.f32.mrb[0].mxu0
        %v768 = vadd.f32 0.0, %v767
        %769 = vmatprep.mubr.bf16.mxu0 %v466
        %770 = vmatmul.mubr.bf16.gmra.mrb[0].mxu0 %v465
        %v771 = vpop.f32.mrb[0].mxu0
        %v772 = vadd.f32 0.0, %v771
        %v773 = vpop.f32.mrb[0].mxu0
        %v774 = vadd.f32 0.0, %v773
        %v775 = vpop.f32.mrb[0].mxu0
        %v776 = vadd.f32 0.0, %v775
        %v777 = vpop.f32.mrb[0].mxu0
        %v778 = vadd.f32 0.0, %v777
        %779 = vmatprep.mubr.bf16.mxu0 %v468
        %780 = vmatmul.mubr.bf16.gmra.mrb[0].mxu0 %v467
        %v781 = vpop.f32.mrb[0].mxu0
        %v782 = vadd.f32 0.0, %v781
        %v783 = vpop.f32.mrb[0].mxu0
        %v784 = vadd.f32 0.0, %v783
        %v785 = vpop.f32.mrb[0].mxu0
        %v786 = vadd.f32 0.0, %v785
        %v787 = vpop.f32.mrb[0].mxu0
        %v788 = vadd.f32 0.0, %v787
        %789 = vmatprep.mubr.bf16.mxu0 %v470
        %790 = vmatmul.mubr.bf16.gmra.mrb[0].mxu0 %v469
        %v791 = vpop.f32.mrb[0].mxu0
        %v792 = vadd.f32 0.0, %v791
        %v793 = vpop.f32.mrb[0].mxu0
        %v794 = vadd.f32 0.0, %v793
        %v795 = vpop.f32.mrb[0].mxu0
        %v796 = vadd.f32 0.0, %v795
        %v797 = vpop.f32.mrb[0].mxu0
        %v798 = vadd.f32 0.0, %v797
        %799 = vmatprep.mubr.bf16.mxu0 %v472
        %800 = vmatmul.mubr.bf16.gmra.mrb[0].mxu0 %v471
        %v801 = vpop.f32.mrb[0].mxu0
        %v802 = vadd.f32 0.0, %v801
        %v803 = vpop.f32.mrb[0].mxu0
        %v804 = vadd.f32 0.0, %v803
        %v805 = vpop.f32.mrb[0].mxu0
        %v806 = vadd.f32 0.0, %v805
        %v807 = vpop.f32.mrb[0].mxu0
        %v808 = vadd.f32 0.0, %v807
        %809 = vmatprep.mubr.bf16.mxu0 %v474
        %810 = vmatmul.mubr.bf16.gmra.mrb[0].mxu0 %v473
        %v811 = vpop.f32.mrb[0].mxu0
        %v812 = vadd.f32 0.0, %v811
        %v813 = vpop.f32.mrb[0].mxu0
        %v814 = vadd.f32 0.0, %v813
        %v815 = vpop.f32.mrb[0].mxu0
        %v816 = vadd.f32 0.0, %v815
        %v817 = vpop.f32.mrb[0].mxu0
        %v818 = vadd.f32 0.0, %v817
        %819 = vmatprep.mubr.bf16.mxu0 %v476
        %820 = vmatmul.mubr.bf16.gmra.mrb[0].mxu0 %v475
        %v821 = vpop.f32.mrb[0].mxu0
        %v822 = vadd.f32 0.0, %v821
        %v823 = vpop.f32.mrb[0].mxu0
        %v824 = vadd.f32 0.0, %v823
        %v825 = vpop.f32.mrb[0].mxu0
        %v826 = vadd.f32 0.0, %v825
        %v827 = vpop.f32.mrb[0].mxu0
        %v828 = vadd.f32 0.0, %v827
        %829 = vdwg.mxu0
        %v830 = vpack.c.bf16 %v676, %v672
        %v831 = vpack.c.bf16 %v678, %v674
        %v832 = vpack.c.bf16 %v686, %v682
        %v833 = vpack.c.bf16 %v688, %v684
        %v834 = vpack.c.bf16 %v696, %v692
        %v835 = vpack.c.bf16 %v698, %v694
        %v836 = vpack.c.bf16 %v706, %v702
        %v837 = vpack.c.bf16 %v708, %v704
        %v838 = vpack.c.bf16 %v716, %v712
        %v839 = vpack.c.bf16 %v718, %v714
        %v840 = vpack.c.bf16 %v726, %v722
        %v841 = vpack.c.bf16 %v728, %v724
        %v842 = vpack.c.bf16 %v736, %v732
        %v843 = vpack.c.bf16 %v738, %v734
        %v844 = vpack.c.bf16 %v746, %v742
        %v845 = vpack.c.bf16 %v748, %v744
        %v846 = vpack.c.bf16 %v756, %v752
        %v847 = vpack.c.bf16 %v758, %v754
        %v848 = vpack.c.bf16 %v766, %v762
        %v849 = vpack.c.bf16 %v768, %v764
        %v850 = vpack.c.bf16 %v776, %v772
        %v851 = vpack.c.bf16 %v778, %v774
        %v852 = vpack.c.bf16 %v786, %v782
        %v853 = vpack.c.bf16 %v788, %v784
        %v854 = vpack.c.bf16 %v796, %v792
        %v855 = vpack.c.bf16 %v798, %v794
        %v856 = vpack.c.bf16 %v806, %v802
        %v857 = vpack.c.bf16 %v808, %v804
        %v858 = vpack.c.bf16 %v816, %v812
        %v859 = vpack.c.bf16 %v818, %v814
        %v860 = vpack.c.bf16 %v826, %v822
        %v861 = vpack.c.bf16 %v828, %v824
        %v894 = vunpack.c.l.b16 %v317
        %v895 = vunpack.c.h.b16 %v317
        %v896 = vunpack.c.l.b16 %v318
        %v897 = vunpack.c.h.b16 %v318
        %v898 = vunpack.c.l.b16 %v319
        %v899 = vunpack.c.h.b16 %v319
        %v900 = vunpack.c.l.b16 %v320
        %v901 = vunpack.c.h.b16 %v320
        %v902 = vunpack.c.l.b16 %v321
        %v903 = vunpack.c.h.b16 %v321
        %v904 = vunpack.c.l.b16 %v322
        %v905 = vunpack.c.h.b16 %v322
        %v906 = vunpack.c.l.b16 %v323
        %v907 = vunpack.c.h.b16 %v323
        %v908 = vunpack.c.l.b16 %v324
        %v909 = vunpack.c.h.b16 %v324
        %v910 = vunpack.c.l.b16 %v325
        %v911 = vunpack.c.h.b16 %v325
        %v912 = vunpack.c.l.b16 %v326
        %v913 = vunpack.c.h.b16 %v326
        %v914 = vunpack.c.l.b16 %v327
        %v915 = vunpack.c.h.b16 %v327
        %v916 = vunpack.c.l.b16 %v328
        %v917 = vunpack.c.h.b16 %v328
        %v918 = vunpack.c.l.b16 %v329
        %v919 = vunpack.c.h.b16 %v329
        %v920 = vunpack.c.l.b16 %v330
        %v921 = vunpack.c.h.b16 %v330
        %v922 = vunpack.c.l.b16 %v331
        %v923 = vunpack.c.h.b16 %v331
        %v924 = vunpack.c.l.b16 %v332
        %v925 = vunpack.c.h.b16 %v332
        %v926 = vunpack.c.l.b16 %v333
        %v927 = vunpack.c.h.b16 %v333
        %v928 = vunpack.c.l.b16 %v334
        %v929 = vunpack.c.h.b16 %v334
        %v930 = vunpack.c.l.b16 %v335
        %v931 = vunpack.c.h.b16 %v335
        %v932 = vunpack.c.l.b16 %v336
        %v933 = vunpack.c.h.b16 %v336
        %v934 = vunpack.c.l.b16 %v337
        %v935 = vunpack.c.h.b16 %v337
        %v936 = vunpack.c.l.b16 %v338
        %v937 = vunpack.c.h.b16 %v338
        %v938 = vunpack.c.l.b16 %v339
        %v939 = vunpack.c.h.b16 %v339
        %v940 = vunpack.c.l.b16 %v340
        %v941 = vunpack.c.h.b16 %v340
        %v942 = vunpack.c.l.b16 %v341
        %v943 = vunpack.c.h.b16 %v341
        %v944 = vunpack.c.l.b16 %v342
        %v945 = vunpack.c.h.b16 %v342
        %v946 = vunpack.c.l.b16 %v343
        %v947 = vunpack.c.h.b16 %v343
        %v948 = vunpack.c.l.b16 %v344
        %v949 = vunpack.c.h.b16 %v344
        %v950 = vunpack.c.l.b16 %v345
        %v951 = vunpack.c.h.b16 %v345
        %v952 = vunpack.c.l.b16 %v346
        %v953 = vunpack.c.h.b16 %v346
        %v954 = vunpack.c.l.b16 %v347
        %v955 = vunpack.c.h.b16 %v347
        %v956 = vunpack.c.l.b16 %v348
        %v957 = vunpack.c.h.b16 %v348
        %v958 = vpack.c.b16 %v896, %v894
        %v959 = vpack.c.b16 %v897, %v895
        %v960 = vpack.c.b16 %v900, %v898
        %v961 = vpack.c.b16 %v901, %v899
        %v962 = vpack.c.b16 %v904, %v902
        %v963 = vpack.c.b16 %v905, %v903
        %v964 = vpack.c.b16 %v908, %v906
        %v965 = vpack.c.b16 %v909, %v907
        %v966 = vpack.c.b16 %v912, %v910
        %v967 = vpack.c.b16 %v913, %v911
        %v968 = vpack.c.b16 %v916, %v914
        %v969 = vpack.c.b16 %v917, %v915
        %v970 = vpack.c.b16 %v920, %v918
        %v971 = vpack.c.b16 %v921, %v919
        %v972 = vpack.c.b16 %v924, %v922
        %v973 = vpack.c.b16 %v925, %v923
        %v974 = vpack.c.b16 %v928, %v926
        %v975 = vpack.c.b16 %v929, %v927
        %v976 = vpack.c.b16 %v932, %v930
        %v977 = vpack.c.b16 %v933, %v931
        %v978 = vpack.c.b16 %v936, %v934
        %v979 = vpack.c.b16 %v937, %v935
        %v980 = vpack.c.b16 %v940, %v938
        %v981 = vpack.c.b16 %v941, %v939
        %v982 = vpack.c.b16 %v944, %v942
        %v983 = vpack.c.b16 %v945, %v943
        %v984 = vpack.c.b16 %v948, %v946
        %v985 = vpack.c.b16 %v949, %v947
        %v986 = vpack.c.b16 %v952, %v950
        %v987 = vpack.c.b16 %v953, %v951
        %v988 = vpack.c.b16 %v956, %v954
        %v989 = vpack.c.b16 %v957, %v955
        %1022 = vmatprep.subr.bf16.mxu0 %v831
        %1023 = vmatpush1.bf16.msra.mxu0 %v830
        %1024 = vmatprep.subr.bf16.mxu0 %v833
        %1025 = vmatpush1.bf16.msra.mxu0 %v832
        %1026 = vmatprep.subr.bf16.mxu0 %v835
        %1027 = vmatpush1.bf16.msra.mxu0 %v834
        %1028 = vmatprep.subr.bf16.mxu0 %v837
        %1029 = vmatpush1.bf16.msra.mxu0 %v836
        %1030 = vmatprep.subr.bf16.mxu0 %v839
        %1031 = vmatpush1.bf16.msra.mxu0 %v838
        %1032 = vmatprep.subr.bf16.mxu0 %v841
        %1033 = vmatpush1.bf16.msra.mxu0 %v840
        %1034 = vmatprep.subr.bf16.mxu0 %v843
        %1035 = vmatpush1.bf16.msra.mxu0 %v842
        %1036 = vmatprep.subr.bf16.mxu0 %v845
        %1037 = vmatpush1.bf16.msra.mxu0 %v844
        %1038 = vmatprep.subr.bf16.mxu0 %v847
        %1039 = vmatpush1.bf16.msra.mxu0 %v846
        %1040 = vmatprep.subr.bf16.mxu0 %v849
        %1041 = vmatpush1.bf16.msra.mxu0 %v848
        %1042 = vmatprep.subr.bf16.mxu0 %v851
        %1043 = vmatpush1.bf16.msra.mxu0 %v850
        %1044 = vmatprep.subr.bf16.mxu0 %v853
        %1045 = vmatpush1.bf16.msra.mxu0 %v852
        %1046 = vmatprep.subr.bf16.mxu0 %v855
        %1047 = vmatpush1.bf16.msra.mxu0 %v854
        %1048 = vmatprep.subr.bf16.mxu0 %v857
        %1049 = vmatpush1.bf16.msra.mxu0 %v856
        %1050 = vmatprep.subr.bf16.mxu0 %v859
        %1051 = vmatpush1.bf16.msra.mxu0 %v858
        %1052 = vmatprep.subr.bf16.mxu0 %v861
        %1053 = vmatpush1.bf16.msra.mxu0 %v860
        %1054 = vmatprep.mubr.bf16.mxu0 %v959
        %1055 = vmatmul.mubr.bf16.gmra.mrb[0].mxu0 %v958
        %v1056 = vpop.f32.mrb[0].mxu0
        %v1057 = vadd.f32 0.0, %v1056
        %v1058 = vpop.f32.mrb[0].mxu0
        %v1059 = vadd.f32 0.0, %v1058
        %v1060 = vpop.f32.mrb[0].mxu0
        %v1061 = vadd.f32 0.0, %v1060
        %v1062 = vpop.f32.mrb[0].mxu0
        %v1063 = vadd.f32 0.0, %v1062
        %1064 = vmatprep.mubr.bf16.mxu0 %v961
        %1065 = vmatmul.mubr.bf16.gmra.mrb[0].mxu0 %v960
        %v1066 = vpop.f32.mrb[0].mxu0
        %v1067 = vadd.f32 0.0, %v1066
        %v1068 = vpop.f32.mrb[0].mxu0
        %v1069 = vadd.f32 0.0, %v1068
        %v1070 = vpop.f32.mrb[0].mxu0
        %v1071 = vadd.f32 0.0, %v1070
        %v1072 = vpop.f32.mrb[0].mxu0
        %v1073 = vadd.f32 0.0, %v1072
        %1074 = vmatprep.mubr.bf16.mxu0 %v963
        %1075 = vmatmul.mubr.bf16.gmra.mrb[0].mxu0 %v962
        %v1076 = vpop.f32.mrb[0].mxu0
        %v1077 = vadd.f32 0.0, %v1076
        %v1078 = vpop.f32.mrb[0].mxu0
        %v1079 = vadd.f32 0.0, %v1078
        %v1080 = vpop.f32.mrb[0].mxu0
        %v1081 = vadd.f32 0.0, %v1080
        %v1082 = vpop.f32.mrb[0].mxu0
        %v1083 = vadd.f32 0.0, %v1082
        %1084 = vmatprep.mubr.bf16.mxu0 %v965
        %1085 = vmatmul.mubr.bf16.gmra.mrb[0].mxu0 %v964
        %v1086 = vpop.f32.mrb[0].mxu0
        %v1087 = vadd.f32 0.0, %v1086
        %v1088 = vpop.f32.mrb[0].mxu0
        %v1089 = vadd.f32 0.0, %v1088
        %v1090 = vpop.f32.mrb[0].mxu0
        %v1091 = vadd.f32 0.0, %v1090
        %v1092 = vpop.f32.mrb[0].mxu0
        %v1093 = vadd.f32 0.0, %v1092
        %1094 = vmatprep.mubr.bf16.mxu0 %v967
        %1095 = vmatmul.mubr.bf16.gmra.mrb[0].mxu0 %v966
        %v1096 = vpop.f32.mrb[0].mxu0
        %v1097 = vadd.f32 0.0, %v1096
        %v1098 = vpop.f32.mrb[0].mxu0
        %v1099 = vadd.f32 0.0, %v1098
        %v1100 = vpop.f32.mrb[0].mxu0
        %v1101 = vadd.f32 0.0, %v1100
        %v1102 = vpop.f32.mrb[0].mxu0
        %v1103 = vadd.f32 0.0, %v1102
        %1104 = vmatprep.mubr.bf16.mxu0 %v969
        %1105 = vmatmul.mubr.bf16.gmra.mrb[0].mxu0 %v968
        %v1106 = vpop.f32.mrb[0].mxu0
        %v1107 = vadd.f32 0.0, %v1106
        %v1108 = vpop.f32.mrb[0].mxu0
        %v1109 = vadd.f32 0.0, %v1108
        %v1110 = vpop.f32.mrb[0].mxu0
        %v1111 = vadd.f32 0.0, %v1110
        %v1112 = vpop.f32.mrb[0].mxu0
        %v1113 = vadd.f32 0.0, %v1112
        %1114 = vmatprep.mubr.bf16.mxu0 %v971
        %1115 = vmatmul.mubr.bf16.gmra.mrb[0].mxu0 %v970
        %v1116 = vpop.f32.mrb[0].mxu0
        %v1117 = vadd.f32 0.0, %v1116
        %v1118 = vpop.f32.mrb[0].mxu0
        %v1119 = vadd.f32 0.0, %v1118
        %v1120 = vpop.f32.mrb[0].mxu0
        %v1121 = vadd.f32 0.0, %v1120
        %v1122 = vpop.f32.mrb[0].mxu0
        %v1123 = vadd.f32 0.0, %v1122
        %1124 = vmatprep.mubr.bf16.mxu0 %v973
        %1125 = vmatmul.mubr.bf16.gmra.mrb[0].mxu0 %v972
        %v1126 = vpop.f32.mrb[0].mxu0
        %v1127 = vadd.f32 0.0, %v1126
        %v1128 = vpop.f32.mrb[0].mxu0
        %v1129 = vadd.f32 0.0, %v1128
        %v1130 = vpop.f32.mrb[0].mxu0
        %v1131 = vadd.f32 0.0, %v1130
        %v1132 = vpop.f32.mrb[0].mxu0
        %v1133 = vadd.f32 0.0, %v1132
        %1134 = vmatprep.mubr.bf16.mxu0 %v975
        %1135 = vmatmul.mubr.bf16.gmra.mrb[0].mxu0 %v974
        %v1136 = vpop.f32.mrb[0].mxu0
        %v1137 = vadd.f32 0.0, %v1136
        %v1138 = vpop.f32.mrb[0].mxu0
        %v1139 = vadd.f32 0.0, %v1138
        %v1140 = vpop.f32.mrb[0].mxu0
        %v1141 = vadd.f32 0.0, %v1140
        %v1142 = vpop.f32.mrb[0].mxu0
        %v1143 = vadd.f32 0.0, %v1142
        %1144 = vmatprep.mubr.bf16.mxu0 %v977
        %1145 = vmatmul.mubr.bf16.gmra.mrb[0].mxu0 %v976
        %v1146 = vpop.f32.mrb[0].mxu0
        %v1147 = vadd.f32 0.0, %v1146
        %v1148 = vpop.f32.mrb[0].mxu0
        %v1149 = vadd.f32 0.0, %v1148
        %v1150 = vpop.f32.mrb[0].mxu0
        %v1151 = vadd.f32 0.0, %v1150
        %v1152 = vpop.f32.mrb[0].mxu0
        %v1153 = vadd.f32 0.0, %v1152
        %1154 = vmatprep.mubr.bf16.mxu0 %v979
        %1155 = vmatmul.mubr.bf16.gmra.mrb[0].mxu0 %v978
        %v1156 = vpop.f32.mrb[0].mxu0
        %v1157 = vadd.f32 0.0, %v1156
        %v1158 = vpop.f32.mrb[0].mxu0
        %v1159 = vadd.f32 0.0, %v1158
        %v1160 = vpop.f32.mrb[0].mxu0
        %v1161 = vadd.f32 0.0, %v1160
        %v1162 = vpop.f32.mrb[0].mxu0
        %v1163 = vadd.f32 0.0, %v1162
        %1164 = vmatprep.mubr.bf16.mxu0 %v981
        %1165 = vmatmul.mubr.bf16.gmra.mrb[0].mxu0 %v980
        %v1166 = vpop.f32.mrb[0].mxu0
        %v1167 = vadd.f32 0.0, %v1166
        %v1168 = vpop.f32.mrb[0].mxu0
        %v1169 = vadd.f32 0.0, %v1168
        %v1170 = vpop.f32.mrb[0].mxu0
        %v1171 = vadd.f32 0.0, %v1170
        %v1172 = vpop.f32.mrb[0].mxu0
        %v1173 = vadd.f32 0.0, %v1172
        %1174 = vmatprep.mubr.bf16.mxu0 %v983
        %1175 = vmatmul.mubr.bf16.gmra.mrb[0].mxu0 %v982
        %v1176 = vpop.f32.mrb[0].mxu0
        %v1177 = vadd.f32 0.0, %v1176
        %v1178 = vpop.f32.mrb[0].mxu0
        %v1179 = vadd.f32 0.0, %v1178
        %v1180 = vpop.f32.mrb[0].mxu0
        %v1181 = vadd.f32 0.0, %v1180
        %v1182 = vpop.f32.mrb[0].mxu0
        %v1183 = vadd.f32 0.0, %v1182
        %1184 = vmatprep.mubr.bf16.mxu0 %v985
        %1185 = vmatmul.mubr.bf16.gmra.mrb[0].mxu0 %v984
        %v1186 = vpop.f32.mrb[0].mxu0
        %v1187 = vadd.f32 0.0, %v1186
        %v1188 = vpop.f32.mrb[0].mxu0
        %v1189 = vadd.f32 0.0, %v1188
        %v1190 = vpop.f32.mrb[0].mxu0
        %v1191 = vadd.f32 0.0, %v1190
        %v1192 = vpop.f32.mrb[0].mxu0
        %v1193 = vadd.f32 0.0, %v1192
        %1194 = vmatprep.mubr.bf16.mxu0 %v987
        %1195 = vmatmul.mubr.bf16.gmra.mrb[0].mxu0 %v986
        %v1196 = vpop.f32.mrb[0].mxu0
        %v1197 = vadd.f32 0.0, %v1196
        %v1198 = vpop.f32.mrb[0].mxu0
        %v1199 = vadd.f32 0.0, %v1198
        %v1200 = vpop.f32.mrb[0].mxu0
        %v1201 = vadd.f32 0.0, %v1200
        %v1202 = vpop.f32.mrb[0].mxu0
        %v1203 = vadd.f32 0.0, %v1202
        %1204 = vmatprep.mubr.bf16.mxu0 %v989
        %1205 = vmatmul.mubr.bf16.gmra.mrb[0].mxu0 %v988
        %v1206 = vpop.f32.mrb[0].mxu0
        %v1207 = vadd.f32 0.0, %v1206
        %v1208 = vpop.f32.mrb[0].mxu0
        %v1209 = vadd.f32 0.0, %v1208
        %v1210 = vpop.f32.mrb[0].mxu0
        %v1211 = vadd.f32 0.0, %v1210
        %v1212 = vpop.f32.mrb[0].mxu0
        %v1213 = vadd.f32 0.0, %v1212
        %1214 = vdwg.mxu0
        %v1215 = vld [vmem:[#allocation8] sm:$0xff]
        %v1216 = vld [vmem:[#allocation8 + $0x8] sm:$0xff]
        %v1217 = vld [vmem:[#allocation8 + $0x10] sm:$0xff]
        %v1218 = vld [vmem:[#allocation8 + $0x18] sm:$0xff]
        %v1219 = vld [vmem:[#allocation8 + $0x20] sm:$0xff]
        %v1220 = vld [vmem:[#allocation8 + $0x28] sm:$0xff]
        %v1221 = vld [vmem:[#allocation8 + $0x30] sm:$0xff]
        %v1222 = vld [vmem:[#allocation8 + $0x38] sm:$0xff]
        %v1223 = vld [vmem:[#allocation8 + $0x40] sm:$0xff]
        %v1224 = vld [vmem:[#allocation8 + $0x48] sm:$0xff]
        %v1225 = vld [vmem:[#allocation8 + $0x50] sm:$0xff]
        %v1226 = vld [vmem:[#allocation8 + $0x58] sm:$0xff]
        %v1227 = vld [vmem:[#allocation8 + $0x60] sm:$0xff]
        %v1228 = vld [vmem:[#allocation8 + $0x68] sm:$0xff]
        %v1229 = vld [vmem:[#allocation8 + $0x70] sm:$0xff]
        %v1230 = vld [vmem:[#allocation8 + $0x78] sm:$0xff]
        %v1231 = vld [vmem:[#allocation8 + $0x80] sm:$0xff]
        %v1232 = vld [vmem:[#allocation8 + $0x88] sm:$0xff]
        %v1233 = vld [vmem:[#allocation8 + $0x90] sm:$0xff]
        %v1234 = vld [vmem:[#allocation8 + $0x98] sm:$0xff]
        %v1235 = vld [vmem:[#allocation8 + $0xa0] sm:$0xff]
        %v1236 = vld [vmem:[#allocation8 + $0xa8] sm:$0xff]
        %v1237 = vld [vmem:[#allocation8 + $0xb0] sm:$0xff]
        %v1238 = vld [vmem:[#allocation8 + $0xb8] sm:$0xff]
        %v1239 = vld [vmem:[#allocation8 + $0xc0] sm:$0xff]
        %v1240 = vld [vmem:[#allocation8 + $0xc8] sm:$0xff]
        %v1241 = vld [vmem:[#allocation8 + $0xd0] sm:$0xff]
        %v1242 = vld [vmem:[#allocation8 + $0xd8] sm:$0xff]
        %v1243 = vld [vmem:[#allocation8 + $0xe0] sm:$0xff]
        %v1244 = vld [vmem:[#allocation8 + $0xe8] sm:$0xff]
        %v1245 = vld [vmem:[#allocation8 + $0xf0] sm:$0xff]
        %v1246 = vld [vmem:[#allocation8 + $0xf8] sm:$0xff]
        %v1247 = vld [vmem:[#allocation8 + $0x100] sm:$0xff]
        %v1248 = vld [vmem:[#allocation8 + $0x108] sm:$0xff]
        %v1249 = vld [vmem:[#allocation8 + $0x110] sm:$0xff]
        %v1250 = vld [vmem:[#allocation8 + $0x118] sm:$0xff]
        %v1251 = vld [vmem:[#allocation8 + $0x120] sm:$0xff]
        %v1252 = vld [vmem:[#allocation8 + $0x128] sm:$0xff]
        %v1253 = vld [vmem:[#allocation8 + $0x130] sm:$0xff]
        %v1254 = vld [vmem:[#allocation8 + $0x138] sm:$0xff]
        %v1255 = vld [vmem:[#allocation8 + $0x140] sm:$0xff]
        %v1256 = vld [vmem:[#allocation8 + $0x148] sm:$0xff]
        %v1257 = vld [vmem:[#allocation8 + $0x150] sm:$0xff]
        %v1258 = vld [vmem:[#allocation8 + $0x158] sm:$0xff]
        %v1259 = vld [vmem:[#allocation8 + $0x160] sm:$0xff]
        %v1260 = vld [vmem:[#allocation8 + $0x168] sm:$0xff]
        %v1261 = vld [vmem:[#allocation8 + $0x170] sm:$0xff]
        %v1262 = vld [vmem:[#allocation8 + $0x178] sm:$0xff]
        %v1263 = vld [vmem:[#allocation8 + $0x180] sm:$0xff]
        %v1264 = vld [vmem:[#allocation8 + $0x188] sm:$0xff]
        %v1265 = vld [vmem:[#allocation8 + $0x190] sm:$0xff]
        %v1266 = vld [vmem:[#allocation8 + $0x198] sm:$0xff]
        %v1267 = vld [vmem:[#allocation8 + $0x1a0] sm:$0xff]
        %v1268 = vld [vmem:[#allocation8 + $0x1a8] sm:$0xff]
        %v1269 = vld [vmem:[#allocation8 + $0x1b0] sm:$0xff]
        %v1270 = vld [vmem:[#allocation8 + $0x1b8] sm:$0xff]
        %v1271 = vld [vmem:[#allocation8 + $0x1c0] sm:$0xff]
        %v1272 = vld [vmem:[#allocation8 + $0x1c8] sm:$0xff]
        %v1273 = vld [vmem:[#allocation8 + $0x1d0] sm:$0xff]
        %v1274 = vld [vmem:[#allocation8 + $0x1d8] sm:$0xff]
        %v1275 = vld [vmem:[#allocation8 + $0x1e0] sm:$0xff]
        %v1276 = vld [vmem:[#allocation8 + $0x1e8] sm:$0xff]
        %v1277 = vld [vmem:[#allocation8 + $0x1f0] sm:$0xff]
        %v1278 = vld [vmem:[#allocation8 + $0x1f8] sm:$0xff]
        %v1279 = vmul.f32 %v1057, %v1215
        %v1280 = vmul.f32 %v1059, %v1216
        %v1281 = vmul.f32 %v1061, %v1217
        %v1282 = vmul.f32 %v1063, %v1218
        %v1283 = vmul.f32 %v1067, %v1219
        %v1284 = vmul.f32 %v1069, %v1220
        %v1285 = vmul.f32 %v1071, %v1221
        %v1286 = vmul.f32 %v1073, %v1222
        %v1287 = vmul.f32 %v1077, %v1223
        %v1288 = vmul.f32 %v1079, %v1224
        %v1289 = vmul.f32 %v1081, %v1225
        %v1290 = vmul.f32 %v1083, %v1226
        %v1291 = vmul.f32 %v1087, %v1227
        %v1292 = vmul.f32 %v1089, %v1228
        %v1293 = vmul.f32 %v1091, %v1229
        %v1294 = vmul.f32 %v1093, %v1230
        %v1295 = vmul.f32 %v1097, %v1231
        %v1296 = vmul.f32 %v1099, %v1232
        %v1297 = vmul.f32 %v1101, %v1233
        %v1298 = vmul.f32 %v1103, %v1234
        %v1299 = vmul.f32 %v1107, %v1235
        %v1300 = vmul.f32 %v1109, %v1236
        %v1301 = vmul.f32 %v1111, %v1237
        %v1302 = vmul.f32 %v1113, %v1238
        %v1303 = vmul.f32 %v1117, %v1239
        %v1304 = vmul.f32 %v1119, %v1240
        %v1305 = vmul.f32 %v1121, %v1241
        %v1306 = vmul.f32 %v1123, %v1242
        %v1307 = vmul.f32 %v1127, %v1243
        %v1308 = vmul.f32 %v1129, %v1244
        %v1309 = vmul.f32 %v1131, %v1245
        %v1310 = vmul.f32 %v1133, %v1246
        %v1311 = vmul.f32 %v1137, %v1247
        %v1312 = vmul.f32 %v1139, %v1248
        %v1313 = vmul.f32 %v1141, %v1249
        %v1314 = vmul.f32 %v1143, %v1250
        %v1315 = vmul.f32 %v1147, %v1251
        %v1316 = vmul.f32 %v1149, %v1252
        %v1317 = vmul.f32 %v1151, %v1253
        %v1318 = vmul.f32 %v1153, %v1254
        %v1319 = vmul.f32 %v1157, %v1255
        %v1320 = vmul.f32 %v1159, %v1256
        %v1321 = vmul.f32 %v1161, %v1257
        %v1322 = vmul.f32 %v1163, %v1258
        %v1323 = vmul.f32 %v1167, %v1259
        %v1324 = vmul.f32 %v1169, %v1260
        %v1325 = vmul.f32 %v1171, %v1261
        %v1326 = vmul.f32 %v1173, %v1262
        %v1327 = vmul.f32 %v1177, %v1263
        %v1328 = vmul.f32 %v1179, %v1264
        %v1329 = vmul.f32 %v1181, %v1265
        %v1330 = vmul.f32 %v1183, %v1266
        %v1331 = vmul.f32 %v1187, %v1267
        %v1332 = vmul.f32 %v1189, %v1268
        %v1333 = vmul.f32 %v1191, %v1269
        %v1334 = vmul.f32 %v1193, %v1270
        %v1335 = vmul.f32 %v1197, %v1271
        %v1336 = vmul.f32 %v1199, %v1272
        %v1337 = vmul.f32 %v1201, %v1273
        %v1338 = vmul.f32 %v1203, %v1274
        %v1339 = vmul.f32 %v1207, %v1275
        %v1340 = vmul.f32 %v1209, %v1276
        %v1341 = vmul.f32 %v1211, %v1277
        %v1342 = vmul.f32 %v1213, %v1278
        %v1343 = vpack.c.bf16 %v1281, %v1279
        %v1344 = vpack.c.bf16 %v1282, %v1280
        %v1345 = vpack.c.bf16 %v1285, %v1283
        %v1346 = vpack.c.bf16 %v1286, %v1284
        %v1347 = vpack.c.bf16 %v1289, %v1287
        %v1348 = vpack.c.bf16 %v1290, %v1288
        %v1349 = vpack.c.bf16 %v1293, %v1291
        %v1350 = vpack.c.bf16 %v1294, %v1292
        %v1351 = vpack.c.bf16 %v1297, %v1295
        %v1352 = vpack.c.bf16 %v1298, %v1296
        %v1353 = vpack.c.bf16 %v1301, %v1299
        %v1354 = vpack.c.bf16 %v1302, %v1300
        %v1355 = vpack.c.bf16 %v1305, %v1303
        %v1356 = vpack.c.bf16 %v1306, %v1304
        %v1357 = vpack.c.bf16 %v1309, %v1307
        %v1358 = vpack.c.bf16 %v1310, %v1308
        %v1359 = vpack.c.bf16 %v1313, %v1311
        %v1360 = vpack.c.bf16 %v1314, %v1312
        %v1361 = vpack.c.bf16 %v1317, %v1315
        %v1362 = vpack.c.bf16 %v1318, %v1316
        %v1363 = vpack.c.bf16 %v1321, %v1319
        %v1364 = vpack.c.bf16 %v1322, %v1320
        %v1365 = vpack.c.bf16 %v1325, %v1323
        %v1366 = vpack.c.bf16 %v1326, %v1324
        %v1367 = vpack.c.bf16 %v1329, %v1327
        %v1368 = vpack.c.bf16 %v1330, %v1328
        %v1369 = vpack.c.bf16 %v1333, %v1331
        %v1370 = vpack.c.bf16 %v1334, %v1332
        %v1371 = vpack.c.bf16 %v1337, %v1335
        %v1372 = vpack.c.bf16 %v1338, %v1336
        %v1373 = vpack.c.bf16 %v1341, %v1339
        %v1374 = vpack.c.bf16 %v1342, %v1340
        %1375 = vst [vmem:[#allocation2] sm:$0xff] %v1343
        %1376 = vst [vmem:[#allocation2 + $0x8] sm:$0xff] %v1344
        %1377 = vst [vmem:[#allocation2 + $0x20] sm:$0xff] %v1345
        %1378 = vst [vmem:[#allocation2 + $0x28] sm:$0xff] %v1346
        %1379 = vst [vmem:[#allocation2 + $0x40] sm:$0xff] %v1347
        %1380 = vst [vmem:[#allocation2 + $0x48] sm:$0xff] %v1348
        %1381 = vst [vmem:[#allocation2 + $0x60] sm:$0xff] %v1349
        %1382 = vst [vmem:[#allocation2 + $0x68] sm:$0xff] %v1350
        %1383 = vst [vmem:[#allocation2 + $0x80] sm:$0xff] %v1351
        %1384 = vst [vmem:[#allocation2 + $0x88] sm:$0xff] %v1352
        %1385 = vst [vmem:[#allocation2 + $0xa0] sm:$0xff] %v1353
        %1386 = vst [vmem:[#allocation2 + $0xa8] sm:$0xff] %v1354
        %1387 = vst [vmem:[#allocation2 + $0xc0] sm:$0xff] %v1355
        %1388 = vst [vmem:[#allocation2 + $0xc8] sm:$0xff] %v1356
        %1389 = vst [vmem:[#allocation2 + $0xe0] sm:$0xff] %v1357
        %1390 = vst [vmem:[#allocation2 + $0xe8] sm:$0xff] %v1358
        %1391 = vst [vmem:[#allocation2 + $0x100] sm:$0xff] %v1359
        %1392 = vst [vmem:[#allocation2 + $0x108] sm:$0xff] %v1360
        %1393 = vst [vmem:[#allocation2 + $0x120] sm:$0xff] %v1361
        %1394 = vst [vmem:[#allocation2 + $0x128] sm:$0xff] %v1362
        %1395 = vst [vmem:[#allocation2 + $0x140] sm:$0xff] %v1363
        %1396 = vst [vmem:[#allocation2 + $0x148] sm:$0xff] %v1364
        %1397 = vst [vmem:[#allocation2 + $0x160] sm:$0xff] %v1365
        %1398 = vst [vmem:[#allocation2 + $0x168] sm:$0xff] %v1366
        %1399 = vst [vmem:[#allocation2 + $0x180] sm:$0xff] %v1367
        %1400 = vst [vmem:[#allocation2 + $0x188] sm:$0xff] %v1368
        %1401 = vst [vmem:[#allocation2 + $0x1a0] sm:$0xff] %v1369
        %1402 = vst [vmem:[#allocation2 + $0x1a8] sm:$0xff] %v1370
        %1403 = vst [vmem:[#allocation2 + $0x1c0] sm:$0xff] %v1371
        %1404 = vst [vmem:[#allocation2 + $0x1c8] sm:$0xff] %v1372
        %1405 = vst [vmem:[#allocation2 + $0x1e0] sm:$0xff] %v1373
        %1406 = vst [vmem:[#allocation2 + $0x1e8] sm:$0xff] %v1374
        %v1407 = vld [vmem:[#allocation9] sm:$0xff]
        %v1408 = vld [vmem:[#allocation9 + $0x8] sm:$0xff]
        %v1409 = vld [vmem:[#allocation9 + $0x10] sm:$0xff]
        %v1410 = vld [vmem:[#allocation9 + $0x18] sm:$0xff]
        %v1411 = vld [vmem:[#allocation9 + $0x20] sm:$0xff]
        %v1412 = vld [vmem:[#allocation9 + $0x28] sm:$0xff]
        %v1413 = vld [vmem:[#allocation9 + $0x30] sm:$0xff]
        %v1414 = vld [vmem:[#allocation9 + $0x38] sm:$0xff]
        %v1415 = vld [vmem:[#allocation9 + $0x40] sm:$0xff]
        %v1416 = vld [vmem:[#allocation9 + $0x48] sm:$0xff]
        %v1417 = vld [vmem:[#allocation9 + $0x50] sm:$0xff]
        %v1418 = vld [vmem:[#allocation9 + $0x58] sm:$0xff]
        %v1419 = vld [vmem:[#allocation9 + $0x60] sm:$0xff]
        %v1420 = vld [vmem:[#allocation9 + $0x68] sm:$0xff]
        %v1421 = vld [vmem:[#allocation9 + $0x70] sm:$0xff]
        %v1422 = vld [vmem:[#allocation9 + $0x78] sm:$0xff]
        %v1423 = vld [vmem:[#allocation9 + $0x80] sm:$0xff]
        %v1424 = vld [vmem:[#allocation9 + $0x88] sm:$0xff]
        %v1425 = vld [vmem:[#allocation9 + $0x90] sm:$0xff]
        %v1426 = vld [vmem:[#allocation9 + $0x98] sm:$0xff]
        %v1427 = vld [vmem:[#allocation9 + $0xa0] sm:$0xff]
        %v1428 = vld [vmem:[#allocation9 + $0xa8] sm:$0xff]
        %v1429 = vld [vmem:[#allocation9 + $0xb0] sm:$0xff]
        %v1430 = vld [vmem:[#allocation9 + $0xb8] sm:$0xff]
        %v1431 = vld [vmem:[#allocation9 + $0xc0] sm:$0xff]
        %v1432 = vld [vmem:[#allocation9 + $0xc8] sm:$0xff]
        %v1433 = vld [vmem:[#allocation9 + $0xd0] sm:$0xff]
        %v1434 = vld [vmem:[#allocation9 + $0xd8] sm:$0xff]
        %v1435 = vld [vmem:[#allocation9 + $0xe0] sm:$0xff]
        %v1436 = vld [vmem:[#allocation9 + $0xe8] sm:$0xff]
        %v1437 = vld [vmem:[#allocation9 + $0xf0] sm:$0xff]
        %v1438 = vld [vmem:[#allocation9 + $0xf8] sm:$0xff]
        %v1439 = vld [vmem:[#allocation9 + $0x100] sm:$0xff]
        %v1440 = vld [vmem:[#allocation9 + $0x108] sm:$0xff]
        %v1441 = vld [vmem:[#allocation9 + $0x110] sm:$0xff]
        %v1442 = vld [vmem:[#allocation9 + $0x118] sm:$0xff]
        %v1443 = vld [vmem:[#allocation9 + $0x120] sm:$0xff]
        %v1444 = vld [vmem:[#allocation9 + $0x128] sm:$0xff]
        %v1445 = vld [vmem:[#allocation9 + $0x130] sm:$0xff]
        %v1446 = vld [vmem:[#allocation9 + $0x138] sm:$0xff]
        %v1447 = vld [vmem:[#allocation9 + $0x140] sm:$0xff]
        %v1448 = vld [vmem:[#allocation9 + $0x148] sm:$0xff]
        %v1449 = vld [vmem:[#allocation9 + $0x150] sm:$0xff]
        %v1450 = vld [vmem:[#allocation9 + $0x158] sm:$0xff]
        %v1451 = vld [vmem:[#allocation9 + $0x160] sm:$0xff]
        %v1452 = vld [vmem:[#allocation9 + $0x168] sm:$0xff]
        %v1453 = vld [vmem:[#allocation9 + $0x170] sm:$0xff]
        %v1454 = vld [vmem:[#allocation9 + $0x178] sm:$0xff]
        %v1455 = vld [vmem:[#allocation9 + $0x180] sm:$0xff]
        %v1456 = vld [vmem:[#allocation9 + $0x188] sm:$0xff]
        %v1457 = vld [vmem:[#allocation9 + $0x190] sm:$0xff]
        %v1458 = vld [vmem:[#allocation9 + $0x198] sm:$0xff]
        %v1459 = vld [vmem:[#allocation9 + $0x1a0] sm:$0xff]
        %v1460 = vld [vmem:[#allocation9 + $0x1a8] sm:$0xff]
        %v1461 = vld [vmem:[#allocation9 + $0x1b0] sm:$0xff]
        %v1462 = vld [vmem:[#allocation9 + $0x1b8] sm:$0xff]
        %v1463 = vld [vmem:[#allocation9 + $0x1c0] sm:$0xff]
        %v1464 = vld [vmem:[#allocation9 + $0x1c8] sm:$0xff]
        %v1465 = vld [vmem:[#allocation9 + $0x1d0] sm:$0xff]
        %v1466 = vld [vmem:[#allocation9 + $0x1d8] sm:$0xff]
        %v1467 = vld [vmem:[#allocation9 + $0x1e0] sm:$0xff]
        %v1468 = vld [vmem:[#allocation9 + $0x1e8] sm:$0xff]
        %v1469 = vld [vmem:[#allocation9 + $0x1f0] sm:$0xff]
        %v1470 = vld [vmem:[#allocation9 + $0x1f8] sm:$0xff]
        %v1471 = vmul.f32 %v1057, %v1407
        %v1472 = vmul.f32 %v1059, %v1408
        %v1473 = vmul.f32 %v1061, %v1409
        %v1474 = vmul.f32 %v1063, %v1410
        %v1475 = vmul.f32 %v1067, %v1411
        %v1476 = vmul.f32 %v1069, %v1412
        %v1477 = vmul.f32 %v1071, %v1413
        %v1478 = vmul.f32 %v1073, %v1414
        %v1479 = vmul.f32 %v1077, %v1415
        %v1480 = vmul.f32 %v1079, %v1416
        %v1481 = vmul.f32 %v1081, %v1417
        %v1482 = vmul.f32 %v1083, %v1418
        %v1483 = vmul.f32 %v1087, %v1419
        %v1484 = vmul.f32 %v1089, %v1420
        %v1485 = vmul.f32 %v1091, %v1421
        %v1486 = vmul.f32 %v1093, %v1422
        %v1487 = vmul.f32 %v1097, %v1423
        %v1488 = vmul.f32 %v1099, %v1424
        %v1489 = vmul.f32 %v1101, %v1425
        %v1490 = vmul.f32 %v1103, %v1426
        %v1491 = vmul.f32 %v1107, %v1427
        %v1492 = vmul.f32 %v1109, %v1428
        %v1493 = vmul.f32 %v1111, %v1429
        %v1494 = vmul.f32 %v1113, %v1430
        %v1495 = vmul.f32 %v1117, %v1431
        %v1496 = vmul.f32 %v1119, %v1432
        %v1497 = vmul.f32 %v1121, %v1433
        %v1498 = vmul.f32 %v1123, %v1434
        %v1499 = vmul.f32 %v1127, %v1435
        %v1500 = vmul.f32 %v1129, %v1436
        %v1501 = vmul.f32 %v1131, %v1437
        %v1502 = vmul.f32 %v1133, %v1438
        %v1503 = vmul.f32 %v1137, %v1439
        %v1504 = vmul.f32 %v1139, %v1440
        %v1505 = vmul.f32 %v1141, %v1441
        %v1506 = vmul.f32 %v1143, %v1442
        %v1507 = vmul.f32 %v1147, %v1443
        %v1508 = vmul.f32 %v1149, %v1444
        %v1509 = vmul.f32 %v1151, %v1445
        %v1510 = vmul.f32 %v1153, %v1446
        %v1511 = vmul.f32 %v1157, %v1447
        %v1512 = vmul.f32 %v1159, %v1448
        %v1513 = vmul.f32 %v1161, %v1449
        %v1514 = vmul.f32 %v1163, %v1450
        %v1515 = vmul.f32 %v1167, %v1451
        %v1516 = vmul.f32 %v1169, %v1452
        %v1517 = vmul.f32 %v1171, %v1453
        %v1518 = vmul.f32 %v1173, %v1454
        %v1519 = vmul.f32 %v1177, %v1455
        %v1520 = vmul.f32 %v1179, %v1456
        %v1521 = vmul.f32 %v1181, %v1457
        %v1522 = vmul.f32 %v1183, %v1458
        %v1523 = vmul.f32 %v1187, %v1459
        %v1524 = vmul.f32 %v1189, %v1460
        %v1525 = vmul.f32 %v1191, %v1461
        %v1526 = vmul.f32 %v1193, %v1462
        %v1527 = vmul.f32 %v1197, %v1463
        %v1528 = vmul.f32 %v1199, %v1464
        %v1529 = vmul.f32 %v1201, %v1465
        %v1530 = vmul.f32 %v1203, %v1466
        %v1531 = vmul.f32 %v1207, %v1467
        %v1532 = vmul.f32 %v1209, %v1468
        %v1533 = vmul.f32 %v1211, %v1469
        %v1534 = vmul.f32 %v1213, %v1470
        %v1535 = vpack.c.bf16 %v1473, %v1471
        %v1536 = vpack.c.bf16 %v1474, %v1472
        %v1537 = vpack.c.bf16 %v1477, %v1475
        %v1538 = vpack.c.bf16 %v1478, %v1476
        %v1539 = vpack.c.bf16 %v1481, %v1479
        %v1540 = vpack.c.bf16 %v1482, %v1480
        %v1541 = vpack.c.bf16 %v1485, %v1483
        %v1542 = vpack.c.bf16 %v1486, %v1484
        %v1543 = vpack.c.bf16 %v1489, %v1487
        %v1544 = vpack.c.bf16 %v1490, %v1488
        %v1545 = vpack.c.bf16 %v1493, %v1491
        %v1546 = vpack.c.bf16 %v1494, %v1492
        %v1547 = vpack.c.bf16 %v1497, %v1495
        %v1548 = vpack.c.bf16 %v1498, %v1496
        %v1549 = vpack.c.bf16 %v1501, %v1499
        %v1550 = vpack.c.bf16 %v1502, %v1500
        %v1551 = vpack.c.bf16 %v1505, %v1503
        %v1552 = vpack.c.bf16 %v1506, %v1504
        %v1553 = vpack.c.bf16 %v1509, %v1507
        %v1554 = vpack.c.bf16 %v1510, %v1508
        %v1555 = vpack.c.bf16 %v1513, %v1511
        %v1556 = vpack.c.bf16 %v1514, %v1512
        %v1557 = vpack.c.bf16 %v1517, %v1515
        %v1558 = vpack.c.bf16 %v1518, %v1516
        %v1559 = vpack.c.bf16 %v1521, %v1519
        %v1560 = vpack.c.bf16 %v1522, %v1520
        %v1561 = vpack.c.bf16 %v1525, %v1523
        %v1562 = vpack.c.bf16 %v1526, %v1524
        %v1563 = vpack.c.bf16 %v1529, %v1527
        %v1564 = vpack.c.bf16 %v1530, %v1528
        %v1565 = vpack.c.bf16 %v1533, %v1531
        %v1566 = vpack.c.bf16 %v1534, %v1532
        %1567 = vst [vmem:[#allocation2 + $0x10] sm:$0xff] %v1535
        %1568 = vst [vmem:[#allocation2 + $0x18] sm:$0xff] %v1536
        %1569 = vst [vmem:[#allocation2 + $0x30] sm:$0xff] %v1537
        %1570 = vst [vmem:[#allocation2 + $0x38] sm:$0xff] %v1538
        %1571 = vst [vmem:[#allocation2 + $0x50] sm:$0xff] %v1539
        %1572 = vst [vmem:[#allocation2 + $0x58] sm:$0xff] %v1540
        %1573 = vst [vmem:[#allocation2 + $0x70] sm:$0xff] %v1541
        %1574 = vst [vmem:[#allocation2 + $0x78] sm:$0xff] %v1542
        %1575 = vst [vmem:[#allocation2 + $0x90] sm:$0xff] %v1543
        %1576 = vst [vmem:[#allocation2 + $0x98] sm:$0xff] %v1544
        %1577 = vst [vmem:[#allocation2 + $0xb0] sm:$0xff] %v1545
        %1578 = vst [vmem:[#allocation2 + $0xb8] sm:$0xff] %v1546
        %1579 = vst [vmem:[#allocation2 + $0xd0] sm:$0xff] %v1547
        %1580 = vst [vmem:[#allocation2 + $0xd8] sm:$0xff] %v1548
        %1581 = vst [vmem:[#allocation2 + $0xf0] sm:$0xff] %v1549
        %1582 = vst [vmem:[#allocation2 + $0xf8] sm:$0xff] %v1550
        %1583 = vst [vmem:[#allocation2 + $0x110] sm:$0xff] %v1551
        %1584 = vst [vmem:[#allocation2 + $0x118] sm:$0xff] %v1552
        %1585 = vst [vmem:[#allocation2 + $0x130] sm:$0xff] %v1553
        %1586 = vst [vmem:[#allocation2 + $0x138] sm:$0xff] %v1554
        %1587 = vst [vmem:[#allocation2 + $0x150] sm:$0xff] %v1555
        %1588 = vst [vmem:[#allocation2 + $0x158] sm:$0xff] %v1556
        %1589 = vst [vmem:[#allocation2 + $0x170] sm:$0xff] %v1557
        %1590 = vst [vmem:[#allocation2 + $0x178] sm:$0xff] %v1558
        %1591 = vst [vmem:[#allocation2 + $0x190] sm:$0xff] %v1559
        %1592 = vst [vmem:[#allocation2 + $0x198] sm:$0xff] %v1560
        %1593 = vst [vmem:[#allocation2 + $0x1b0] sm:$0xff] %v1561
        %1594 = vst [vmem:[#allocation2 + $0x1b8] sm:$0xff] %v1562
        %1595 = vst [vmem:[#allocation2 + $0x1d0] sm:$0xff] %v1563
        %1596 = vst [vmem:[#allocation2 + $0x1d8] sm:$0xff] %v1564
        %1597 = vst [vmem:[#allocation2 + $0x1f0] sm:$0xff] %v1565
        %1598 = vst [vmem:[#allocation2 + $0x1f8] sm:$0xff] %v1566
        %v1599 = vld [vmem:[#allocation2] sm:$0xff]
        %v1600 = vld [vmem:[#allocation2 + $0x8] sm:$0xff]
        %v1601 = vld [vmem:[#allocation2 + $0x10] sm:$0xff]
        %v1602 = vld [vmem:[#allocation2 + $0x18] sm:$0xff]
        %v1603 = vld [vmem:[#allocation2 + $0x20] sm:$0xff]
        %v1604 = vld [vmem:[#allocation2 + $0x28] sm:$0xff]
        %v1605 = vld [vmem:[#allocation2 + $0x30] sm:$0xff]
        %v1606 = vld [vmem:[#allocation2 + $0x38] sm:$0xff]
        %v1607 = vld [vmem:[#allocation2 + $0x40] sm:$0xff]
        %v1608 = vld [vmem:[#allocation2 + $0x48] sm:$0xff]
        %v1609 = vld [vmem:[#allocation2 + $0x50] sm:$0xff]
        %v1610 = vld [vmem:[#allocation2 + $0x58] sm:$0xff]
        %v1611 = vld [vmem:[#allocation2 + $0x60] sm:$0xff]
        %v1612 = vld [vmem:[#allocation2 + $0x68] sm:$0xff]
        %v1613 = vld [vmem:[#allocation2 + $0x70] sm:$0xff]
        %v1614 = vld [vmem:[#allocation2 + $0x78] sm:$0xff]
        %v1615 = vld [vmem:[#allocation2 + $0x80] sm:$0xff]
        %v1616 = vld [vmem:[#allocation2 + $0x88] sm:$0xff]
        %v1617 = vld [vmem:[#allocation2 + $0x90] sm:$0xff]
        %v1618 = vld [vmem:[#allocation2 + $0x98] sm:$0xff]
        %v1619 = vld [vmem:[#allocation2 + $0xa0] sm:$0xff]
        %v1620 = vld [vmem:[#allocation2 + $0xa8] sm:$0xff]
        %v1621 = vld [vmem:[#allocation2 + $0xb0] sm:$0xff]
        %v1622 = vld [vmem:[#allocation2 + $0xb8] sm:$0xff]
        %v1623 = vld [vmem:[#allocation2 + $0xc0] sm:$0xff]
        %v1624 = vld [vmem:[#allocation2 + $0xc8] sm:$0xff]
        %v1625 = vld [vmem:[#allocation2 + $0xd0] sm:$0xff]
        %v1626 = vld [vmem:[#allocation2 + $0xd8] sm:$0xff]
        %v1627 = vld [vmem:[#allocation2 + $0xe0] sm:$0xff]
        %v1628 = vld [vmem:[#allocation2 + $0xe8] sm:$0xff]
        %v1629 = vld [vmem:[#allocation2 + $0xf0] sm:$0xff]
        %v1630 = vld [vmem:[#allocation2 + $0xf8] sm:$0xff]
        %v1631 = vld [vmem:[#allocation2 + $0x100] sm:$0xff]
        %v1632 = vld [vmem:[#allocation2 + $0x108] sm:$0xff]
        %v1633 = vld [vmem:[#allocation2 + $0x110] sm:$0xff]
        %v1634 = vld [vmem:[#allocation2 + $0x118] sm:$0xff]
        %v1635 = vld [vmem:[#allocation2 + $0x120] sm:$0xff]
        %v1636 = vld [vmem:[#allocation2 + $0x128] sm:$0xff]
        %v1637 = vld [vmem:[#allocation2 + $0x130] sm:$0xff]
        %v1638 = vld [vmem:[#allocation2 + $0x138] sm:$0xff]
        %v1639 = vld [vmem:[#allocation2 + $0x140] sm:$0xff]
        %v1640 = vld [vmem:[#allocation2 + $0x148] sm:$0xff]
        %v1641 = vld [vmem:[#allocation2 + $0x150] sm:$0xff]
        %v1642 = vld [vmem:[#allocation2 + $0x158] sm:$0xff]
        %v1643 = vld [vmem:[#allocation2 + $0x160] sm:$0xff]
        %v1644 = vld [vmem:[#allocation2 + $0x168] sm:$0xff]
        %v1645 = vld [vmem:[#allocation2 + $0x170] sm:$0xff]
        %v1646 = vld [vmem:[#allocation2 + $0x178] sm:$0xff]
        %v1647 = vld [vmem:[#allocation2 + $0x180] sm:$0xff]
        %v1648 = vld [vmem:[#allocation2 + $0x188] sm:$0xff]
        %v1649 = vld [vmem:[#allocation2 + $0x190] sm:$0xff]
        %v1650 = vld [vmem:[#allocation2 + $0x198] sm:$0xff]
        %v1651 = vld [vmem:[#allocation2 + $0x1a0] sm:$0xff]
        %v1652 = vld [vmem:[#allocation2 + $0x1a8] sm:$0xff]
        %v1653 = vld [vmem:[#allocation2 + $0x1b0] sm:$0xff]
        %v1654 = vld [vmem:[#allocation2 + $0x1b8] sm:$0xff]
        %v1655 = vld [vmem:[#allocation2 + $0x1c0] sm:$0xff]
        %v1656 = vld [vmem:[#allocation2 + $0x1c8] sm:$0xff]
        %v1657 = vld [vmem:[#allocation2 + $0x1d0] sm:$0xff]
        %v1658 = vld [vmem:[#allocation2 + $0x1d8] sm:$0xff]
        %v1659 = vld [vmem:[#allocation2 + $0x1e0] sm:$0xff]
        %v1660 = vld [vmem:[#allocation2 + $0x1e8] sm:$0xff]
        %v1661 = vld [vmem:[#allocation2 + $0x1f0] sm:$0xff]
        %v1662 = vld [vmem:[#allocation2 + $0x1f8] sm:$0xff]
        %1663 = vmatprep.subr.bf16.mxu0 %v1600
        %1664 = vmatpush1.bf16.msra.mxu0 %v1599
        %1665 = vmatprep.subr.bf16.mxu0 %v1604
        %1666 = vmatpush1.bf16.msra.mxu0 %v1603
        %1667 = vmatprep.subr.bf16.mxu0 %v1608
        %1668 = vmatpush1.bf16.msra.mxu0 %v1607
        %1669 = vmatprep.subr.bf16.mxu0 %v1612
        %1670 = vmatpush1.bf16.msra.mxu0 %v1611
        %1671 = vmatprep.subr.bf16.mxu0 %v1616
        %1672 = vmatpush1.bf16.msra.mxu0 %v1615
        %1673 = vmatprep.subr.bf16.mxu0 %v1620
        %1674 = vmatpush1.bf16.msra.mxu0 %v1619
        %1675 = vmatprep.subr.bf16.mxu0 %v1624
        %1676 = vmatpush1.bf16.msra.mxu0 %v1623
        %1677 = vmatprep.subr.bf16.mxu0 %v1628
        %1678 = vmatpush1.bf16.msra.mxu0 %v1627
        %1679 = vmatprep.subr.bf16.mxu0 %v1632
        %1680 = vmatpush1.bf16.msra.mxu0 %v1631
        %1681 = vmatprep.subr.bf16.mxu0 %v1636
        %1682 = vmatpush1.bf16.msra.mxu0 %v1635
        %1683 = vmatprep.subr.bf16.mxu0 %v1640
        %1684 = vmatpush1.bf16.msra.mxu0 %v1639
        %1685 = vmatprep.subr.bf16.mxu0 %v1644
        %1686 = vmatpush1.bf16.msra.mxu0 %v1643
        %1687 = vmatprep.subr.bf16.mxu0 %v1648
        %1688 = vmatpush1.bf16.msra.mxu0 %v1647
        %1689 = vmatprep.subr.bf16.mxu0 %v1652
        %1690 = vmatpush1.bf16.msra.mxu0 %v1651
        %1691 = vmatprep.subr.bf16.mxu0 %v1656
        %1692 = vmatpush1.bf16.msra.mxu0 %v1655
        %1693 = vmatprep.subr.bf16.mxu0 %v1660
        %1694 = vmatpush1.bf16.msra.mxu0 %v1659
        %1695 = vmatprep.mubr.bf16.mxu0 %v574
        %1696 = vmatmul.mubr.bf16.gmra.mrb[0].mxu0 %v573
        %v1697 = vpop.f32.mrb[0].mxu0
        %v1698 = vadd.f32 0.0, %v1697
        %v1699 = vpop.f32.mrb[0].mxu0
        %v1700 = vadd.f32 0.0, %v1699
        %v1701 = vpop.f32.mrb[0].mxu0
        %v1702 = vadd.f32 0.0, %v1701
        %v1703 = vpop.f32.mrb[0].mxu0
        %v1704 = vadd.f32 0.0, %v1703
        %1705 = vmatprep.mubr.bf16.mxu0 %v576
        %1706 = vmatmul.mubr.bf16.gmra.mrb[0].mxu0 %v575
        %v1707 = vpop.f32.mrb[0].mxu0
        %v1708 = vadd.f32 0.0, %v1707
        %v1709 = vpop.f32.mrb[0].mxu0
        %v1710 = vadd.f32 0.0, %v1709
        %v1711 = vpop.f32.mrb[0].mxu0
        %v1712 = vadd.f32 0.0, %v1711
        %v1713 = vpop.f32.mrb[0].mxu0
        %v1714 = vadd.f32 0.0, %v1713
        %1715 = vmatprep.mubr.bf16.mxu0 %v578
        %1716 = vmatmul.mubr.bf16.gmra.mrb[0].mxu0 %v577
        %v1717 = vpop.f32.mrb[0].mxu0
        %v1718 = vadd.f32 0.0, %v1717
        %v1719 = vpop.f32.mrb[0].mxu0
        %v1720 = vadd.f32 0.0, %v1719
        %v1721 = vpop.f32.mrb[0].mxu0
        %v1722 = vadd.f32 0.0, %v1721
        %v1723 = vpop.f32.mrb[0].mxu0
        %v1724 = vadd.f32 0.0, %v1723
        %1725 = vmatprep.mubr.bf16.mxu0 %v580
        %1726 = vmatmul.mubr.bf16.gmra.mrb[0].mxu0 %v579
        %v1727 = vpop.f32.mrb[0].mxu0
        %v1728 = vadd.f32 0.0, %v1727
        %v1729 = vpop.f32.mrb[0].mxu0
        %v1730 = vadd.f32 0.0, %v1729
        %v1731 = vpop.f32.mrb[0].mxu0
        %v1732 = vadd.f32 0.0, %v1731
        %v1733 = vpop.f32.mrb[0].mxu0
        %v1734 = vadd.f32 0.0, %v1733
        %1735 = vmatprep.mubr.bf16.mxu0 %v582
        %1736 = vmatmul.mubr.bf16.gmra.mrb[0].mxu0 %v581
        %v1737 = vpop.f32.mrb[0].mxu0
        %v1738 = vadd.f32 0.0, %v1737
        %v1739 = vpop.f32.mrb[0].mxu0
        %v1740 = vadd.f32 0.0, %v1739
        %v1741 = vpop.f32.mrb[0].mxu0
        %v1742 = vadd.f32 0.0, %v1741
        %v1743 = vpop.f32.mrb[0].mxu0
        %v1744 = vadd.f32 0.0, %v1743
        %1745 = vmatprep.mubr.bf16.mxu0 %v584
        %1746 = vmatmul.mubr.bf16.gmra.mrb[0].mxu0 %v583
        %v1747 = vpop.f32.mrb[0].mxu0
        %v1748 = vadd.f32 0.0, %v1747
        %v1749 = vpop.f32.mrb[0].mxu0
        %v1750 = vadd.f32 0.0, %v1749
        %v1751 = vpop.f32.mrb[0].mxu0
        %v1752 = vadd.f32 0.0, %v1751
        %v1753 = vpop.f32.mrb[0].mxu0
        %v1754 = vadd.f32 0.0, %v1753
        %1755 = vmatprep.mubr.bf16.mxu0 %v586
        %1756 = vmatmul.mubr.bf16.gmra.mrb[0].mxu0 %v585
        %v1757 = vpop.f32.mrb[0].mxu0
        %v1758 = vadd.f32 0.0, %v1757
        %v1759 = vpop.f32.mrb[0].mxu0
        %v1760 = vadd.f32 0.0, %v1759
        %v1761 = vpop.f32.mrb[0].mxu0
        %v1762 = vadd.f32 0.0, %v1761
        %v1763 = vpop.f32.mrb[0].mxu0
        %v1764 = vadd.f32 0.0, %v1763
        %1765 = vmatprep.mubr.bf16.mxu0 %v588
        %1766 = vmatmul.mubr.bf16.gmra.mrb[0].mxu0 %v587
        %v1767 = vpop.f32.mrb[0].mxu0
        %v1768 = vadd.f32 0.0, %v1767
        %v1769 = vpop.f32.mrb[0].mxu0
        %v1770 = vadd.f32 0.0, %v1769
        %v1771 = vpop.f32.mrb[0].mxu0
        %v1772 = vadd.f32 0.0, %v1771
        %v1773 = vpop.f32.mrb[0].mxu0
        %v1774 = vadd.f32 0.0, %v1773
        %1775 = vmatprep.mubr.bf16.mxu0 %v590
        %1776 = vmatmul.mubr.bf16.gmra.mrb[0].mxu0 %v589
        %v1777 = vpop.f32.mrb[0].mxu0
        %v1778 = vadd.f32 0.0, %v1777
        %v1779 = vpop.f32.mrb[0].mxu0
        %v1780 = vadd.f32 0.0, %v1779
        %v1781 = vpop.f32.mrb[0].mxu0
        %v1782 = vadd.f32 0.0, %v1781
        %v1783 = vpop.f32.mrb[0].mxu0
        %v1784 = vadd.f32 0.0, %v1783
        %1785 = vmatprep.mubr.bf16.mxu0 %v592
        %1786 = vmatmul.mubr.bf16.gmra.mrb[0].mxu0 %v591
        %v1787 = vpop.f32.mrb[0].mxu0
        %v1788 = vadd.f32 0.0, %v1787
        %v1789 = vpop.f32.mrb[0].mxu0
        %v1790 = vadd.f32 0.0, %v1789
        %v1791 = vpop.f32.mrb[0].mxu0
        %v1792 = vadd.f32 0.0, %v1791
        %v1793 = vpop.f32.mrb[0].mxu0
        %v1794 = vadd.f32 0.0, %v1793
        %1795 = vmatprep.mubr.bf16.mxu0 %v594
        %1796 = vmatmul.mubr.bf16.gmra.mrb[0].mxu0 %v593
        %v1797 = vpop.f32.mrb[0].mxu0
        %v1798 = vadd.f32 0.0, %v1797
        %v1799 = vpop.f32.mrb[0].mxu0
        %v1800 = vadd.f32 0.0, %v1799
        %v1801 = vpop.f32.mrb[0].mxu0
        %v1802 = vadd.f32 0.0, %v1801
        %v1803 = vpop.f32.mrb[0].mxu0
        %v1804 = vadd.f32 0.0, %v1803
        %1805 = vmatprep.mubr.bf16.mxu0 %v596
        %1806 = vmatmul.mubr.bf16.gmra.mrb[0].mxu0 %v595
        %v1807 = vpop.f32.mrb[0].mxu0
        %v1808 = vadd.f32 0.0, %v1807
        %v1809 = vpop.f32.mrb[0].mxu0
        %v1810 = vadd.f32 0.0, %v1809
        %v1811 = vpop.f32.mrb[0].mxu0
        %v1812 = vadd.f32 0.0, %v1811
        %v1813 = vpop.f32.mrb[0].mxu0
        %v1814 = vadd.f32 0.0, %v1813
        %1815 = vmatprep.mubr.bf16.mxu0 %v598
        %1816 = vmatmul.mubr.bf16.gmra.mrb[0].mxu0 %v597
        %v1817 = vpop.f32.mrb[0].mxu0
        %v1818 = vadd.f32 0.0, %v1817
        %v1819 = vpop.f32.mrb[0].mxu0
        %v1820 = vadd.f32 0.0, %v1819
        %v1821 = vpop.f32.mrb[0].mxu0
        %v1822 = vadd.f32 0.0, %v1821
        %v1823 = vpop.f32.mrb[0].mxu0
        %v1824 = vadd.f32 0.0, %v1823
        %1825 = vmatprep.mubr.bf16.mxu0 %v600
        %1826 = vmatmul.mubr.bf16.gmra.mrb[0].mxu0 %v599
        %v1827 = vpop.f32.mrb[0].mxu0
        %v1828 = vadd.f32 0.0, %v1827
        %v1829 = vpop.f32.mrb[0].mxu0
        %v1830 = vadd.f32 0.0, %v1829
        %v1831 = vpop.f32.mrb[0].mxu0
        %v1832 = vadd.f32 0.0, %v1831
        %v1833 = vpop.f32.mrb[0].mxu0
        %v1834 = vadd.f32 0.0, %v1833
        %1835 = vmatprep.mubr.bf16.mxu0 %v602
        %1836 = vmatmul.mubr.bf16.gmra.mrb[0].mxu0 %v601
        %v1837 = vpop.f32.mrb[0].mxu0
        %v1838 = vadd.f32 0.0, %v1837
        %v1839 = vpop.f32.mrb[0].mxu0
        %v1840 = vadd.f32 0.0, %v1839
        %v1841 = vpop.f32.mrb[0].mxu0
        %v1842 = vadd.f32 0.0, %v1841
        %v1843 = vpop.f32.mrb[0].mxu0
        %v1844 = vadd.f32 0.0, %v1843
        %1845 = vmatprep.mubr.bf16.mxu0 %v604
        %1846 = vmatmul.mubr.bf16.gmra.mrb[0].mxu0 %v603
        %v1847 = vpop.f32.mrb[0].mxu0
        %v1848 = vadd.f32 0.0, %v1847
        %v1849 = vpop.f32.mrb[0].mxu0
        %v1850 = vadd.f32 0.0, %v1849
        %v1851 = vpop.f32.mrb[0].mxu0
        %v1852 = vadd.f32 0.0, %v1851
        %v1853 = vpop.f32.mrb[0].mxu0
        %v1854 = vadd.f32 0.0, %v1853
        %1855 = vdwg.mxu0
        %1856 = vmatprep.subr.bf16.mxu0 %v1602
        %1857 = vmatpush1.bf16.msra.mxu0 %v1601
        %1858 = vmatprep.subr.bf16.mxu0 %v1606
        %1859 = vmatpush1.bf16.msra.mxu0 %v1605
        %1860 = vmatprep.subr.bf16.mxu0 %v1610
        %1861 = vmatpush1.bf16.msra.mxu0 %v1609
        %1862 = vmatprep.subr.bf16.mxu0 %v1614
        %1863 = vmatpush1.bf16.msra.mxu0 %v1613
        %1864 = vmatprep.subr.bf16.mxu0 %v1618
        %1865 = vmatpush1.bf16.msra.mxu0 %v1617
        %1866 = vmatprep.subr.bf16.mxu0 %v1622
        %1867 = vmatpush1.bf16.msra.mxu0 %v1621
        %1868 = vmatprep.subr.bf16.mxu0 %v1626
        %1869 = vmatpush1.bf16.msra.mxu0 %v1625
        %1870 = vmatprep.subr.bf16.mxu0 %v1630
        %1871 = vmatpush1.bf16.msra.mxu0 %v1629
        %1872 = vmatprep.subr.bf16.mxu0 %v1634
        %1873 = vmatpush1.bf16.msra.mxu0 %v1633
        %1874 = vmatprep.subr.bf16.mxu0 %v1638
        %1875 = vmatpush1.bf16.msra.mxu0 %v1637
        %1876 = vmatprep.subr.bf16.mxu0 %v1642
        %1877 = vmatpush1.bf16.msra.mxu0 %v1641
        %1878 = vmatprep.subr.bf16.mxu0 %v1646
        %1879 = vmatpush1.bf16.msra.mxu0 %v1645
        %1880 = vmatprep.subr.bf16.mxu0 %v1650
        %1881 = vmatpush1.bf16.msra.mxu0 %v1649
        %1882 = vmatprep.subr.bf16.mxu0 %v1654
        %1883 = vmatpush1.bf16.msra.mxu0 %v1653
        %1884 = vmatprep.subr.bf16.mxu0 %v1658
        %1885 = vmatpush1.bf16.msra.mxu0 %v1657
        %1886 = vmatprep.subr.bf16.mxu0 %v1662
        %1887 = vmatpush1.bf16.msra.mxu0 %v1661
        %1888 = vmatprep.mubr.bf16.mxu0 %v574
        %1889 = vmatmul.mubr.bf16.gmra.mrb[0].mxu0 %v573
        %v1890 = vpop.f32.mrb[0].mxu0
        %v1891 = vadd.f32 0.0, %v1890
        %v1892 = vpop.f32.mrb[0].mxu0
        %v1893 = vadd.f32 0.0, %v1892
        %v1894 = vpop.f32.mrb[0].mxu0
        %v1895 = vadd.f32 0.0, %v1894
        %v1896 = vpop.f32.mrb[0].mxu0
        %v1897 = vadd.f32 0.0, %v1896
        %1898 = vmatprep.mubr.bf16.mxu0 %v576
        %1899 = vmatmul.mubr.bf16.gmra.mrb[0].mxu0 %v575
        %v1900 = vpop.f32.mrb[0].mxu0
        %v1901 = vadd.f32 0.0, %v1900
        %v1902 = vpop.f32.mrb[0].mxu0
        %v1903 = vadd.f32 0.0, %v1902
        %v1904 = vpop.f32.mrb[0].mxu0
        %v1905 = vadd.f32 0.0, %v1904
        %v1906 = vpop.f32.mrb[0].mxu0
        %v1907 = vadd.f32 0.0, %v1906
        %1908 = vmatprep.mubr.bf16.mxu0 %v578
        %1909 = vmatmul.mubr.bf16.gmra.mrb[0].mxu0 %v577
        %v1910 = vpop.f32.mrb[0].mxu0
        %v1911 = vadd.f32 0.0, %v1910
        %v1912 = vpop.f32.mrb[0].mxu0
        %v1913 = vadd.f32 0.0, %v1912
        %v1914 = vpop.f32.mrb[0].mxu0
        %v1915 = vadd.f32 0.0, %v1914
        %v1916 = vpop.f32.mrb[0].mxu0
        %v1917 = vadd.f32 0.0, %v1916
        %1918 = vmatprep.mubr.bf16.mxu0 %v580
        %1919 = vmatmul.mubr.bf16.gmra.mrb[0].mxu0 %v579
        %v1920 = vpop.f32.mrb[0].mxu0
        %v1921 = vadd.f32 0.0, %v1920
        %v1922 = vpop.f32.mrb[0].mxu0
        %v1923 = vadd.f32 0.0, %v1922
        %v1924 = vpop.f32.mrb[0].mxu0
        %v1925 = vadd.f32 0.0, %v1924
        %v1926 = vpop.f32.mrb[0].mxu0
        %v1927 = vadd.f32 0.0, %v1926
        %1928 = vmatprep.mubr.bf16.mxu0 %v582
        %1929 = vmatmul.mubr.bf16.gmra.mrb[0].mxu0 %v581
        %v1930 = vpop.f32.mrb[0].mxu0
        %v1931 = vadd.f32 0.0, %v1930
        %v1932 = vpop.f32.mrb[0].mxu0
        %v1933 = vadd.f32 0.0, %v1932
        %v1934 = vpop.f32.mrb[0].mxu0
        %v1935 = vadd.f32 0.0, %v1934
        %v1936 = vpop.f32.mrb[0].mxu0
        %v1937 = vadd.f32 0.0, %v1936
        %1938 = vmatprep.mubr.bf16.mxu0 %v584
        %1939 = vmatmul.mubr.bf16.gmra.mrb[0].mxu0 %v583
        %v1940 = vpop.f32.mrb[0].mxu0
        %v1941 = vadd.f32 0.0, %v1940
        %v1942 = vpop.f32.mrb[0].mxu0
        %v1943 = vadd.f32 0.0, %v1942
        %v1944 = vpop.f32.mrb[0].mxu0
        %v1945 = vadd.f32 0.0, %v1944
        %v1946 = vpop.f32.mrb[0].mxu0
        %v1947 = vadd.f32 0.0, %v1946
        %1948 = vmatprep.mubr.bf16.mxu0 %v586
        %1949 = vmatmul.mubr.bf16.gmra.mrb[0].mxu0 %v585
        %v1950 = vpop.f32.mrb[0].mxu0
        %v1951 = vadd.f32 0.0, %v1950
        %v1952 = vpop.f32.mrb[0].mxu0
        %v1953 = vadd.f32 0.0, %v1952
        %v1954 = vpop.f32.mrb[0].mxu0
        %v1955 = vadd.f32 0.0, %v1954
        %v1956 = vpop.f32.mrb[0].mxu0
        %v1957 = vadd.f32 0.0, %v1956
        %1958 = vmatprep.mubr.bf16.mxu0 %v588
        %1959 = vmatmul.mubr.bf16.gmra.mrb[0].mxu0 %v587
        %v1960 = vpop.f32.mrb[0].mxu0
        %v1961 = vadd.f32 0.0, %v1960
        %v1962 = vpop.f32.mrb[0].mxu0
        %v1963 = vadd.f32 0.0, %v1962
        %v1964 = vpop.f32.mrb[0].mxu0
        %v1965 = vadd.f32 0.0, %v1964
        %v1966 = vpop.f32.mrb[0].mxu0
        %v1967 = vadd.f32 0.0, %v1966
        %1968 = vmatprep.mubr.bf16.mxu0 %v590
        %1969 = vmatmul.mubr.bf16.gmra.mrb[0].mxu0 %v589
        %v1970 = vpop.f32.mrb[0].mxu0
        %v1971 = vadd.f32 0.0, %v1970
        %v1972 = vpop.f32.mrb[0].mxu0
        %v1973 = vadd.f32 0.0, %v1972
        %v1974 = vpop.f32.mrb[0].mxu0
        %v1975 = vadd.f32 0.0, %v1974
        %v1976 = vpop.f32.mrb[0].mxu0
        %v1977 = vadd.f32 0.0, %v1976
        %1978 = vmatprep.mubr.bf16.mxu0 %v592
        %1979 = vmatmul.mubr.bf16.gmra.mrb[0].mxu0 %v591
        %v1980 = vpop.f32.mrb[0].mxu0
        %v1981 = vadd.f32 0.0, %v1980
        %v1982 = vpop.f32.mrb[0].mxu0
        %v1983 = vadd.f32 0.0, %v1982
        %v1984 = vpop.f32.mrb[0].mxu0
        %v1985 = vadd.f32 0.0, %v1984
        %v1986 = vpop.f32.mrb[0].mxu0
        %v1987 = vadd.f32 0.0, %v1986
        %1988 = vmatprep.mubr.bf16.mxu0 %v594
        %1989 = vmatmul.mubr.bf16.gmra.mrb[0].mxu0 %v593
        %v1990 = vpop.f32.mrb[0].mxu0
        %v1991 = vadd.f32 0.0, %v1990
        %v1992 = vpop.f32.mrb[0].mxu0
        %v1993 = vadd.f32 0.0, %v1992
        %v1994 = vpop.f32.mrb[0].mxu0
        %v1995 = vadd.f32 0.0, %v1994
        %v1996 = vpop.f32.mrb[0].mxu0
        %v1997 = vadd.f32 0.0, %v1996
        %1998 = vmatprep.mubr.bf16.mxu0 %v596
        %1999 = vmatmul.mubr.bf16.gmra.mrb[0].mxu0 %v595
        %v2000 = vpop.f32.mrb[0].mxu0
        %v2001 = vadd.f32 0.0, %v2000
        %v2002 = vpop.f32.mrb[0].mxu0
        %v2003 = vadd.f32 0.0, %v2002
        %v2004 = vpop.f32.mrb[0].mxu0
        %v2005 = vadd.f32 0.0, %v2004
        %v2006 = vpop.f32.mrb[0].mxu0
        %v2007 = vadd.f32 0.0, %v2006
        %2008 = vmatprep.mubr.bf16.mxu0 %v598
        %2009 = vmatmul.mubr.bf16.gmra.mrb[0].mxu0 %v597
        %v2010 = vpop.f32.mrb[0].mxu0
        %v2011 = vadd.f32 0.0, %v2010
        %v2012 = vpop.f32.mrb[0].mxu0
        %v2013 = vadd.f32 0.0, %v2012
        %v2014 = vpop.f32.mrb[0].mxu0
        %v2015 = vadd.f32 0.0, %v2014
        %v2016 = vpop.f32.mrb[0].mxu0
        %v2017 = vadd.f32 0.0, %v2016
        %2018 = vmatprep.mubr.bf16.mxu0 %v600
        %2019 = vmatmul.mubr.bf16.gmra.mrb[0].mxu0 %v599
        %v2020 = vpop.f32.mrb[0].mxu0
        %v2021 = vadd.f32 0.0, %v2020
        %v2022 = vpop.f32.mrb[0].mxu0
        %v2023 = vadd.f32 0.0, %v2022
        %v2024 = vpop.f32.mrb[0].mxu0
        %v2025 = vadd.f32 0.0, %v2024
        %v2026 = vpop.f32.mrb[0].mxu0
        %v2027 = vadd.f32 0.0, %v2026
        %2028 = vmatprep.mubr.bf16.mxu0 %v602
        %2029 = vmatmul.mubr.bf16.gmra.mrb[0].mxu0 %v601
        %v2030 = vpop.f32.mrb[0].mxu0
        %v2031 = vadd.f32 0.0, %v2030
        %v2032 = vpop.f32.mrb[0].mxu0
        %v2033 = vadd.f32 0.0, %v2032
        %v2034 = vpop.f32.mrb[0].mxu0
        %v2035 = vadd.f32 0.0, %v2034
        %v2036 = vpop.f32.mrb[0].mxu0
        %v2037 = vadd.f32 0.0, %v2036
        %2038 = vmatprep.mubr.bf16.mxu0 %v604
        %2039 = vmatmul.mubr.bf16.gmra.mrb[0].mxu0 %v603
        %v2040 = vpop.f32.mrb[0].mxu0
        %v2041 = vadd.f32 0.0, %v2040
        %v2042 = vpop.f32.mrb[0].mxu0
        %v2043 = vadd.f32 0.0, %v2042
        %v2044 = vpop.f32.mrb[0].mxu0
        %v2045 = vadd.f32 0.0, %v2044
        %v2046 = vpop.f32.mrb[0].mxu0
        %v2047 = vadd.f32 0.0, %v2046
        %2048 = vdwg.mxu0
        %v2049 = vpack.c.bf16 %v1702, %v1698
        %v2050 = vpack.c.bf16 %v1704, %v1700
        %v2051 = vpack.c.bf16 %v1712, %v1708
        %v2052 = vpack.c.bf16 %v1714, %v1710
        %v2053 = vpack.c.bf16 %v1722, %v1718
        %v2054 = vpack.c.bf16 %v1724, %v1720
        %v2055 = vpack.c.bf16 %v1732, %v1728
        %v2056 = vpack.c.bf16 %v1734, %v1730
        %v2057 = vpack.c.bf16 %v1742, %v1738
        %v2058 = vpack.c.bf16 %v1744, %v1740
        %v2059 = vpack.c.bf16 %v1752, %v1748
        %v2060 = vpack.c.bf16 %v1754, %v1750
        %v2061 = vpack.c.bf16 %v1762, %v1758
        %v2062 = vpack.c.bf16 %v1764, %v1760
        %v2063 = vpack.c.bf16 %v1772, %v1768
        %v2064 = vpack.c.bf16 %v1774, %v1770
        %v2065 = vpack.c.bf16 %v1782, %v1778
        %v2066 = vpack.c.bf16 %v1784, %v1780
        %v2067 = vpack.c.bf16 %v1792, %v1788
        %v2068 = vpack.c.bf16 %v1794, %v1790
        %v2069 = vpack.c.bf16 %v1802, %v1798
        %v2070 = vpack.c.bf16 %v1804, %v1800
        %v2071 = vpack.c.bf16 %v1812, %v1808
        %v2072 = vpack.c.bf16 %v1814, %v1810
        %v2073 = vpack.c.bf16 %v1822, %v1818
        %v2074 = vpack.c.bf16 %v1824, %v1820
        %v2075 = vpack.c.bf16 %v1832, %v1828
        %v2076 = vpack.c.bf16 %v1834, %v1830
        %v2077 = vpack.c.bf16 %v1842, %v1838
        %v2078 = vpack.c.bf16 %v1844, %v1840
        %v2079 = vpack.c.bf16 %v1852, %v1848
        %v2080 = vpack.c.bf16 %v1854, %v1850
        %2081 = vmatprep.subr.bf16.mxu0 %v959
        %2082 = vmatpush1.bf16.msra.mxu0 %v958
        %2083 = vmatprep.subr.bf16.mxu0 %v961
        %2084 = vmatpush1.bf16.msra.mxu0 %v960
        %2085 = vmatprep.subr.bf16.mxu0 %v963
        %2086 = vmatpush1.bf16.msra.mxu0 %v962
        %2087 = vmatprep.subr.bf16.mxu0 %v965
        %2088 = vmatpush1.bf16.msra.mxu0 %v964
        %2089 = vmatprep.subr.bf16.mxu0 %v967
        %2090 = vmatpush1.bf16.msra.mxu0 %v966
        %2091 = vmatprep.subr.bf16.mxu0 %v969
        %2092 = vmatpush1.bf16.msra.mxu0 %v968
        %2093 = vmatprep.subr.bf16.mxu0 %v971
        %2094 = vmatpush1.bf16.msra.mxu0 %v970
        %2095 = vmatprep.subr.bf16.mxu0 %v973
        %2096 = vmatpush1.bf16.msra.mxu0 %v972
        %2097 = vmatprep.subr.bf16.mxu0 %v975
        %2098 = vmatpush1.bf16.msra.mxu0 %v974
        %2099 = vmatprep.subr.bf16.mxu0 %v977
        %2100 = vmatpush1.bf16.msra.mxu0 %v976
        %2101 = vmatprep.subr.bf16.mxu0 %v979
        %2102 = vmatpush1.bf16.msra.mxu0 %v978
        %2103 = vmatprep.subr.bf16.mxu0 %v981
        %2104 = vmatpush1.bf16.msra.mxu0 %v980
        %2105 = vmatprep.subr.bf16.mxu0 %v983
        %2106 = vmatpush1.bf16.msra.mxu0 %v982
        %2107 = vmatprep.subr.bf16.mxu0 %v985
        %2108 = vmatpush1.bf16.msra.mxu0 %v984
        %2109 = vmatprep.subr.bf16.mxu0 %v987
        %2110 = vmatpush1.bf16.msra.mxu0 %v986
        %2111 = vmatprep.subr.bf16.mxu0 %v989
        %2112 = vmatpush1.bf16.msra.mxu0 %v988
        %2113 = vmatprep.mubr.bf16.mxu0 %v2050
        %2114 = vmatmul.mubr.bf16.gmra.mrb[0].mxu0 %v2049
        %v2115 = vpop.f32.mrb[0].mxu0
        %v2116 = vadd.f32 0.0, %v2115
        %v2117 = vpop.f32.mrb[0].mxu0
        %v2118 = vadd.f32 0.0, %v2117
        %v2119 = vpop.f32.mrb[0].mxu0
        %v2120 = vadd.f32 0.0, %v2119
        %v2121 = vpop.f32.mrb[0].mxu0
        %v2122 = vadd.f32 0.0, %v2121
        %2123 = vmatprep.mubr.bf16.mxu0 %v2052
        %2124 = vmatmul.mubr.bf16.gmra.mrb[0].mxu0 %v2051
        %v2125 = vpop.f32.mrb[0].mxu0
        %v2126 = vadd.f32 0.0, %v2125
        %v2127 = vpop.f32.mrb[0].mxu0
        %v2128 = vadd.f32 0.0, %v2127
        %v2129 = vpop.f32.mrb[0].mxu0
        %v2130 = vadd.f32 0.0, %v2129
        %v2131 = vpop.f32.mrb[0].mxu0
        %v2132 = vadd.f32 0.0, %v2131
        %2133 = vmatprep.mubr.bf16.mxu0 %v2054
        %2134 = vmatmul.mubr.bf16.gmra.mrb[0].mxu0 %v2053
        %v2135 = vpop.f32.mrb[0].mxu0
        %v2136 = vadd.f32 0.0, %v2135
        %v2137 = vpop.f32.mrb[0].mxu0
        %v2138 = vadd.f32 0.0, %v2137
        %v2139 = vpop.f32.mrb[0].mxu0
        %v2140 = vadd.f32 0.0, %v2139
        %v2141 = vpop.f32.mrb[0].mxu0
        %v2142 = vadd.f32 0.0, %v2141
        %2143 = vmatprep.mubr.bf16.mxu0 %v2056
        %2144 = vmatmul.mubr.bf16.gmra.mrb[0].mxu0 %v2055
        %v2145 = vpop.f32.mrb[0].mxu0
        %v2146 = vadd.f32 0.0, %v2145
        %v2147 = vpop.f32.mrb[0].mxu0
        %v2148 = vadd.f32 0.0, %v2147
        %v2149 = vpop.f32.mrb[0].mxu0
        %v2150 = vadd.f32 0.0, %v2149
        %v2151 = vpop.f32.mrb[0].mxu0
        %v2152 = vadd.f32 0.0, %v2151
        %2153 = vmatprep.mubr.bf16.mxu0 %v2058
        %2154 = vmatmul.mubr.bf16.gmra.mrb[0].mxu0 %v2057
        %v2155 = vpop.f32.mrb[0].mxu0
        %v2156 = vadd.f32 0.0, %v2155
        %v2157 = vpop.f32.mrb[0].mxu0
        %v2158 = vadd.f32 0.0, %v2157
        %v2159 = vpop.f32.mrb[0].mxu0
        %v2160 = vadd.f32 0.0, %v2159
        %v2161 = vpop.f32.mrb[0].mxu0
        %v2162 = vadd.f32 0.0, %v2161
        %2163 = vmatprep.mubr.bf16.mxu0 %v2060
        %2164 = vmatmul.mubr.bf16.gmra.mrb[0].mxu0 %v2059
        %v2165 = vpop.f32.mrb[0].mxu0
        %v2166 = vadd.f32 0.0, %v2165
        %v2167 = vpop.f32.mrb[0].mxu0
        %v2168 = vadd.f32 0.0, %v2167
        %v2169 = vpop.f32.mrb[0].mxu0
        %v2170 = vadd.f32 0.0, %v2169
        %v2171 = vpop.f32.mrb[0].mxu0
        %v2172 = vadd.f32 0.0, %v2171
        %2173 = vmatprep.mubr.bf16.mxu0 %v2062
        %2174 = vmatmul.mubr.bf16.gmra.mrb[0].mxu0 %v2061
        %v2175 = vpop.f32.mrb[0].mxu0
        %v2176 = vadd.f32 0.0, %v2175
        %v2177 = vpop.f32.mrb[0].mxu0
        %v2178 = vadd.f32 0.0, %v2177
        %v2179 = vpop.f32.mrb[0].mxu0
        %v2180 = vadd.f32 0.0, %v2179
        %v2181 = vpop.f32.mrb[0].mxu0
        %v2182 = vadd.f32 0.0, %v2181
        %2183 = vmatprep.mubr.bf16.mxu0 %v2064
        %2184 = vmatmul.mubr.bf16.gmra.mrb[0].mxu0 %v2063
        %v2185 = vpop.f32.mrb[0].mxu0
        %v2186 = vadd.f32 0.0, %v2185
        %v2187 = vpop.f32.mrb[0].mxu0
        %v2188 = vadd.f32 0.0, %v2187
        %v2189 = vpop.f32.mrb[0].mxu0
        %v2190 = vadd.f32 0.0, %v2189
        %v2191 = vpop.f32.mrb[0].mxu0
        %v2192 = vadd.f32 0.0, %v2191
        %2193 = vmatprep.mubr.bf16.mxu0 %v2066
        %2194 = vmatmul.mubr.bf16.gmra.mrb[0].mxu0 %v2065
        %v2195 = vpop.f32.mrb[0].mxu0
        %v2196 = vadd.f32 0.0, %v2195
        %v2197 = vpop.f32.mrb[0].mxu0
        %v2198 = vadd.f32 0.0, %v2197
        %v2199 = vpop.f32.mrb[0].mxu0
        %v2200 = vadd.f32 0.0, %v2199
        %v2201 = vpop.f32.mrb[0].mxu0
        %v2202 = vadd.f32 0.0, %v2201
        %2203 = vmatprep.mubr.bf16.mxu0 %v2068
        %2204 = vmatmul.mubr.bf16.gmra.mrb[0].mxu0 %v2067
        %v2205 = vpop.f32.mrb[0].mxu0
        %v2206 = vadd.f32 0.0, %v2205
        %v2207 = vpop.f32.mrb[0].mxu0
        %v2208 = vadd.f32 0.0, %v2207
        %v2209 = vpop.f32.mrb[0].mxu0
        %v2210 = vadd.f32 0.0, %v2209
        %v2211 = vpop.f32.mrb[0].mxu0
        %v2212 = vadd.f32 0.0, %v2211
        %2213 = vmatprep.mubr.bf16.mxu0 %v2070
        %2214 = vmatmul.mubr.bf16.gmra.mrb[0].mxu0 %v2069
        %v2215 = vpop.f32.mrb[0].mxu0
        %v2216 = vadd.f32 0.0, %v2215
        %v2217 = vpop.f32.mrb[0].mxu0
        %v2218 = vadd.f32 0.0, %v2217
        %v2219 = vpop.f32.mrb[0].mxu0
        %v2220 = vadd.f32 0.0, %v2219
        %v2221 = vpop.f32.mrb[0].mxu0
        %v2222 = vadd.f32 0.0, %v2221
        %2223 = vmatprep.mubr.bf16.mxu0 %v2072
        %2224 = vmatmul.mubr.bf16.gmra.mrb[0].mxu0 %v2071
        %v2225 = vpop.f32.mrb[0].mxu0
        %v2226 = vadd.f32 0.0, %v2225
        %v2227 = vpop.f32.mrb[0].mxu0
        %v2228 = vadd.f32 0.0, %v2227
        %v2229 = vpop.f32.mrb[0].mxu0
        %v2230 = vadd.f32 0.0, %v2229
        %v2231 = vpop.f32.mrb[0].mxu0
        %v2232 = vadd.f32 0.0, %v2231
        %2233 = vmatprep.mubr.bf16.mxu0 %v2074
        %2234 = vmatmul.mubr.bf16.gmra.mrb[0].mxu0 %v2073
        %v2235 = vpop.f32.mrb[0].mxu0
        %v2236 = vadd.f32 0.0, %v2235
        %v2237 = vpop.f32.mrb[0].mxu0
        %v2238 = vadd.f32 0.0, %v2237
        %v2239 = vpop.f32.mrb[0].mxu0
        %v2240 = vadd.f32 0.0, %v2239
        %v2241 = vpop.f32.mrb[0].mxu0
        %v2242 = vadd.f32 0.0, %v2241
        %2243 = vmatprep.mubr.bf16.mxu0 %v2076
        %2244 = vmatmul.mubr.bf16.gmra.mrb[0].mxu0 %v2075
        %v2245 = vpop.f32.mrb[0].mxu0
        %v2246 = vadd.f32 0.0, %v2245
        %v2247 = vpop.f32.mrb[0].mxu0
        %v2248 = vadd.f32 0.0, %v2247
        %v2249 = vpop.f32.mrb[0].mxu0
        %v2250 = vadd.f32 0.0, %v2249
        %v2251 = vpop.f32.mrb[0].mxu0
        %v2252 = vadd.f32 0.0, %v2251
        %2253 = vmatprep.mubr.bf16.mxu0 %v2078
        %2254 = vmatmul.mubr.bf16.gmra.mrb[0].mxu0 %v2077
        %v2255 = vpop.f32.mrb[0].mxu0
        %v2256 = vadd.f32 0.0, %v2255
        %v2257 = vpop.f32.mrb[0].mxu0
        %v2258 = vadd.f32 0.0, %v2257
        %v2259 = vpop.f32.mrb[0].mxu0
        %v2260 = vadd.f32 0.0, %v2259
        %v2261 = vpop.f32.mrb[0].mxu0
        %v2262 = vadd.f32 0.0, %v2261
        %2263 = vmatprep.mubr.bf16.mxu0 %v2080
        %2264 = vmatmul.mubr.bf16.gmra.mrb[0].mxu0 %v2079
        %v2265 = vpop.f32.mrb[0].mxu0
        %v2266 = vadd.f32 0.0, %v2265
        %v2267 = vpop.f32.mrb[0].mxu0
        %v2268 = vadd.f32 0.0, %v2267
        %v2269 = vpop.f32.mrb[0].mxu0
        %v2270 = vadd.f32 0.0, %v2269
        %v2271 = vpop.f32.mrb[0].mxu0
        %v2272 = vadd.f32 0.0, %v2271
        %2273 = vdwg.mxu0
        %v2274 = vpack.c.bf16 %v1895, %v1891
        %v2275 = vpack.c.bf16 %v1897, %v1893
        %v2276 = vpack.c.bf16 %v1905, %v1901
        %v2277 = vpack.c.bf16 %v1907, %v1903
        %v2278 = vpack.c.bf16 %v1915, %v1911
        %v2279 = vpack.c.bf16 %v1917, %v1913
        %v2280 = vpack.c.bf16 %v1925, %v1921
        %v2281 = vpack.c.bf16 %v1927, %v1923
        %v2282 = vpack.c.bf16 %v1935, %v1931
        %v2283 = vpack.c.bf16 %v1937, %v1933
        %v2284 = vpack.c.bf16 %v1945, %v1941
        %v2285 = vpack.c.bf16 %v1947, %v1943
        %v2286 = vpack.c.bf16 %v1955, %v1951
        %v2287 = vpack.c.bf16 %v1957, %v1953
        %v2288 = vpack.c.bf16 %v1965, %v1961
        %v2289 = vpack.c.bf16 %v1967, %v1963
        %v2290 = vpack.c.bf16 %v1975, %v1971
        %v2291 = vpack.c.bf16 %v1977, %v1973
        %v2292 = vpack.c.bf16 %v1985, %v1981
        %v2293 = vpack.c.bf16 %v1987, %v1983
        %v2294 = vpack.c.bf16 %v1995, %v1991
        %v2295 = vpack.c.bf16 %v1997, %v1993
        %v2296 = vpack.c.bf16 %v2005, %v2001
        %v2297 = vpack.c.bf16 %v2007, %v2003
        %v2298 = vpack.c.bf16 %v2015, %v2011
        %v2299 = vpack.c.bf16 %v2017, %v2013
        %v2300 = vpack.c.bf16 %v2025, %v2021
        %v2301 = vpack.c.bf16 %v2027, %v2023
        %v2302 = vpack.c.bf16 %v2035, %v2031
        %v2303 = vpack.c.bf16 %v2037, %v2033
        %v2304 = vpack.c.bf16 %v2045, %v2041
        %v2305 = vpack.c.bf16 %v2047, %v2043
        %2306 = vmatprep.subr.bf16.mxu0 %v959
        %2307 = vmatpush1.bf16.msra.mxu0 %v958
        %2308 = vmatprep.subr.bf16.mxu0 %v961
        %2309 = vmatpush1.bf16.msra.mxu0 %v960
        %2310 = vmatprep.subr.bf16.mxu0 %v963
        %2311 = vmatpush1.bf16.msra.mxu0 %v962
        %2312 = vmatprep.subr.bf16.mxu0 %v965
        %2313 = vmatpush1.bf16.msra.mxu0 %v964
        %2314 = vmatprep.subr.bf16.mxu0 %v967
        %2315 = vmatpush1.bf16.msra.mxu0 %v966
        %2316 = vmatprep.subr.bf16.mxu0 %v969
        %2317 = vmatpush1.bf16.msra.mxu0 %v968
        %2318 = vmatprep.subr.bf16.mxu0 %v971
        %2319 = vmatpush1.bf16.msra.mxu0 %v970
        %2320 = vmatprep.subr.bf16.mxu0 %v973
        %2321 = vmatpush1.bf16.msra.mxu0 %v972
        %2322 = vmatprep.subr.bf16.mxu0 %v975
        %2323 = vmatpush1.bf16.msra.mxu0 %v974
        %2324 = vmatprep.subr.bf16.mxu0 %v977
        %2325 = vmatpush1.bf16.msra.mxu0 %v976
        %2326 = vmatprep.subr.bf16.mxu0 %v979
        %2327 = vmatpush1.bf16.msra.mxu0 %v978
        %2328 = vmatprep.subr.bf16.mxu0 %v981
        %2329 = vmatpush1.bf16.msra.mxu0 %v980
        %2330 = vmatprep.subr.bf16.mxu0 %v983
        %2331 = vmatpush1.bf16.msra.mxu0 %v982
        %2332 = vmatprep.subr.bf16.mxu0 %v985
        %2333 = vmatpush1.bf16.msra.mxu0 %v984
        %2334 = vmatprep.subr.bf16.mxu0 %v987
        %2335 = vmatpush1.bf16.msra.mxu0 %v986
        %2336 = vmatprep.subr.bf16.mxu0 %v989
        %2337 = vmatpush1.bf16.msra.mxu0 %v988
        %2338 = vmatprep.mubr.bf16.mxu0 %v2275
        %2339 = vmatmul.mubr.bf16.gmra.mrb[0].mxu0 %v2274
        %v2340 = vpop.f32.mrb[0].mxu0
        %v2341 = vadd.f32 0.0, %v2340
        %v2342 = vpop.f32.mrb[0].mxu0
        %v2343 = vadd.f32 0.0, %v2342
        %v2344 = vpop.f32.mrb[0].mxu0
        %v2345 = vadd.f32 0.0, %v2344
        %v2346 = vpop.f32.mrb[0].mxu0
        %v2347 = vadd.f32 0.0, %v2346
        %2348 = vmatprep.mubr.bf16.mxu0 %v2277
        %2349 = vmatmul.mubr.bf16.gmra.mrb[0].mxu0 %v2276
        %v2350 = vpop.f32.mrb[0].mxu0
        %v2351 = vadd.f32 0.0, %v2350
        %v2352 = vpop.f32.mrb[0].mxu0
        %v2353 = vadd.f32 0.0, %v2352
        %v2354 = vpop.f32.mrb[0].mxu0
        %v2355 = vadd.f32 0.0, %v2354
        %v2356 = vpop.f32.mrb[0].mxu0
        %v2357 = vadd.f32 0.0, %v2356
        %2358 = vmatprep.mubr.bf16.mxu0 %v2279
        %2359 = vmatmul.mubr.bf16.gmra.mrb[0].mxu0 %v2278
        %v2360 = vpop.f32.mrb[0].mxu0
        %v2361 = vadd.f32 0.0, %v2360
        %v2362 = vpop.f32.mrb[0].mxu0
        %v2363 = vadd.f32 0.0, %v2362
        %v2364 = vpop.f32.mrb[0].mxu0
        %v2365 = vadd.f32 0.0, %v2364
        %v2366 = vpop.f32.mrb[0].mxu0
        %v2367 = vadd.f32 0.0, %v2366
        %2368 = vmatprep.mubr.bf16.mxu0 %v2281
        %2369 = vmatmul.mubr.bf16.gmra.mrb[0].mxu0 %v2280
        %v2370 = vpop.f32.mrb[0].mxu0
        %v2371 = vadd.f32 0.0, %v2370
        %v2372 = vpop.f32.mrb[0].mxu0
        %v2373 = vadd.f32 0.0, %v2372
        %v2374 = vpop.f32.mrb[0].mxu0
        %v2375 = vadd.f32 0.0, %v2374
        %v2376 = vpop.f32.mrb[0].mxu0
        %v2377 = vadd.f32 0.0, %v2376
        %2378 = vmatprep.mubr.bf16.mxu0 %v2283
        %2379 = vmatmul.mubr.bf16.gmra.mrb[0].mxu0 %v2282
        %v2380 = vpop.f32.mrb[0].mxu0
        %v2381 = vadd.f32 0.0, %v2380
        %v2382 = vpop.f32.mrb[0].mxu0
        %v2383 = vadd.f32 0.0, %v2382
        %v2384 = vpop.f32.mrb[0].mxu0
        %v2385 = vadd.f32 0.0, %v2384
        %v2386 = vpop.f32.mrb[0].mxu0
        %v2387 = vadd.f32 0.0, %v2386
        %2388 = vmatprep.mubr.bf16.mxu0 %v2285
        %2389 = vmatmul.mubr.bf16.gmra.mrb[0].mxu0 %v2284
        %v2390 = vpop.f32.mrb[0].mxu0
        %v2391 = vadd.f32 0.0, %v2390
        %v2392 = vpop.f32.mrb[0].mxu0
        %v2393 = vadd.f32 0.0, %v2392
        %v2394 = vpop.f32.mrb[0].mxu0
        %v2395 = vadd.f32 0.0, %v2394
        %v2396 = vpop.f32.mrb[0].mxu0
        %v2397 = vadd.f32 0.0, %v2396
        %2398 = vmatprep.mubr.bf16.mxu0 %v2287
        %2399 = vmatmul.mubr.bf16.gmra.mrb[0].mxu0 %v2286
        %v2400 = vpop.f32.mrb[0].mxu0
        %v2401 = vadd.f32 0.0, %v2400
        %v2402 = vpop.f32.mrb[0].mxu0
        %v2403 = vadd.f32 0.0, %v2402
        %v2404 = vpop.f32.mrb[0].mxu0
        %v2405 = vadd.f32 0.0, %v2404
        %v2406 = vpop.f32.mrb[0].mxu0
        %v2407 = vadd.f32 0.0, %v2406
        %2408 = vmatprep.mubr.bf16.mxu0 %v2289
        %2409 = vmatmul.mubr.bf16.gmra.mrb[0].mxu0 %v2288
        %v2410 = vpop.f32.mrb[0].mxu0
        %v2411 = vadd.f32 0.0, %v2410
        %v2412 = vpop.f32.mrb[0].mxu0
        %v2413 = vadd.f32 0.0, %v2412
        %v2414 = vpop.f32.mrb[0].mxu0
        %v2415 = vadd.f32 0.0, %v2414
        %v2416 = vpop.f32.mrb[0].mxu0
        %v2417 = vadd.f32 0.0, %v2416
        %2418 = vmatprep.mubr.bf16.mxu0 %v2291
        %2419 = vmatmul.mubr.bf16.gmra.mrb[0].mxu0 %v2290
        %v2420 = vpop.f32.mrb[0].mxu0
        %v2421 = vadd.f32 0.0, %v2420
        %v2422 = vpop.f32.mrb[0].mxu0
        %v2423 = vadd.f32 0.0, %v2422
        %v2424 = vpop.f32.mrb[0].mxu0
        %v2425 = vadd.f32 0.0, %v2424
        %v2426 = vpop.f32.mrb[0].mxu0
        %v2427 = vadd.f32 0.0, %v2426
        %2428 = vmatprep.mubr.bf16.mxu0 %v2293
        %2429 = vmatmul.mubr.bf16.gmra.mrb[0].mxu0 %v2292
        %v2430 = vpop.f32.mrb[0].mxu0
        %v2431 = vadd.f32 0.0, %v2430
        %v2432 = vpop.f32.mrb[0].mxu0
        %v2433 = vadd.f32 0.0, %v2432
        %v2434 = vpop.f32.mrb[0].mxu0
        %v2435 = vadd.f32 0.0, %v2434
        %v2436 = vpop.f32.mrb[0].mxu0
        %v2437 = vadd.f32 0.0, %v2436
        %2438 = vmatprep.mubr.bf16.mxu0 %v2295
        %2439 = vmatmul.mubr.bf16.gmra.mrb[0].mxu0 %v2294
        %v2440 = vpop.f32.mrb[0].mxu0
        %v2441 = vadd.f32 0.0, %v2440
        %v2442 = vpop.f32.mrb[0].mxu0
        %v2443 = vadd.f32 0.0, %v2442
        %v2444 = vpop.f32.mrb[0].mxu0
        %v2445 = vadd.f32 0.0, %v2444
        %v2446 = vpop.f32.mrb[0].mxu0
        %v2447 = vadd.f32 0.0, %v2446
        %2448 = vmatprep.mubr.bf16.mxu0 %v2297
        %2449 = vmatmul.mubr.bf16.gmra.mrb[0].mxu0 %v2296
        %v2450 = vpop.f32.mrb[0].mxu0
        %v2451 = vadd.f32 0.0, %v2450
        %v2452 = vpop.f32.mrb[0].mxu0
        %v2453 = vadd.f32 0.0, %v2452
        %v2454 = vpop.f32.mrb[0].mxu0
        %v2455 = vadd.f32 0.0, %v2454
        %v2456 = vpop.f32.mrb[0].mxu0
        %v2457 = vadd.f32 0.0, %v2456
        %2458 = vmatprep.mubr.bf16.mxu0 %v2299
        %2459 = vmatmul.mubr.bf16.gmra.mrb[0].mxu0 %v2298
        %v2460 = vpop.f32.mrb[0].mxu0
        %v2461 = vadd.f32 0.0, %v2460
        %v2462 = vpop.f32.mrb[0].mxu0
        %v2463 = vadd.f32 0.0, %v2462
        %v2464 = vpop.f32.mrb[0].mxu0
        %v2465 = vadd.f32 0.0, %v2464
        %v2466 = vpop.f32.mrb[0].mxu0
        %v2467 = vadd.f32 0.0, %v2466
        %2468 = vmatprep.mubr.bf16.mxu0 %v2301
        %2469 = vmatmul.mubr.bf16.gmra.mrb[0].mxu0 %v2300
        %v2470 = vpop.f32.mrb[0].mxu0
        %v2471 = vadd.f32 0.0, %v2470
        %v2472 = vpop.f32.mrb[0].mxu0
        %v2473 = vadd.f32 0.0, %v2472
        %v2474 = vpop.f32.mrb[0].mxu0
        %v2475 = vadd.f32 0.0, %v2474
        %v2476 = vpop.f32.mrb[0].mxu0
        %v2477 = vadd.f32 0.0, %v2476
        %2478 = vmatprep.mubr.bf16.mxu0 %v2303
        %2479 = vmatmul.mubr.bf16.gmra.mrb[0].mxu0 %v2302
        %v2480 = vpop.f32.mrb[0].mxu0
        %v2481 = vadd.f32 0.0, %v2480
        %v2482 = vpop.f32.mrb[0].mxu0
        %v2483 = vadd.f32 0.0, %v2482
        %v2484 = vpop.f32.mrb[0].mxu0
        %v2485 = vadd.f32 0.0, %v2484
        %v2486 = vpop.f32.mrb[0].mxu0
        %v2487 = vadd.f32 0.0, %v2486
        %2488 = vmatprep.mubr.bf16.mxu0 %v2305
        %2489 = vmatmul.mubr.bf16.gmra.mrb[0].mxu0 %v2304
        %v2490 = vpop.f32.mrb[0].mxu0
        %v2491 = vadd.f32 0.0, %v2490
        %v2492 = vpop.f32.mrb[0].mxu0
        %v2493 = vadd.f32 0.0, %v2492
        %v2494 = vpop.f32.mrb[0].mxu0
        %v2495 = vadd.f32 0.0, %v2494
        %v2496 = vpop.f32.mrb[0].mxu0
        %v2497 = vadd.f32 0.0, %v2496
        %2498 = vdwg.mxu0
        %2499 = vst [vmem:[%s316] sm:$0xff] %v2116
        %2500 = vst [vmem:[%s316 + $0x8] sm:$0xff] %v2118
        %2501 = vst [vmem:[%s316 + $0x10] sm:$0xff] %v2120
        %2502 = vst [vmem:[%s316 + $0x18] sm:$0xff] %v2122
        %2503 = vst [vmem:[%s316 + $0x20] sm:$0xff] %v2126
        %2504 = vst [vmem:[%s316 + $0x28] sm:$0xff] %v2128
        %2505 = vst [vmem:[%s316 + $0x30] sm:$0xff] %v2130
        %2506 = vst [vmem:[%s316 + $0x38] sm:$0xff] %v2132
        %2507 = vst [vmem:[%s316 + $0x40] sm:$0xff] %v2136
        %2508 = vst [vmem:[%s316 + $0x48] sm:$0xff] %v2138
        %2509 = vst [vmem:[%s316 + $0x50] sm:$0xff] %v2140
        %2510 = vst [vmem:[%s316 + $0x58] sm:$0xff] %v2142
        %2511 = vst [vmem:[%s316 + $0x60] sm:$0xff] %v2146
        %2512 = vst [vmem:[%s316 + $0x68] sm:$0xff] %v2148
        %2513 = vst [vmem:[%s316 + $0x70] sm:$0xff] %v2150
        %2514 = vst [vmem:[%s316 + $0x78] sm:$0xff] %v2152
        %2515 = vst [vmem:[%s316 + $0x80] sm:$0xff] %v2156
        %2516 = vst [vmem:[%s316 + $0x88] sm:$0xff] %v2158
        %2517 = vst [vmem:[%s316 + $0x90] sm:$0xff] %v2160
        %2518 = vst [vmem:[%s316 + $0x98] sm:$0xff] %v2162
        %2519 = vst [vmem:[%s316 + $0xa0] sm:$0xff] %v2166
        %2520 = vst [vmem:[%s316 + $0xa8] sm:$0xff] %v2168
        %2521 = vst [vmem:[%s316 + $0xb0] sm:$0xff] %v2170
        %2522 = vst [vmem:[%s316 + $0xb8] sm:$0xff] %v2172
        %2523 = vst [vmem:[%s316 + $0xc0] sm:$0xff] %v2176
        %2524 = vst [vmem:[%s316 + $0xc8] sm:$0xff] %v2178
        %2525 = vst [vmem:[%s316 + $0xd0] sm:$0xff] %v2180
        %2526 = vst [vmem:[%s316 + $0xd8] sm:$0xff] %v2182
        %2527 = vst [vmem:[%s316 + $0xe0] sm:$0xff] %v2186
        %2528 = vst [vmem:[%s316 + $0xe8] sm:$0xff] %v2188
        %2529 = vst [vmem:[%s316 + $0xf0] sm:$0xff] %v2190
        %2530 = vst [vmem:[%s316 + $0xf8] sm:$0xff] %v2192
        %2531 = vst [vmem:[%s316 + $0x100] sm:$0xff] %v2196
        %2532 = vst [vmem:[%s316 + $0x108] sm:$0xff] %v2198
        %2533 = vst [vmem:[%s316 + $0x110] sm:$0xff] %v2200
        %2534 = vst [vmem:[%s316 + $0x118] sm:$0xff] %v2202
        %2535 = vst [vmem:[%s316 + $0x120] sm:$0xff] %v2206
        %2536 = vst [vmem:[%s316 + $0x128] sm:$0xff] %v2208
        %2537 = vst [vmem:[%s316 + $0x130] sm:$0xff] %v2210
        %2538 = vst [vmem:[%s316 + $0x138] sm:$0xff] %v2212
        %2539 = vst [vmem:[%s316 + $0x140] sm:$0xff] %v2216
        %2540 = vst [vmem:[%s316 + $0x148] sm:$0xff] %v2218
        %2541 = vst [vmem:[%s316 + $0x150] sm:$0xff] %v2220
        %2542 = vst [vmem:[%s316 + $0x158] sm:$0xff] %v2222
        %2543 = vst [vmem:[%s316 + $0x160] sm:$0xff] %v2226
        %2544 = vst [vmem:[%s316 + $0x168] sm:$0xff] %v2228
        %2545 = vst [vmem:[%s316 + $0x170] sm:$0xff] %v2230
        %2546 = vst [vmem:[%s316 + $0x178] sm:$0xff] %v2232
        %2547 = vst [vmem:[%s316 + $0x180] sm:$0xff] %v2236
        %2548 = vst [vmem:[%s316 + $0x188] sm:$0xff] %v2238
        %2549 = vst [vmem:[%s316 + $0x190] sm:$0xff] %v2240
        %2550 = vst [vmem:[%s316 + $0x198] sm:$0xff] %v2242
        %2551 = vst [vmem:[%s316 + $0x1a0] sm:$0xff] %v2246
        %2552 = vst [vmem:[%s316 + $0x1a8] sm:$0xff] %v2248
        %2553 = vst [vmem:[%s316 + $0x1b0] sm:$0xff] %v2250
        %2554 = vst [vmem:[%s316 + $0x1b8] sm:$0xff] %v2252
        %2555 = vst [vmem:[%s316 + $0x1c0] sm:$0xff] %v2256
        %2556 = vst [vmem:[%s316 + $0x1c8] sm:$0xff] %v2258
        %2557 = vst [vmem:[%s316 + $0x1d0] sm:$0xff] %v2260
        %2558 = vst [vmem:[%s316 + $0x1d8] sm:$0xff] %v2262
        %2559 = vst [vmem:[%s316 + $0x1e0] sm:$0xff] %v2266
        %2560 = vst [vmem:[%s316 + $0x1e8] sm:$0xff] %v2268
        %2561 = vst [vmem:[%s316 + $0x1f0] sm:$0xff] %v2270
        %2562 = vst [vmem:[%s316 + $0x1f8] sm:$0xff] %v2272
        %s2563 = scalar_lea.vmem %s316, 512 [#allocation12]
        %2564 = vst [vmem:[%s2563] sm:$0xff] %v2341
        %2565 = vst [vmem:[%s2563 + $0x8] sm:$0xff] %v2343
        %2566 = vst [vmem:[%s2563 + $0x10] sm:$0xff] %v2345
        %2567 = vst [vmem:[%s2563 + $0x18] sm:$0xff] %v2347
        %2568 = vst [vmem:[%s2563 + $0x20] sm:$0xff] %v2351
        %2569 = vst [vmem:[%s2563 + $0x28] sm:$0xff] %v2353
        %2570 = vst [vmem:[%s2563 + $0x30] sm:$0xff] %v2355
        %2571 = vst [vmem:[%s2563 + $0x38] sm:$0xff] %v2357
        %2572 = vst [vmem:[%s2563 + $0x40] sm:$0xff] %v2361
        %2573 = vst [vmem:[%s2563 + $0x48] sm:$0xff] %v2363
        %2574 = vst [vmem:[%s2563 + $0x50] sm:$0xff] %v2365
        %2575 = vst [vmem:[%s2563 + $0x58] sm:$0xff] %v2367
        %2576 = vst [vmem:[%s2563 + $0x60] sm:$0xff] %v2371
        %2577 = vst [vmem:[%s2563 + $0x68] sm:$0xff] %v2373
        %2578 = vst [vmem:[%s2563 + $0x70] sm:$0xff] %v2375
        %2579 = vst [vmem:[%s2563 + $0x78] sm:$0xff] %v2377
        %2580 = vst [vmem:[%s2563 + $0x80] sm:$0xff] %v2381
        %2581 = vst [vmem:[%s2563 + $0x88] sm:$0xff] %v2383
        %2582 = vst [vmem:[%s2563 + $0x90] sm:$0xff] %v2385
        %2583 = vst [vmem:[%s2563 + $0x98] sm:$0xff] %v2387
        %2584 = vst [vmem:[%s2563 + $0xa0] sm:$0xff] %v2391
        %2585 = vst [vmem:[%s2563 + $0xa8] sm:$0xff] %v2393
        %2586 = vst [vmem:[%s2563 + $0xb0] sm:$0xff] %v2395
        %2587 = vst [vmem:[%s2563 + $0xb8] sm:$0xff] %v2397
        %2588 = vst [vmem:[%s2563 + $0xc0] sm:$0xff] %v2401
        %2589 = vst [vmem:[%s2563 + $0xc8] sm:$0xff] %v2403
        %2590 = vst [vmem:[%s2563 + $0xd0] sm:$0xff] %v2405
        %2591 = vst [vmem:[%s2563 + $0xd8] sm:$0xff] %v2407
        %2592 = vst [vmem:[%s2563 + $0xe0] sm:$0xff] %v2411
        %2593 = vst [vmem:[%s2563 + $0xe8] sm:$0xff] %v2413
        %2594 = vst [vmem:[%s2563 + $0xf0] sm:$0xff] %v2415
        %2595 = vst [vmem:[%s2563 + $0xf8] sm:$0xff] %v2417
        %2596 = vst [vmem:[%s2563 + $0x100] sm:$0xff] %v2421
        %2597 = vst [vmem:[%s2563 + $0x108] sm:$0xff] %v2423
        %2598 = vst [vmem:[%s2563 + $0x110] sm:$0xff] %v2425
        %2599 = vst [vmem:[%s2563 + $0x118] sm:$0xff] %v2427
        %2600 = vst [vmem:[%s2563 + $0x120] sm:$0xff] %v2431
        %2601 = vst [vmem:[%s2563 + $0x128] sm:$0xff] %v2433
        %2602 = vst [vmem:[%s2563 + $0x130] sm:$0xff] %v2435
        %2603 = vst [vmem:[%s2563 + $0x138] sm:$0xff] %v2437
        %2604 = vst [vmem:[%s2563 + $0x140] sm:$0xff] %v2441
        %2605 = vst [vmem:[%s2563 + $0x148] sm:$0xff] %v2443
        %2606 = vst [vmem:[%s2563 + $0x150] sm:$0xff] %v2445
        %2607 = vst [vmem:[%s2563 + $0x158] sm:$0xff] %v2447
        %2608 = vst [vmem:[%s2563 + $0x160] sm:$0xff] %v2451
        %2609 = vst [vmem:[%s2563 + $0x168] sm:$0xff] %v2453
        %2610 = vst [vmem:[%s2563 + $0x170] sm:$0xff] %v2455
        %2611 = vst [vmem:[%s2563 + $0x178] sm:$0xff] %v2457
        %2612 = vst [vmem:[%s2563 + $0x180] sm:$0xff] %v2461
        %2613 = vst [vmem:[%s2563 + $0x188] sm:$0xff] %v2463
        %2614 = vst [vmem:[%s2563 + $0x190] sm:$0xff] %v2465
        %2615 = vst [vmem:[%s2563 + $0x198] sm:$0xff] %v2467
        %2616 = vst [vmem:[%s2563 + $0x1a0] sm:$0xff] %v2471
        %2617 = vst [vmem:[%s2563 + $0x1a8] sm:$0xff] %v2473
        %2618 = vst [vmem:[%s2563 + $0x1b0] sm:$0xff] %v2475
        %2619 = vst [vmem:[%s2563 + $0x1b8] sm:$0xff] %v2477
        %2620 = vst [vmem:[%s2563 + $0x1c0] sm:$0xff] %v2481
        %2621 = vst [vmem:[%s2563 + $0x1c8] sm:$0xff] %v2483
        %2622 = vst [vmem:[%s2563 + $0x1d0] sm:$0xff] %v2485
        %2623 = vst [vmem:[%s2563 + $0x1d8] sm:$0xff] %v2487
        %2624 = vst [vmem:[%s2563 + $0x1e0] sm:$0xff] %v2491
        %2625 = vst [vmem:[%s2563 + $0x1e8] sm:$0xff] %v2493
        %2626 = vst [vmem:[%s2563 + $0x1f0] sm:$0xff] %v2495
        %2627 = vst [vmem:[%s2563 + $0x1f8] sm:$0xff] %v2497
        %s2628 = sand.u32 %s156, 1
        %s2629 = scalar_lea.sflag [#allocation5], %s2628
        %s2630 = sand.u32 %s156, 1
        %s2631 = smul.addr %s2630, 1024
        %s2632 = scalar_lea.vmem [#allocation12], %s2631
        // Predicated region
        $region61: #{tpu_custom_call.1} parent=39 // pred_check
          %p2633 = pneg %p166
        $region62: #{tpu_custom_call.1} parent=39 // pred_check_branch
          %2635 = sbr.rel (%p2633) target = $region64
        $region63: #{tpu_custom_call.1} parent=39 // pred_region
          #allocation14 [shape = 'u32[6]{0}', space=smem, size = 0x18, scoped, tag = 'DMA stride descriptor']
          %s2637 = ssub.s32 16384, 16384
          %2638 = vsyncadd %s2629, %s2637
          %s2639 = smul.addr %s27, 64
          %s2640 = smul.addr %s26, 256
          %s2641 = sadd.s32 %s2639, %s2640
          %s2642 = smul.addr %s2641, 128
          %s2643 = scalar_lea.hbm %s5, %s2642
          %s2645 = sshll.u32 1, 14
          %s2646 = sxor.u32 4294967295, %s2645
          %s2649 = sshll.u32 7, 18
          %s2650 = sxor.u32 4294967295, %s2649
          %s2651 = sand.u32 0, %s2650
          %s2653 = sor.u32 %s2651, 0
          %s2655 = sshll.u32 3, 24
          %s2656 = sxor.u32 4294967295, %s2655
          %s2657 = sand.u32 %s2653, %s2656
          %s2659 = sor.u32 %s2657, 0
          %s2660 = sshll.u32 %s2632, 4
          %s2661 = int_to_ptr.vmem [resolvable:$true] %s2660
          %2667 = sst [smem:[#allocation14]] 8192
          %s2668 = scalar_lea.smem [#allocation14], 1
          %2669 = sst [smem:[%s2668]] 16384
          %s2670 = scalar_lea.smem [#allocation14], 2
          %2671 = sst [smem:[%s2670]] 32
          %s2672 = scalar_lea.smem [#allocation14], 3
          %2673 = sst [smem:[%s2672]] 256
          %s2674 = scalar_lea.smem [#allocation14], 4
          %2675 = sst [smem:[%s2674]] 256
          %s2676 = scalar_lea.smem [#allocation14], 5
          %2677 = sst [smem:[%s2676]] 16
          %2679 = dma.general %s2661, 16384, %s2643, %s2629, [#allocation13], [#allocation14], %s2659, 0
        $region64: #{tpu_custom_call.1} parent=39 // pred_fallthru
          _
      $region40: #{tpu_custom_call.1} parent=5 // pred_fallthru
        _
      %p2680 = scmp.le.s32.totalorder 2, %s17
      // Predicated region
      $region65: #{tpu_custom_call.1} parent=5 // pred_check
        %p2681 = pneg %p2680
      $region66: #{tpu_custom_call.1} parent=5 // pred_check_branch
        %2683 = sbr.rel (%p2681) target = $region68
      $region67: #{tpu_custom_call.1} parent=5 // pred_region
        %s2684 = ssub.s32 %s17, 2
        // Predicated region
        $region69: #{tpu_custom_call.1} parent=67 // pred_check
          %p2685 = pneg %p172
        $region70: #{tpu_custom_call.1} parent=67 // pred_check_branch
          %2687 = sbr.rel (%p2685) target = $region72
        $region71: #{tpu_custom_call.1} parent=67 // pred_region
          %s2688 = sand.u32 %s157, 1
          %s2689 = scalar_lea.sflag [#allocation5], %s2688
          %s2690 = sand.u32 %s157, 1
          %s2691 = smul.addr %s2690, 1024
          %s2692 = scalar_lea.vmem [#allocation12], %s2691
          %2693 = dma.done %s2689, 16384
        $region72: #{tpu_custom_call.1} parent=67 // pred_fallthru
          _
      $region68: #{tpu_custom_call.1} parent=5 // pred_fallthru
        _
    $region6: #{tpu_custom_call.1} parent=1 // loop_footer
      %s21 = sadd.s32 1, %s17
    $region7: #{tpu_custom_call.1} parent=1 // loop_footer_branch
      %16 = sbr.rel target = $region3
    $region8: #{tpu_custom_call.1} parent=1 // loop_exit
      _
    %2694 = vsyncpa [#allocation4], 1
    %s2695 = scalar_lea.sflag [#allocation4], 1
    %2696 = vsyncpa %s2695, 1
    %2697 = vsyncpa [#allocation7], 1
    %2698 = vsyncpa [#allocation10], 1
    %2699 = vsyncpa [#allocation5], 1
    %s2700 = scalar_lea.sflag [#allocation5], 1
    %2701 = vsyncpa %s2700, 1

// kernel: tpu_custom_call.1
$region0: #{tpu_custom_call.1}
  #allocation0 [shape = 'u32[]', space=smem, size = 0x4, offset = 0x4, fixed_abs, tag = 'smem constant byte address 0x4 - core index']
  #allocation1 [shape = 'u32[144,128]{1,0:T(1,128)}', space=vmem, size = 0x12000, scoped, tag = 'internal scratch']
  #allocation2 [shape = 'bf16[256,512]{1,0:T(16,128)(2,1)}', space=vmem, size = 0x40000, scoped, tag = 'scratch operand']
  #allocation13 [shape = 's32[]', space=sflag, size = 0x4, offset = 0, fixed_abs, tag = 'sflag constant byte address 0x0 - dummy sync flag']
  %s0 = inlined_call_operand.hbm [shape: bf16[256,256], index: 0, kind: input, shape index: {}]
  %s1 = inlined_call_operand.hbm [shape: bf16[256,256], index: 1, kind: input, shape index: {}]
  %s2 = inlined_call_operand.hbm [shape: f32[256,256], index: 2, kind: input, shape index: {}]
  %s3 = inlined_call_operand.hbm [shape: f32[256,256], index: 3, kind: input, shape index: {}]
  %s4 = inlined_call_operand.hbm [shape: f32[2,2,256,256], index: 4, kind: input, shape index: {}]
  %s5 = inlined_call_operand.hbm [shape: f32[2,2,2,256,256], index: 5, kind: output, shape index: {}]
  %s6 = sld [smem:[#allocation0]]
  $region73: #{tpu_custom_call.1} parent=0
    _
  %s8 = ssub.s32 1, %s6
  %s9 = scalar_select 0, %s8, %s6
  $region1: #{tpu_custom_call.1} parent=0
    #allocation3 [shape = 'u8[131072]{0}', space=vmem, size = 0x20000, scoped, tag = 'input window, operand 0, single buffered']
    #allocation4 [shape = 's32[2]{0}', space=sflag, size = 0x8, scoped, tag = 'scoped memory for tpu_custom_call.1']
    #allocation5 [shape = 's32[2]{0}', space=sflag, size = 0x8, scoped, tag = 'scoped memory for tpu_custom_call.1']
    #allocation6 [shape = 'u8[131072]{0}', space=vmem, size = 0x20000, scoped, tag = 'input window, operand 1, single buffered']
    #allocation7 [shape = 's32[1]{0}', space=sflag, size = 0x4, scoped, tag = 'scoped memory for tpu_custom_call.1']
    #allocation8 [shape = 'u8[262144]{0}', space=vmem, size = 0x40000, scoped, tag = 'input window, operand 2, single buffered']
    #allocation9 [shape = 'u8[262144]{0}', space=vmem, size = 0x40000, scoped, tag = 'input window, operand 3, single buffered']
    #allocation10 [shape = 's32[1]{0}', space=sflag, size = 0x4, scoped, tag = 'scoped memory for tpu_custom_call.1']
    #allocation11 [shape = 'u8[524288]{0}', space=vmem, size = 0x80000, scoped, tag = 'input window, operand 4']
    #allocation12 [shape = 'u8[1048576]{0}', space=vmem, size = 0x100000, scoped, tag = 'output window, operand 0']
    %10 = vsyncpa [#allocation4], 0
    %11 = vsyncpa [#allocation7], 0
    %12 = vsyncpa [#allocation10], 0
    %13 = vsyncpa [#allocation5], 0
    %s14 = scalar_lea.sflag [#allocation5], 1
    %15 = vsyncpa %s14, 0
    loop: start=0, step=1, limit=6
    $region2: #{tpu_custom_call.1} parent=1 // loop_pre_header
      _
    $region3: #{tpu_custom_call.1} parent=1 // loop_header
      %s17 = sphi 0, %s21
      %p18 = scmp.ge.s32.totalorder %s17, 6
      %s24 = sphi 0, %s36
      %s25 = sphi 0, %s32
      %s26 = sphi 0, %s24
      %s27 = sphi 0, %s25
      %s28 = sphi 0, %s26
      %s29 = sphi 0, %s27
      %s37 = sphi 0, %s37
      %s39 = sphi 0, %s37
      %s40 = sphi 0, %s39
      %s54 = sphi 0, %s40
      %s58 = sphi 0, %s58
      %s60 = sphi 0, %s58
      %s61 = sphi 0, %s60
      %s75 = sphi 0, %s61
      %s79 = sphi 0, %s79
      %s81 = sphi 0, %s79
      %s82 = sphi 0, %s81
      %s96 = sphi 0, %s82
      %s100 = sphi 0, %s100
      %s102 = sphi 0, %s100
      %s103 = sphi 0, %s102
      %s117 = sphi 0, %s103
      %s125 = sphi 0, %s127
      %s128 = sphi 0, %s125
      %s129 = sphi 0, %s128
      %s145 = sphi 0, %s129
      %s153 = sphi 0, %s155
      %s156 = sphi 0, %s153
      %s157 = sphi 0, %s156
      %s173 = sphi 0, %s157
    $region4: #{tpu_custom_call.1} parent=1 // loop_header_branch
      %20 = sbr.rel (%p18) target = $region8
    $region5: #{tpu_custom_call.1} parent=1 // loop_body
      %s22 = ssub.s32 %s17, 1
      %s23 = ssub.s32 %s17, 2
      %s30 = sadd.s32 1, %s25
      %p31 = scmp.ge.s32.totalorder %s30, 2
      %s32 = scalar_select %p31, 0, %s30
      %s33 = sadd.s32 1, %s24
      %s34 = scalar_select %p31, %s33, %s24
      %p35 = scmp.ge.s32.totalorder %s34, 2
      %s36 = scalar_select %p35, 0, %s34
      %s38 = sadd.s32 %s37, 1
      %p41 = scmp.eq.s32.totalorder %s17, 3
      %p42 = scmp.ne.s32.totalorder %s37, %s39
      %p43 = scmp.eq.s32.totalorder %s17, 0
      %p44 = por %p42, %p43
      %p45 = scmp.ne.s32.totalorder %s37, %s39
      %p46 = scmp.eq.s32.totalorder %s22, 3
      %p47 = por %p45, %p46
      %p48 = scmp.ne.s32.totalorder %s39, %s40
      %p49 = scmp.eq.s32.totalorder %s22, 0
      %p50 = por %p48, %p49
      %p51 = scmp.ne.s32.totalorder %s39, %s40
      %p52 = scmp.eq.s32.totalorder %s23, 3
      %p53 = por %p51, %p52
      %p55 = scmp.ne.s32.totalorder %s40, %s54
      %p56 = scmp.eq.s32.totalorder %s23, 0
      %p57 = por %p55, %p56
      %s59 = sadd.s32 %s58, 1
      %p62 = scmp.eq.s32.totalorder %s17, 3
      %p63 = scmp.ne.s32.totalorder %s58, %s60
      %p64 = scmp.eq.s32.totalorder %s17, 0
      %p65 = por %p63, %p64
      %p66 = scmp.ne.s32.totalorder %s58, %s60
      %p67 = scmp.eq.s32.totalorder %s22, 3
      %p68 = por %p66, %p67
      %p69 = scmp.ne.s32.totalorder %s60, %s61
      %p70 = scmp.eq.s32.totalorder %s22, 0
      %p71 = por %p69, %p70
      %p72 = scmp.ne.s32.totalorder %s60, %s61
      %p73 = scmp.eq.s32.totalorder %s23, 3
      %p74 = por %p72, %p73
      %p76 = scmp.ne.s32.totalorder %s61, %s75
      %p77 = scmp.eq.s32.totalorder %s23, 0
      %p78 = por %p76, %p77
      %s80 = sadd.s32 %s79, 1
      %p83 = scmp.eq.s32.totalorder %s17, 3
      %p84 = scmp.ne.s32.totalorder %s79, %s81
      %p85 = scmp.eq.s32.totalorder %s17, 0
      %p86 = por %p84, %p85
      %p87 = scmp.ne.s32.totalorder %s79, %s81
      %p88 = scmp.eq.s32.totalorder %s22, 3
      %p89 = por %p87, %p88
      %p90 = scmp.ne.s32.totalorder %s81, %s82
      %p91 = scmp.eq.s32.totalorder %s22, 0
      %p92 = por %p90, %p91
      %p93 = scmp.ne.s32.totalorder %s81, %s82
      %p94 = scmp.eq.s32.totalorder %s23, 3
      %p95 = por %p93, %p94
      %p97 = scmp.ne.s32.totalorder %s82, %s96
      %p98 = scmp.eq.s32.totalorder %s23, 0
      %p99 = por %p97, %p98
      %s101 = sadd.s32 %s100, 1
      %p104 = scmp.eq.s32.totalorder %s17, 3
      %p105 = scmp.ne.s32.totalorder %s100, %s102
      %p106 = scmp.eq.s32.totalorder %s17, 0
      %p107 = por %p105, %p106
      %p108 = scmp.ne.s32.totalorder %s100, %s102
      %p109 = scmp.eq.s32.totalorder %s22, 3
      %p110 = por %p108, %p109
      %p111 = scmp.ne.s32.totalorder %s102, %s103
      %p112 = scmp.eq.s32.totalorder %s22, 0
      %p113 = por %p111, %p112
      %p114 = scmp.ne.s32.totalorder %s102, %s103
      %p115 = scmp.eq.s32.totalorder %s23, 3
      %p116 = por %p114, %p115
      %p118 = scmp.ne.s32.totalorder %s103, %s117
      %p119 = scmp.eq.s32.totalorder %s23, 0
      %p120 = por %p118, %p119
      %s121 = ssub.s32 %s24, %s36
      %s122 = ssub.s32 %s25, %s32
      %s123 = sor.u32 %s121, %s122
      %p124 = scmp.eq.s32.totalorder %s123, 0
      %s126 = sadd.s32 %s125, 1
      %s127 = scalar_select %p124, %s125, %s126
      %p130 = pneg %p124
      %p131 = scmp.eq.s32.totalorder %s17, 3
      %p132 = por %p130, %p131
      %p133 = scmp.ne.s32.totalorder %s125, %s128
      %p134 = scmp.eq.s32.totalorder %s17, 0
      %p135 = por %p133, %p134
      %p136 = scmp.ne.s32.totalorder %s125, %s128
      %p137 = scmp.eq.s32.totalorder %s22, 3
      %p138 = por %p136, %p137
      %p139 = scmp.ne.s32.totalorder %s128, %s129
      %p140 = scmp.eq.s32.totalorder %s22, 0
      %p141 = por %p139, %p140
      %p142 = scmp.ne.s32.totalorder %s128, %s129
      %p143 = scmp.eq.s32.totalorder %s23, 3
      %p144 = por %p142, %p143
      %p146 = scmp.ne.s32.totalorder %s129, %s145
      %p147 = scmp.eq.s32.totalorder %s23, 0
      %p148 = por %p146, %p147
      %s149 = ssub.s32 %s24, %s36
      %s150 = ssub.s32 %s25, %s32
      %s151 = sor.u32 %s149, %s150
      %p152 = scmp.eq.s32.totalorder %s151, 0
      %s154 = sadd.s32 %s153, 1
      %s155 = scalar_select %p152, %s153, %s154
      %p158 = pneg %p152
      %p159 = scmp.eq.s32.totalorder %s17, 3
      %p160 = por %p158, %p159
      %p161 = scmp.ne.s32.totalorder %s153, %s156
      %p162 = scmp.eq.s32.totalorder %s17, 0
      %p163 = por %p161, %p162
      %p164 = scmp.ne.s32.totalorder %s153, %s156
      %p165 = scmp.eq.s32.totalorder %s22, 3
      %p166 = por %p164, %p165
      %p167 = scmp.ne.s32.totalorder %s156, %s157
      %p168 = scmp.eq.s32.totalorder %s22, 0
      %p169 = por %p167, %p168
      %p170 = scmp.ne.s32.totalorder %s156, %s157
      %p171 = scmp.eq.s32.totalorder %s23, 3
      %p172 = por %p170, %p171
      %p174 = scmp.ne.s32.totalorder %s157, %s173
      %p175 = scmp.eq.s32.totalorder %s23, 0
      %p176 = por %p174, %p175
      %p177 = scmp.le.s32.totalorder 1, %s17
      %p178 = scmp.lt.s32.totalorder %s17, 5
      %p179 = pnand %p177, %p178
      %p180 = pneg %p179
      // Predicated region
      $region9: #{tpu_custom_call.1} parent=5 // pred_check
        _
      $region10: #{tpu_custom_call.1} parent=5 // pred_check_branch
        %182 = sbr.rel (%p179) target = $region12
      $region11: #{tpu_custom_call.1} parent=5 // pred_region
        %s183 = ssub.s32 %s17, 1
        // Predicated region
        $region13: #{tpu_custom_call.1} parent=11 // pred_check
          %p184 = pneg %p50
        $region14: #{tpu_custom_call.1} parent=11 // pred_check_branch
          %186 = sbr.rel (%p184) target = $region16
        $region15: #{tpu_custom_call.1} parent=11 // pred_region
          %s188 = ssub.s32 4096, 4096
          %189 = vsyncadd [#allocation4], %s188
          %s190 = sshll.u32 [#allocation3], 4
          %s191 = int_to_ptr.vmem [resolvable:$true] %s190
          %196 = dma.hbm_to_vmem [thread:$0]  %s0, 4096, %s191, [#allocation4], 128, 128, 8
        $region16: #{tpu_custom_call.1} parent=11 // pred_fallthru
          _
        // Predicated region
        $region17: #{tpu_custom_call.1} parent=11 // pred_check
          %p197 = pneg %p71
        $region18: #{tpu_custom_call.1} parent=11 // pred_check_branch
          %199 = sbr.rel (%p197) target = $region20
        $region19: #{tpu_custom_call.1} parent=11 // pred_region
          %s201 = ssub.s32 4096, 4096
          %202 = vsyncadd [#allocation7], %s201
          %s203 = sshll.u32 [#allocation6], 4
          %s204 = int_to_ptr.vmem [resolvable:$true] %s203
          %209 = dma.hbm_to_vmem [thread:$0]  %s1, 4096, %s204, [#allocation7], 128, 128, 8
        $region20: #{tpu_custom_call.1} parent=11 // pred_fallthru
          _
        // Predicated region
        $region21: #{tpu_custom_call.1} parent=11 // pred_check
          %p210 = pneg %p92
        $region22: #{tpu_custom_call.1} parent=11 // pred_check_branch
          %212 = sbr.rel (%p210) target = $region24
        $region23: #{tpu_custom_call.1} parent=11 // pred_region
          %s214 = ssub.s32 8192, 8192
          %215 = vsyncadd [#allocation7], %s214
          %s216 = sshll.u32 [#allocation8], 4
          %s217 = int_to_ptr.vmem [resolvable:$true] %s216
          %222 = dma.hbm_to_vmem [thread:$0]  %s2, 8192, %s217, [#allocation7], 256, 256, 16
        $region24: #{tpu_custom_call.1} parent=11 // pred_fallthru
          _
        // Predicated region
        $region25: #{tpu_custom_call.1} parent=11 // pred_check
          %p223 = pneg %p113
        $region26: #{tpu_custom_call.1} parent=11 // pred_check_branch
          %225 = sbr.rel (%p223) target = $region28
        $region27: #{tpu_custom_call.1} parent=11 // pred_region
          %s227 = ssub.s32 8192, 8192
          %228 = vsyncadd [#allocation10], %s227
          %s229 = sshll.u32 [#allocation9], 4
          %s230 = int_to_ptr.vmem [resolvable:$true] %s229
          %235 = dma.hbm_to_vmem [thread:$0]  %s3, 8192, %s230, [#allocation10], 256, 256, 16
        $region28: #{tpu_custom_call.1} parent=11 // pred_fallthru
          _
      $region12: #{tpu_custom_call.1} parent=5 // pred_fallthru
        _
      %p236 = scmp.lt.s32.totalorder %s17, 4
      // Predicated region
      $region29: #{tpu_custom_call.1} parent=5 // pred_check
        %p237 = pneg %p236
      $region30: #{tpu_custom_call.1} parent=5 // pred_check_branch
        %239 = sbr.rel (%p237) target = $region32
      $region31: #{tpu_custom_call.1} parent=5 // pred_region
        // Predicated region
        $region33: #{tpu_custom_call.1} parent=31 // pred_check
          %p240 = pneg %p135
        $region34: #{tpu_custom_call.1} parent=31 // pred_check_branch
          %242 = sbr.rel (%p240) target = $region36
        $region35: #{tpu_custom_call.1} parent=31 // pred_region
          %s243 = sand.u32 %s17, 1
          %s244 = scalar_lea.sflag [#allocation4], %s243
          %s245 = sand.u32 %s125, 1
          %s246 = smul.addr %s245, 512
          %s247 = scalar_lea.vmem [#allocation11], %s246
          %s249 = ssub.s32 8192, 8192
          %250 = vsyncadd %s244, %s249
          %s251 = smul.addr %s25, 64
          %s252 = smul.addr %s24, 128
          %s253 = sadd.s32 %s251, %s252
          %s254 = smul.addr %s253, 128
          %s255 = scalar_lea.hbm %s4, %s254
          %s256 = sshll.u32 %s247, 4
          %s257 = int_to_ptr.vmem [resolvable:$true] %s256
          %262 = dma.hbm_to_vmem [thread:$0]  %s255, 8192, %s257, %s244, 256, 256, 16
        $region36: #{tpu_custom_call.1} parent=31 // pred_fallthru
          _
      $region32: #{tpu_custom_call.1} parent=5 // pred_fallthru
        _
      %p263 = scmp.le.s32.totalorder 1, %s17
      %p264 = scmp.lt.s32.totalorder %s17, 5
      %p265 = pnand %p263, %p264
      %p266 = pneg %p265
      // Predicated region
      $region37: #{tpu_custom_call.1} parent=5 // pred_check
        _
      $region38: #{tpu_custom_call.1} parent=5 // pred_check_branch
        %268 = sbr.rel (%p265) target = $region40
      $region39: #{tpu_custom_call.1} parent=5 // pred_region
        %s269 = ssub.s32 %s17, 1
        // Predicated region
        $region41: #{tpu_custom_call.1} parent=39 // pred_check
          %p270 = pneg %p50
        $region42: #{tpu_custom_call.1} parent=39 // pred_check_branch
          %272 = sbr.rel (%p270) target = $region44
        $region43: #{tpu_custom_call.1} parent=39 // pred_region
          %273 = dma.done [#allocation4], 4096
        $region44: #{tpu_custom_call.1} parent=39 // pred_fallthru
          _
        // Predicated region
        $region45: #{tpu_custom_call.1} parent=39 // pred_check
          %p274 = pneg %p71
        $region46: #{tpu_custom_call.1} parent=39 // pred_check_branch
          %276 = sbr.rel (%p274) target = $region48
        $region47: #{tpu_custom_call.1} parent=39 // pred_region
          %277 = dma.done [#allocation7], 4096
        $region48: #{tpu_custom_call.1} parent=39 // pred_fallthru
          _
        // Predicated region
        $region49: #{tpu_custom_call.1} parent=39 // pred_check
          %p278 = pneg %p92
        $region50: #{tpu_custom_call.1} parent=39 // pred_check_branch
          %280 = sbr.rel (%p278) target = $region52
        $region51: #{tpu_custom_call.1} parent=39 // pred_region
          %281 = dma.done [#allocation7], 8192
        $region52: #{tpu_custom_call.1} parent=39 // pred_fallthru
          _
        // Predicated region
        $region53: #{tpu_custom_call.1} parent=39 // pred_check
          %p282 = pneg %p113
        $region54: #{tpu_custom_call.1} parent=39 // pred_check_branch
          %284 = sbr.rel (%p282) target = $region56
        $region55: #{tpu_custom_call.1} parent=39 // pred_region
          %285 = dma.done [#allocation10], 8192
        $region56: #{tpu_custom_call.1} parent=39 // pred_fallthru
          _
        %s286 = sand.u32 %s22, 1
        %s287 = scalar_lea.sflag [#allocation4], %s286
        %s288 = sand.u32 %s128, 1
        %s289 = smul.addr %s288, 512
        %s290 = scalar_lea.vmem [#allocation11], %s289
        // Predicated region
        $region57: #{tpu_custom_call.1} parent=39 // pred_check
          %p291 = pneg %p141
        $region58: #{tpu_custom_call.1} parent=39 // pred_check_branch
          %293 = sbr.rel (%p291) target = $region60
        $region59: #{tpu_custom_call.1} parent=39 // pred_region
          %294 = dma.done %s287, 8192
        $region60: #{tpu_custom_call.1} parent=39 // pred_fallthru
          _
        %p295 = pneg %p50
        %p296 = pneg %p47
        %p297 = pneg %p71
        %p298 = pneg %p68
        %p299 = pneg %p92
        %p300 = pneg %p89
        %p301 = pneg %p113
        %p302 = pneg %p110
        %s303 = sand.u32 %s22, 1
        %s304 = scalar_lea.sflag [#allocation4], %s303
        %s305 = sand.u32 %s128, 1
        %s306 = smul.addr %s305, 512
        %s307 = scalar_lea.vmem [#allocation11], %s306
        %p308 = pneg %p141
        %p309 = pneg %p138
        %p310 = pneg %p169
        %p311 = pneg %p166
        %s312 = sand.u32 %s156, 1
        %s313 = scalar_lea.sflag [#allocation5], %s312
        %s314 = sand.u32 %s156, 1
        %s315 = smul.addr %s314, 1024
        %s316 = scalar_lea.vmem [#allocation12], %s315
        %v317 = vld [vmem:[#allocation3] sm:$0xff]
        %v318 = vld [vmem:[#allocation3 + $0x8] sm:$0xff]
        %v319 = vld [vmem:[#allocation3 + $0x10] sm:$0xff]
        %v320 = vld [vmem:[#allocation3 + $0x18] sm:$0xff]
        %v321 = vld [vmem:[#allocation3 + $0x20] sm:$0xff]
        %v322 = vld [vmem:[#allocation3 + $0x28] sm:$0xff]
        %v323 = vld [vmem:[#allocation3 + $0x30] sm:$0xff]
        %v324 = vld [vmem:[#allocation3 + $0x38] sm:$0xff]
        %v325 = vld [vmem:[#allocation3 + $0x40] sm:$0xff]
        %v326 = vld [vmem:[#allocation3 + $0x48] sm:$0xff]
        %v327 = vld [vmem:[#allocation3 + $0x50] sm:$0xff]
        %v328 = vld [vmem:[#allocation3 + $0x58] sm:$0xff]
        %v329 = vld [vmem:[#allocation3 + $0x60] sm:$0xff]
        %v330 = vld [vmem:[#allocation3 + $0x68] sm:$0xff]
        %v331 = vld [vmem:[#allocation3 + $0x70] sm:$0xff]
        %v332 = vld [vmem:[#allocation3 + $0x78] sm:$0xff]
        %v333 = vld [vmem:[#allocation3 + $0x80] sm:$0xff]
        %v334 = vld [vmem:[#allocation3 + $0x88] sm:$0xff]
        %v335 = vld [vmem:[#allocation3 + $0x90] sm:$0xff]
        %v336 = vld [vmem:[#allocation3 + $0x98] sm:$0xff]
        %v337 = vld [vmem:[#allocation3 + $0xa0] sm:$0xff]
        %v338 = vld [vmem:[#allocation3 + $0xa8] sm:$0xff]
        %v339 = vld [vmem:[#allocation3 + $0xb0] sm:$0xff]
        %v340 = vld [vmem:[#allocation3 + $0xb8] sm:$0xff]
        %v341 = vld [vmem:[#allocation3 + $0xc0] sm:$0xff]
        %v342 = vld [vmem:[#allocation3 + $0xc8] sm:$0xff]
        %v343 = vld [vmem:[#allocation3 + $0xd0] sm:$0xff]
        %v344 = vld [vmem:[#allocation3 + $0xd8] sm:$0xff]
        %v345 = vld [vmem:[#allocation3 + $0xe0] sm:$0xff]
        %v346 = vld [vmem:[#allocation3 + $0xe8] sm:$0xff]
        %v347 = vld [vmem:[#allocation3 + $0xf0] sm:$0xff]
        %v348 = vld [vmem:[#allocation3 + $0xf8] sm:$0xff]
        %v349 = vld [vmem:[#allocation6] sm:$0xff]
        %v350 = vld [vmem:[#allocation6 + $0x8] sm:$0xff]
        %v351 = vld [vmem:[#allocation6 + $0x10] sm:$0xff]
        %v352 = vld [vmem:[#allocation6 + $0x18] sm:$0xff]
        %v353 = vld [vmem:[#allocation6 + $0x20] sm:$0xff]
        %v354 = vld [vmem:[#allocation6 + $0x28] sm:$0xff]
        %v355 = vld [vmem:[#allocation6 + $0x30] sm:$0xff]
        %v356 = vld [vmem:[#allocation6 + $0x38] sm:$0xff]
        %v357 = vld [vmem:[#allocation6 + $0x40] sm:$0xff]
        %v358 = vld [vmem:[#allocation6 + $0x48] sm:$0xff]
        %v359 = vld [vmem:[#allocation6 + $0x50] sm:$0xff]
        %v360 = vld [vmem:[#allocation6 + $0x58] sm:$0xff]
        %v361 = vld [vmem:[#allocation6 + $0x60] sm:$0xff]
        %v362 = vld [vmem:[#allocation6 + $0x68] sm:$0xff]
        %v363 = vld [vmem:[#allocation6 + $0x70] sm:$0xff]
        %v364 = vld [vmem:[#allocation6 + $0x78] sm:$0xff]
        %v365 = vld [vmem:[#allocation6 + $0x80] sm:$0xff]
        %v366 = vld [vmem:[#allocation6 + $0x88] sm:$0xff]
        %v367 = vld [vmem:[#allocation6 + $0x90] sm:$0xff]
        %v368 = vld [vmem:[#allocation6 + $0x98] sm:$0xff]
        %v369 = vld [vmem:[#allocation6 + $0xa0] sm:$0xff]
        %v370 = vld [vmem:[#allocation6 + $0xa8] sm:$0xff]
        %v371 = vld [vmem:[#allocation6 + $0xb0] sm:$0xff]
        %v372 = vld [vmem:[#allocation6 + $0xb8] sm:$0xff]
        %v373 = vld [vmem:[#allocation6 + $0xc0] sm:$0xff]
        %v374 = vld [vmem:[#allocation6 + $0xc8] sm:$0xff]
        %v375 = vld [vmem:[#allocation6 + $0xd0] sm:$0xff]
        %v376 = vld [vmem:[#allocation6 + $0xd8] sm:$0xff]
        %v377 = vld [vmem:[#allocation6 + $0xe0] sm:$0xff]
        %v378 = vld [vmem:[#allocation6 + $0xe8] sm:$0xff]
        %v379 = vld [vmem:[#allocation6 + $0xf0] sm:$0xff]
        %v380 = vld [vmem:[#allocation6 + $0xf8] sm:$0xff]
        %v381 = vld [vmem:[%s290] sm:$0xff]
        %v382 = vld [vmem:[%s290 + $0x8] sm:$0xff]
        %v383 = vld [vmem:[%s290 + $0x10] sm:$0xff]
        %v384 = vld [vmem:[%s290 + $0x18] sm:$0xff]
        %v385 = vld [vmem:[%s290 + $0x20] sm:$0xff]
        %v386 = vld [vmem:[%s290 + $0x28] sm:$0xff]
        %v387 = vld [vmem:[%s290 + $0x30] sm:$0xff]
        %v388 = vld [vmem:[%s290 + $0x38] sm:$0xff]
        %v389 = vld [vmem:[%s290 + $0x40] sm:$0xff]
        %v390 = vld [vmem:[%s290 + $0x48] sm:$0xff]
        %v391 = vld [vmem:[%s290 + $0x50] sm:$0xff]
        %v392 = vld [vmem:[%s290 + $0x58] sm:$0xff]
        %v393 = vld [vmem:[%s290 + $0x60] sm:$0xff]
        %v394 = vld [vmem:[%s290 + $0x68] sm:$0xff]
        %v395 = vld [vmem:[%s290 + $0x70] sm:$0xff]
        %v396 = vld [vmem:[%s290 + $0x78] sm:$0xff]
        %v397 = vld [vmem:[%s290 + $0x80] sm:$0xff]
        %v398 = vld [vmem:[%s290 + $0x88] sm:$0xff]
        %v399 = vld [vmem:[%s290 + $0x90] sm:$0xff]
        %v400 = vld [vmem:[%s290 + $0x98] sm:$0xff]
        %v401 = vld [vmem:[%s290 + $0xa0] sm:$0xff]
        %v402 = vld [vmem:[%s290 + $0xa8] sm:$0xff]
        %v403 = vld [vmem:[%s290 + $0xb0] sm:$0xff]
        %v404 = vld [vmem:[%s290 + $0xb8] sm:$0xff]
        %v405 = vld [vmem:[%s290 + $0xc0] sm:$0xff]
        %v406 = vld [vmem:[%s290 + $0xc8] sm:$0xff]
        %v407 = vld [vmem:[%s290 + $0xd0] sm:$0xff]
        %v408 = vld [vmem:[%s290 + $0xd8] sm:$0xff]
        %v409 = vld [vmem:[%s290 + $0xe0] sm:$0xff]
        %v410 = vld [vmem:[%s290 + $0xe8] sm:$0xff]
        %v411 = vld [vmem:[%s290 + $0xf0] sm:$0xff]
        %v412 = vld [vmem:[%s290 + $0xf8] sm:$0xff]
        %v413 = vld [vmem:[%s290 + $0x100] sm:$0xff]
        %v414 = vld [vmem:[%s290 + $0x108] sm:$0xff]
        %v415 = vld [vmem:[%s290 + $0x110] sm:$0xff]
        %v416 = vld [vmem:[%s290 + $0x118] sm:$0xff]
        %v417 = vld [vmem:[%s290 + $0x120] sm:$0xff]
        %v418 = vld [vmem:[%s290 + $0x128] sm:$0xff]
        %v419 = vld [vmem:[%s290 + $0x130] sm:$0xff]
        %v420 = vld [vmem:[%s290 + $0x138] sm:$0xff]
        %v421 = vld [vmem:[%s290 + $0x140] sm:$0xff]
        %v422 = vld [vmem:[%s290 + $0x148] sm:$0xff]
        %v423 = vld [vmem:[%s290 + $0x150] sm:$0xff]
        %v424 = vld [vmem:[%s290 + $0x158] sm:$0xff]
        %v425 = vld [vmem:[%s290 + $0x160] sm:$0xff]
        %v426 = vld [vmem:[%s290 + $0x168] sm:$0xff]
        %v427 = vld [vmem:[%s290 + $0x170] sm:$0xff]
        %v428 = vld [vmem:[%s290 + $0x178] sm:$0xff]
        %v429 = vld [vmem:[%s290 + $0x180] sm:$0xff]
        %v430 = vld [vmem:[%s290 + $0x188] sm:$0xff]
        %v431 = vld [vmem:[%s290 + $0x190] sm:$0xff]
        %v432 = vld [vmem:[%s290 + $0x198] sm:$0xff]
        %v433 = vld [vmem:[%s290 + $0x1a0] sm:$0xff]
        %v434 = vld [vmem:[%s290 + $0x1a8] sm:$0xff]
        %v435 = vld [vmem:[%s290 + $0x1b0] sm:$0xff]
        %v436 = vld [vmem:[%s290 + $0x1b8] sm:$0xff]
        %v437 = vld [vmem:[%s290 + $0x1c0] sm:$0xff]
        %v438 = vld [vmem:[%s290 + $0x1c8] sm:$0xff]
        %v439 = vld [vmem:[%s290 + $0x1d0] sm:$0xff]
        %v440 = vld [vmem:[%s290 + $0x1d8] sm:$0xff]
        %v441 = vld [vmem:[%s290 + $0x1e0] sm:$0xff]
        %v442 = vld [vmem:[%s290 + $0x1e8] sm:$0xff]
        %v443 = vld [vmem:[%s290 + $0x1f0] sm:$0xff]
        %v444 = vld [vmem:[%s290 + $0x1f8] sm:$0xff]
        %v445 = vpack.c.bf16 %v383, %v381
        %v446 = vpack.c.bf16 %v384, %v382
        %v447 = vpack.c.bf16 %v387, %v385
        %v448 = vpack.c.bf16 %v388, %v386
        %v449 = vpack.c.bf16 %v391, %v389
        %v450 = vpack.c.bf16 %v392, %v390
        %v451 = vpack.c.bf16 %v395, %v393
        %v452 = vpack.c.bf16 %v396, %v394
        %v453 = vpack.c.bf16 %v399, %v397
        %v454 = vpack.c.bf16 %v400, %v398
        %v455 = vpack.c.bf16 %v403, %v401
        %v456 = vpack.c.bf16 %v404, %v402
        %v457 = vpack.c.bf16 %v407, %v405
        %v458 = vpack.c.bf16 %v408, %v406
        %v459 = vpack.c.bf16 %v411, %v409
        %v460 = vpack.c.bf16 %v412, %v410
        %v461 = vpack.c.bf16 %v415, %v413
        %v462 = vpack.c.bf16 %v416, %v414
        %v463 = vpack.c.bf16 %v419, %v417
        %v464 = vpack.c.bf16 %v420, %v418
        %v465 = vpack.c.bf16 %v423, %v421
        %v466 = vpack.c.bf16 %v424, %v422
        %v467 = vpack.c.bf16 %v427, %v425
        %v468 = vpack.c.bf16 %v428, %v426
        %v469 = vpack.c.bf16 %v431, %v429
        %v470 = vpack.c.bf16 %v432, %v430
        %v471 = vpack.c.bf16 %v435, %v433
        %v472 = vpack.c.bf16 %v436, %v434
        %v473 = vpack.c.bf16 %v439, %v437
        %v474 = vpack.c.bf16 %v440, %v438
        %v475 = vpack.c.bf16 %v443, %v441
        %v476 = vpack.c.bf16 %v444, %v442
        %v509 = vunpack.c.l.b16 %v349
        %v510 = vunpack.c.h.b16 %v349
        %v511 = vunpack.c.l.b16 %v350
        %v512 = vunpack.c.h.b16 %v350
        %v513 = vunpack.c.l.b16 %v351
        %v514 = vunpack.c.h.b16 %v351
        %v515 = vunpack.c.l.b16 %v352
        %v516 = vunpack.c.h.b16 %v352
        %v517 = vunpack.c.l.b16 %v353
        %v518 = vunpack.c.h.b16 %v353
        %v519 = vunpack.c.l.b16 %v354
        %v520 = vunpack.c.h.b16 %v354
        %v521 = vunpack.c.l.b16 %v355
        %v522 = vunpack.c.h.b16 %v355
        %v523 = vunpack.c.l.b16 %v356
        %v524 = vunpack.c.h.b16 %v356
        %v525 = vunpack.c.l.b16 %v357
        %v526 = vunpack.c.h.b16 %v357
        %v527 = vunpack.c.l.b16 %v358
        %v528 = vunpack.c.h.b16 %v358
        %v529 = vunpack.c.l.b16 %v359
        %v530 = vunpack.c.h.b16 %v359
        %v531 = vunpack.c.l.b16 %v360
        %v532 = vunpack.c.h.b16 %v360
        %v533 = vunpack.c.l.b16 %v361
        %v534 = vunpack.c.h.b16 %v361
        %v535 = vunpack.c.l.b16 %v362
        %v536 = vunpack.c.h.b16 %v362
        %v537 = vunpack.c.l.b16 %v363
        %v538 = vunpack.c.h.b16 %v363
        %v539 = vunpack.c.l.b16 %v364
        %v540 = vunpack.c.h.b16 %v364
        %v541 = vunpack.c.l.b16 %v365
        %v542 = vunpack.c.h.b16 %v365
        %v543 = vunpack.c.l.b16 %v366
        %v544 = vunpack.c.h.b16 %v366
        %v545 = vunpack.c.l.b16 %v367
        %v546 = vunpack.c.h.b16 %v367
        %v547 = vunpack.c.l.b16 %v368
        %v548 = vunpack.c.h.b16 %v368
        %v549 = vunpack.c.l.b16 %v369
        %v550 = vunpack.c.h.b16 %v369
        %v551 = vunpack.c.l.b16 %v370
        %v552 = vunpack.c.h.b16 %v370
        %v553 = vunpack.c.l.b16 %v371
        %v554 = vunpack.c.h.b16 %v371
        %v555 = vunpack.c.l.b16 %v372
        %v556 = vunpack.c.h.b16 %v372
        %v557 = vunpack.c.l.b16 %v373
        %v558 = vunpack.c.h.b16 %v373
        %v559 = vunpack.c.l.b16 %v374
        %v560 = vunpack.c.h.b16 %v374
        %v561 = vunpack.c.l.b16 %v375
        %v562 = vunpack.c.h.b16 %v375
        %v563 = vunpack.c.l.b16 %v376
        %v564 = vunpack.c.h.b16 %v376
        %v565 = vunpack.c.l.b16 %v377
        %v566 = vunpack.c.h.b16 %v377
        %v567 = vunpack.c.l.b16 %v378
        %v568 = vunpack.c.h.b16 %v378
        %v569 = vunpack.c.l.b16 %v379
        %v570 = vunpack.c.h.b16 %v379
        %v571 = vunpack.c.l.b16 %v380
        %v572 = vunpack.c.h.b16 %v380
        %v573 = vpack.c.b16 %v511, %v509
        %v574 = vpack.c.b16 %v512, %v510
        %v575 = vpack.c.b16 %v515, %v513
        %v576 = vpack.c.b16 %v516, %v514
        %v577 = vpack.c.b16 %v519, %v517
        %v578 = vpack.c.b16 %v520, %v518
        %v579 = vpack.c.b16 %v523, %v521
        %v580 = vpack.c.b16 %v524, %v522
        %v581 = vpack.c.b16 %v527, %v525
        %v582 = vpack.c.b16 %v528, %v526
        %v583 = vpack.c.b16 %v531, %v529
        %v584 = vpack.c.b16 %v532, %v530
        %v585 = vpack.c.b16 %v535, %v533
        %v586 = vpack.c.b16 %v536, %v534
        %v587 = vpack.c.b16 %v539, %v537
        %v588 = vpack.c.b16 %v540, %v538
        %v589 = vpack.c.b16 %v543, %v541
        %v590 = vpack.c.b16 %v544, %v542
        %v591 = vpack.c.b16 %v547, %v545
        %v592 = vpack.c.b16 %v548, %v546
        %v593 = vpack.c.b16 %v551, %v549
        %v594 = vpack.c.b16 %v552, %v550
        %v595 = vpack.c.b16 %v555, %v553
        %v596 = vpack.c.b16 %v556, %v554
        %v597 = vpack.c.b16 %v559, %v557
        %v598 = vpack.c.b16 %v560, %v558
        %v599 = vpack.c.b16 %v563, %v561
        %v600 = vpack.c.b16 %v564, %v562
        %v601 = vpack.c.b16 %v567, %v565
        %v602 = vpack.c.b16 %v568, %v566
        %v603 = vpack.c.b16 %v571, %v569
        %v604 = vpack.c.b16 %v572, %v570
        %637 = vmatprep.subr.bf16.mxu0 %v574
        %638 = vmatpush1.bf16.msra.mxu0 %v573
        %639 = vmatprep.subr.bf16.mxu0 %v576
        %640 = vmatpush1.bf16.msra.mxu0 %v575
        %641 = vmatprep.subr.bf16.mxu0 %v578
        %642 = vmatpush1.bf16.msra.mxu0 %v577
        %643 = vmatprep.subr.bf16.mxu0 %v580
        %644 = vmatpush1.bf16.msra.mxu0 %v579
        %645 = vmatprep.subr.bf16.mxu0 %v582
        %646 = vmatpush1.bf16.msra.mxu0 %v581
        %647 = vmatprep.subr.bf16.mxu0 %v584
        %648 = vmatpush1.bf16.msra.mxu0 %v583
        %649 = vmatprep.subr.bf16.mxu0 %v586
        %650 = vmatpush1.bf16.msra.mxu0 %v585
        %651 = vmatprep.subr.bf16.mxu0 %v588
        %652 = vmatpush1.bf16.msra.mxu0 %v587
        %653 = vmatprep.subr.bf16.mxu0 %v590
        %654 = vmatpush1.bf16.msra.mxu0 %v589
        %655 = vmatprep.subr.bf16.mxu0 %v592
        %656 = vmatpush1.bf16.msra.mxu0 %v591
        %657 = vmatprep.subr.bf16.mxu0 %v594
        %658 = vmatpush1.bf16.msra.mxu0 %v593
        %659 = vmatprep.subr.bf16.mxu0 %v596
        %660 = vmatpush1.bf16.msra.mxu0 %v595
        %661 = vmatprep.subr.bf16.mxu0 %v598
        %662 = vmatpush1.bf16.msra.mxu0 %v597
        %663 = vmatprep.subr.bf16.mxu0 %v600
        %664 = vmatpush1.bf16.msra.mxu0 %v599
        %665 = vmatprep.subr.bf16.mxu0 %v602
        %666 = vmatpush1.bf16.msra.mxu0 %v601
        %667 = vmatprep.subr.bf16.mxu0 %v604
        %668 = vmatpush1.bf16.msra.mxu0 %v603
        %669 = vmatprep.mubr.bf16.mxu0 %v446
        %670 = vmatmul.mubr.bf16.gmra.mrb[0].mxu0 %v445
        %v671 = vpop.f32.mrb[0].mxu0
        %v672 = vadd.f32 0.0, %v671
        %v673 = vpop.f32.mrb[0].mxu0
        %v674 = vadd.f32 0.0, %v673
        %v675 = vpop.f32.mrb[0].mxu0
        %v676 = vadd.f32 0.0, %v675
        %v677 = vpop.f32.mrb[0].mxu0
        %v678 = vadd.f32 0.0, %v677
        %679 = vmatprep.mubr.bf16.mxu0 %v448
        %680 = vmatmul.mubr.bf16.gmra.mrb[0].mxu0 %v447
        %v681 = vpop.f32.mrb[0].mxu0
        %v682 = vadd.f32 0.0, %v681
        %v683 = vpop.f32.mrb[0].mxu0
        %v684 = vadd.f32 0.0, %v683
        %v685 = vpop.f32.mrb[0].mxu0
        %v686 = vadd.f32 0.0, %v685
        %v687 = vpop.f32.mrb[0].mxu0
        %v688 = vadd.f32 0.0, %v687
        %689 = vmatprep.mubr.bf16.mxu0 %v450
        %690 = vmatmul.mubr.bf16.gmra.mrb[0].mxu0 %v449
        %v691 = vpop.f32.mrb[0].mxu0
        %v692 = vadd.f32 0.0, %v691
        %v693 = vpop.f32.mrb[0].mxu0
        %v694 = vadd.f32 0.0, %v693
        %v695 = vpop.f32.mrb[0].mxu0
        %v696 = vadd.f32 0.0, %v695
        %v697 = vpop.f32.mrb[0].mxu0
        %v698 = vadd.f32 0.0, %v697
        %699 = vmatprep.mubr.bf16.mxu0 %v452
        %700 = vmatmul.mubr.bf16.gmra.mrb[0].mxu0 %v451
        %v701 = vpop.f32.mrb[0].mxu0
        %v702 = vadd.f32 0.0, %v701
        %v703 = vpop.f32.mrb[0].mxu0
        %v704 = vadd.f32 0.0, %v703
        %v705 = vpop.f32.mrb[0].mxu0
        %v706 = vadd.f32 0.0, %v705
        %v707 = vpop.f32.mrb[0].mxu0
        %v708 = vadd.f32 0.0, %v707
        %709 = vmatprep.mubr.bf16.mxu0 %v454
        %710 = vmatmul.mubr.bf16.gmra.mrb[0].mxu0 %v453
        %v711 = vpop.f32.mrb[0].mxu0
        %v712 = vadd.f32 0.0, %v711
        %v713 = vpop.f32.mrb[0].mxu0
        %v714 = vadd.f32 0.0, %v713
        %v715 = vpop.f32.mrb[0].mxu0
        %v716 = vadd.f32 0.0, %v715
        %v717 = vpop.f32.mrb[0].mxu0
        %v718 = vadd.f32 0.0, %v717
        %719 = vmatprep.mubr.bf16.mxu0 %v456
        %720 = vmatmul.mubr.bf16.gmra.mrb[0].mxu0 %v455
        %v721 = vpop.f32.mrb[0].mxu0
        %v722 = vadd.f32 0.0, %v721
        %v723 = vpop.f32.mrb[0].mxu0
        %v724 = vadd.f32 0.0, %v723
        %v725 = vpop.f32.mrb[0].mxu0
        %v726 = vadd.f32 0.0, %v725
        %v727 = vpop.f32.mrb[0].mxu0
        %v728 = vadd.f32 0.0, %v727
        %729 = vmatprep.mubr.bf16.mxu0 %v458
        %730 = vmatmul.mubr.bf16.gmra.mrb[0].mxu0 %v457
        %v731 = vpop.f32.mrb[0].mxu0
        %v732 = vadd.f32 0.0, %v731
        %v733 = vpop.f32.mrb[0].mxu0
        %v734 = vadd.f32 0.0, %v733
        %v735 = vpop.f32.mrb[0].mxu0
        %v736 = vadd.f32 0.0, %v735
        %v737 = vpop.f32.mrb[0].mxu0
        %v738 = vadd.f32 0.0, %v737
        %739 = vmatprep.mubr.bf16.mxu0 %v460
        %740 = vmatmul.mubr.bf16.gmra.mrb[0].mxu0 %v459
        %v741 = vpop.f32.mrb[0].mxu0
        %v742 = vadd.f32 0.0, %v741
        %v743 = vpop.f32.mrb[0].mxu0
        %v744 = vadd.f32 0.0, %v743
        %v745 = vpop.f32.mrb[0].mxu0
        %v746 = vadd.f32 0.0, %v745
        %v747 = vpop.f32.mrb[0].mxu0
        %v748 = vadd.f32 0.0, %v747
        %749 = vmatprep.mubr.bf16.mxu0 %v462
        %750 = vmatmul.mubr.bf16.gmra.mrb[0].mxu0 %v461
        %v751 = vpop.f32.mrb[0].mxu0
        %v752 = vadd.f32 0.0, %v751
        %v753 = vpop.f32.mrb[0].mxu0
        %v754 = vadd.f32 0.0, %v753
        %v755 = vpop.f32.mrb[0].mxu0
        %v756 = vadd.f32 0.0, %v755
        %v757 = vpop.f32.mrb[0].mxu0
        %v758 = vadd.f32 0.0, %v757
        %759 = vmatprep.mubr.bf16.mxu0 %v464
        %760 = vmatmul.mubr.bf16.gmra.mrb[0].mxu0 %v463
        %v761 = vpop.f32.mrb[0].mxu0
        %v762 = vadd.f32 0.0, %v761
        %v763 = vpop.f32.mrb[0].mxu0
        %v764 = vadd.f32 0.0, %v763
        %v765 = vpop.f32.mrb[0].mxu0
        %v766 = vadd.f32 0.0, %v765
        %v767 = vpop.f32.mrb[0].mxu0
        %v768 = vadd.f32 0.0, %v767
        %769 = vmatprep.mubr.bf16.mxu0 %v466
        %770 = vmatmul.mubr.bf16.gmra.mrb[0].mxu0 %v465
        %v771 = vpop.f32.mrb[0].mxu0
        %v772 = vadd.f32 0.0, %v771
        %v773 = vpop.f32.mrb[0].mxu0
        %v774 = vadd.f32 0.0, %v773
        %v775 = vpop.f32.mrb[0].mxu0
        %v776 = vadd.f32 0.0, %v775
        %v777 = vpop.f32.mrb[0].mxu0
        %v778 = vadd.f32 0.0, %v777
        %779 = vmatprep.mubr.bf16.mxu0 %v468
        %780 = vmatmul.mubr.bf16.gmra.mrb[0].mxu0 %v467
        %v781 = vpop.f32.mrb[0].mxu0
        %v782 = vadd.f32 0.0, %v781
        %v783 = vpop.f32.mrb[0].mxu0
        %v784 = vadd.f32 0.0, %v783
        %v785 = vpop.f32.mrb[0].mxu0
        %v786 = vadd.f32 0.0, %v785
        %v787 = vpop.f32.mrb[0].mxu0
        %v788 = vadd.f32 0.0, %v787
        %789 = vmatprep.mubr.bf16.mxu0 %v470
        %790 = vmatmul.mubr.bf16.gmra.mrb[0].mxu0 %v469
        %v791 = vpop.f32.mrb[0].mxu0
        %v792 = vadd.f32 0.0, %v791
        %v793 = vpop.f32.mrb[0].mxu0
        %v794 = vadd.f32 0.0, %v793
        %v795 = vpop.f32.mrb[0].mxu0
        %v796 = vadd.f32 0.0, %v795
        %v797 = vpop.f32.mrb[0].mxu0
        %v798 = vadd.f32 0.0, %v797
        %799 = vmatprep.mubr.bf16.mxu0 %v472
        %800 = vmatmul.mubr.bf16.gmra.mrb[0].mxu0 %v471
        %v801 = vpop.f32.mrb[0].mxu0
        %v802 = vadd.f32 0.0, %v801
        %v803 = vpop.f32.mrb[0].mxu0
        %v804 = vadd.f32 0.0, %v803
        %v805 = vpop.f32.mrb[0].mxu0
        %v806 = vadd.f32 0.0, %v805
        %v807 = vpop.f32.mrb[0].mxu0
        %v808 = vadd.f32 0.0, %v807
        %809 = vmatprep.mubr.bf16.mxu0 %v474
        %810 = vmatmul.mubr.bf16.gmra.mrb[0].mxu0 %v473
        %v811 = vpop.f32.mrb[0].mxu0
        %v812 = vadd.f32 0.0, %v811
        %v813 = vpop.f32.mrb[0].mxu0
        %v814 = vadd.f32 0.0, %v813
        %v815 = vpop.f32.mrb[0].mxu0
        %v816 = vadd.f32 0.0, %v815
        %v817 = vpop.f32.mrb[0].mxu0
        %v818 = vadd.f32 0.0, %v817
        %819 = vmatprep.mubr.bf16.mxu0 %v476
        %820 = vmatmul.mubr.bf16.gmra.mrb[0].mxu0 %v475
        %v821 = vpop.f32.mrb[0].mxu0
        %v822 = vadd.f32 0.0, %v821
        %v823 = vpop.f32.mrb[0].mxu0
        %v824 = vadd.f32 0.0, %v823
        %v825 = vpop.f32.mrb[0].mxu0
        %v826 = vadd.f32 0.0, %v825
        %v827 = vpop.f32.mrb[0].mxu0
        %v828 = vadd.f32 0.0, %v827
        %829 = vdwg.mxu0
        %v830 = vpack.c.bf16 %v676, %v672
        %v831 = vpack.c.bf16 %v678, %v674
        %v832 = vpack.c.bf16 %v686, %v682
        %v833 = vpack.c.bf16 %v688, %v684
        %v834 = vpack.c.bf16 %v696, %v692
        %v835 = vpack.c.bf16 %v698, %v694
        %v836 = vpack.c.bf16 %v706, %v702
        %v837 = vpack.c.bf16 %v708, %v704
        %v838 = vpack.c.bf16 %v716, %v712
        %v839 = vpack.c.bf16 %v718, %v714
        %v840 = vpack.c.bf16 %v726, %v722
        %v841 = vpack.c.bf16 %v728, %v724
        %v842 = vpack.c.bf16 %v736, %v732
        %v843 = vpack.c.bf16 %v738, %v734
        %v844 = vpack.c.bf16 %v746, %v742
        %v845 = vpack.c.bf16 %v748, %v744
        %v846 = vpack.c.bf16 %v756, %v752
        %v847 = vpack.c.bf16 %v758, %v754
        %v848 = vpack.c.bf16 %v766, %v762
        %v849 = vpack.c.bf16 %v768, %v764
        %v850 = vpack.c.bf16 %v776, %v772
        %v851 = vpack.c.bf16 %v778, %v774
        %v852 = vpack.c.bf16 %v786, %v782
        %v853 = vpack.c.bf16 %v788, %v784
        %v854 = vpack.c.bf16 %v796, %v792
        %v855 = vpack.c.bf16 %v798, %v794
        %v856 = vpack.c.bf16 %v806, %v802
        %v857 = vpack.c.bf16 %v808, %v804
        %v858 = vpack.c.bf16 %v816, %v812
        %v859 = vpack.c.bf16 %v818, %v814
        %v860 = vpack.c.bf16 %v826, %v822
        %v861 = vpack.c.bf16 %v828, %v824
        %v894 = vunpack.c.l.b16 %v317
        %v895 = vunpack.c.h.b16 %v317
        %v896 = vunpack.c.l.b16 %v318
        %v897 = vunpack.c.h.b16 %v318
        %v898 = vunpack.c.l.b16 %v319
        %v899 = vunpack.c.h.b16 %v319
        %v900 = vunpack.c.l.b16 %v320
        %v901 = vunpack.c.h.b16 %v320
        %v902 = vunpack.c.l.b16 %v321
        %v903 = vunpack.c.h.b16 %v321
        %v904 = vunpack.c.l.b16 %v322
        %v905 = vunpack.c.h.b16 %v322
        %v906 = vunpack.c.l.b16 %v323
        %v907 = vunpack.c.h.b16 %v323
        %v908 = vunpack.c.l.b16 %v324
        %v909 = vunpack.c.h.b16 %v324
        %v910 = vunpack.c.l.b16 %v325
        %v911 = vunpack.c.h.b16 %v325
        %v912 = vunpack.c.l.b16 %v326
        %v913 = vunpack.c.h.b16 %v326
        %v914 = vunpack.c.l.b16 %v327
        %v915 = vunpack.c.h.b16 %v327
        %v916 = vunpack.c.l.b16 %v328
        %v917 = vunpack.c.h.b16 %v328
        %v918 = vunpack.c.l.b16 %v329
        %v919 = vunpack.c.h.b16 %v329
        %v920 = vunpack.c.l.b16 %v330
        %v921 = vunpack.c.h.b16 %v330
        %v922 = vunpack.c.l.b16 %v331
        %v923 = vunpack.c.h.b16 %v331
        %v924 = vunpack.c.l.b16 %v332
        %v925 = vunpack.c.h.b16 %v332
        %v926 = vunpack.c.l.b16 %v333
        %v927 = vunpack.c.h.b16 %v333
        %v928 = vunpack.c.l.b16 %v334
        %v929 = vunpack.c.h.b16 %v334
        %v930 = vunpack.c.l.b16 %v335
        %v931 = vunpack.c.h.b16 %v335
        %v932 = vunpack.c.l.b16 %v336
        %v933 = vunpack.c.h.b16 %v336
        %v934 = vunpack.c.l.b16 %v337
        %v935 = vunpack.c.h.b16 %v337
        %v936 = vunpack.c.l.b16 %v338
        %v937 = vunpack.c.h.b16 %v338
        %v938 = vunpack.c.l.b16 %v339
        %v939 = vunpack.c.h.b16 %v339
        %v940 = vunpack.c.l.b16 %v340
        %v941 = vunpack.c.h.b16 %v340
        %v942 = vunpack.c.l.b16 %v341
        %v943 = vunpack.c.h.b16 %v341
        %v944 = vunpack.c.l.b16 %v342
        %v945 = vunpack.c.h.b16 %v342
        %v946 = vunpack.c.l.b16 %v343
        %v947 = vunpack.c.h.b16 %v343
        %v948 = vunpack.c.l.b16 %v344
        %v949 = vunpack.c.h.b16 %v344
        %v950 = vunpack.c.l.b16 %v345
        %v951 = vunpack.c.h.b16 %v345
        %v952 = vunpack.c.l.b16 %v346
        %v953 = vunpack.c.h.b16 %v346
        %v954 = vunpack.c.l.b16 %v347
        %v955 = vunpack.c.h.b16 %v347
        %v956 = vunpack.c.l.b16 %v348
        %v957 = vunpack.c.h.b16 %v348
        %v958 = vpack.c.b16 %v896, %v894
        %v959 = vpack.c.b16 %v897, %v895
        %v960 = vpack.c.b16 %v900, %v898
        %v961 = vpack.c.b16 %v901, %v899
        %v962 = vpack.c.b16 %v904, %v902
        %v963 = vpack.c.b16 %v905, %v903
        %v964 = vpack.c.b16 %v908, %v906
        %v965 = vpack.c.b16 %v909, %v907
        %v966 = vpack.c.b16 %v912, %v910
        %v967 = vpack.c.b16 %v913, %v911
        %v968 = vpack.c.b16 %v916, %v914
        %v969 = vpack.c.b16 %v917, %v915
        %v970 = vpack.c.b16 %v920, %v918
        %v971 = vpack.c.b16 %v921, %v919
        %v972 = vpack.c.b16 %v924, %v922
        %v973 = vpack.c.b16 %v925, %v923
        %v974 = vpack.c.b16 %v928, %v926
        %v975 = vpack.c.b16 %v929, %v927
        %v976 = vpack.c.b16 %v932, %v930
        %v977 = vpack.c.b16 %v933, %v931
        %v978 = vpack.c.b16 %v936, %v934
        %v979 = vpack.c.b16 %v937, %v935
        %v980 = vpack.c.b16 %v940, %v938
        %v981 = vpack.c.b16 %v941, %v939
        %v982 = vpack.c.b16 %v944, %v942
        %v983 = vpack.c.b16 %v945, %v943
        %v984 = vpack.c.b16 %v948, %v946
        %v985 = vpack.c.b16 %v949, %v947
        %v986 = vpack.c.b16 %v952, %v950
        %v987 = vpack.c.b16 %v953, %v951
        %v988 = vpack.c.b16 %v956, %v954
        %v989 = vpack.c.b16 %v957, %v955
        %1022 = vmatprep.subr.bf16.mxu0 %v831
        %1023 = vmatpush1.bf16.msra.mxu0 %v830
        %1024 = vmatprep.subr.bf16.mxu0 %v833
        %1025 = vmatpush1.bf16.msra.mxu0 %v832
        %1026 = vmatprep.subr.bf16.mxu0 %v835
        %1027 = vmatpush1.bf16.msra.mxu0 %v834
        %1028 = vmatprep.subr.bf16.mxu0 %v837
        %1029 = vmatpush1.bf16.msra.mxu0 %v836
        %1030 = vmatprep.subr.bf16.mxu0 %v839
        %1031 = vmatpush1.bf16.msra.mxu0 %v838
        %1032 = vmatprep.subr.bf16.mxu0 %v841
        %1033 = vmatpush1.bf16.msra.mxu0 %v840
        %1034 = vmatprep.subr.bf16.mxu0 %v843
        %1035 = vmatpush1.bf16.msra.mxu0 %v842
        %1036 = vmatprep.subr.bf16.mxu0 %v845
        %1037 = vmatpush1.bf16.msra.mxu0 %v844
        %1038 = vmatprep.subr.bf16.mxu0 %v847
        %1039 = vmatpush1.bf16.msra.mxu0 %v846
        %1040 = vmatprep.subr.bf16.mxu0 %v849
        %1041 = vmatpush1.bf16.msra.mxu0 %v848
        %1042 = vmatprep.subr.bf16.mxu0 %v851
        %1043 = vmatpush1.bf16.msra.mxu0 %v850
        %1044 = vmatprep.subr.bf16.mxu0 %v853
        %1045 = vmatpush1.bf16.msra.mxu0 %v852
        %1046 = vmatprep.subr.bf16.mxu0 %v855
        %1047 = vmatpush1.bf16.msra.mxu0 %v854
        %1048 = vmatprep.subr.bf16.mxu0 %v857
        %1049 = vmatpush1.bf16.msra.mxu0 %v856
        %1050 = vmatprep.subr.bf16.mxu0 %v859
        %1051 = vmatpush1.bf16.msra.mxu0 %v858
        %1052 = vmatprep.subr.bf16.mxu0 %v861
        %1053 = vmatpush1.bf16.msra.mxu0 %v860
        %1054 = vmatprep.mubr.bf16.mxu0 %v959
        %1055 = vmatmul.mubr.bf16.gmra.mrb[0].mxu0 %v958
        %v1056 = vpop.f32.mrb[0].mxu0
        %v1057 = vadd.f32 0.0, %v1056
        %v1058 = vpop.f32.mrb[0].mxu0
        %v1059 = vadd.f32 0.0, %v1058
        %v1060 = vpop.f32.mrb[0].mxu0
        %v1061 = vadd.f32 0.0, %v1060
        %v1062 = vpop.f32.mrb[0].mxu0
        %v1063 = vadd.f32 0.0, %v1062
        %1064 = vmatprep.mubr.bf16.mxu0 %v961
        %1065 = vmatmul.mubr.bf16.gmra.mrb[0].mxu0 %v960
        %v1066 = vpop.f32.mrb[0].mxu0
        %v1067 = vadd.f32 0.0, %v1066
        %v1068 = vpop.f32.mrb[0].mxu0
        %v1069 = vadd.f32 0.0, %v1068
        %v1070 = vpop.f32.mrb[0].mxu0
        %v1071 = vadd.f32 0.0, %v1070
        %v1072 = vpop.f32.mrb[0].mxu0
        %v1073 = vadd.f32 0.0, %v1072
        %1074 = vmatprep.mubr.bf16.mxu0 %v963
        %1075 = vmatmul.mubr.bf16.gmra.mrb[0].mxu0 %v962
        %v1076 = vpop.f32.mrb[0].mxu0
        %v1077 = vadd.f32 0.0, %v1076
        %v1078 = vpop.f32.mrb[0].mxu0
        %v1079 = vadd.f32 0.0, %v1078
        %v1080 = vpop.f32.mrb[0].mxu0
        %v1081 = vadd.f32 0.0, %v1080
        %v1082 = vpop.f32.mrb[0].mxu0
        %v1083 = vadd.f32 0.0, %v1082
        %1084 = vmatprep.mubr.bf16.mxu0 %v965
        %1085 = vmatmul.mubr.bf16.gmra.mrb[0].mxu0 %v964
        %v1086 = vpop.f32.mrb[0].mxu0
        %v1087 = vadd.f32 0.0, %v1086
        %v1088 = vpop.f32.mrb[0].mxu0
        %v1089 = vadd.f32 0.0, %v1088
        %v1090 = vpop.f32.mrb[0].mxu0
        %v1091 = vadd.f32 0.0, %v1090
        %v1092 = vpop.f32.mrb[0].mxu0
        %v1093 = vadd.f32 0.0, %v1092
        %1094 = vmatprep.mubr.bf16.mxu0 %v967
        %1095 = vmatmul.mubr.bf16.gmra.mrb[0].mxu0 %v966
        %v1096 = vpop.f32.mrb[0].mxu0
        %v1097 = vadd.f32 0.0, %v1096
        %v1098 = vpop.f32.mrb[0].mxu0
        %v1099 = vadd.f32 0.0, %v1098
        %v1100 = vpop.f32.mrb[0].mxu0
        %v1101 = vadd.f32 0.0, %v1100
        %v1102 = vpop.f32.mrb[0].mxu0
        %v1103 = vadd.f32 0.0, %v1102
        %1104 = vmatprep.mubr.bf16.mxu0 %v969
        %1105 = vmatmul.mubr.bf16.gmra.mrb[0].mxu0 %v968
        %v1106 = vpop.f32.mrb[0].mxu0
        %v1107 = vadd.f32 0.0, %v1106
        %v1108 = vpop.f32.mrb[0].mxu0
        %v1109 = vadd.f32 0.0, %v1108
        %v1110 = vpop.f32.mrb[0].mxu0
        %v1111 = vadd.f32 0.0, %v1110
        %v1112 = vpop.f32.mrb[0].mxu0
        %v1113 = vadd.f32 0.0, %v1112
        %1114 = vmatprep.mubr.bf16.mxu0 %v971
        %1115 = vmatmul.mubr.bf16.gmra.mrb[0].mxu0 %v970
        %v1116 = vpop.f32.mrb[0].mxu0
        %v1117 = vadd.f32 0.0, %v1116
        %v1118 = vpop.f32.mrb[0].mxu0
        %v1119 = vadd.f32 0.0, %v1118
        %v1120 = vpop.f32.mrb[0].mxu0
        %v1121 = vadd.f32 0.0, %v1120
        %v1122 = vpop.f32.mrb[0].mxu0
        %v1123 = vadd.f32 0.0, %v1122
        %1124 = vmatprep.mubr.bf16.mxu0 %v973
        %1125 = vmatmul.mubr.bf16.gmra.mrb[0].mxu0 %v972
        %v1126 = vpop.f32.mrb[0].mxu0
        %v1127 = vadd.f32 0.0, %v1126
        %v1128 = vpop.f32.mrb[0].mxu0
        %v1129 = vadd.f32 0.0, %v1128
        %v1130 = vpop.f32.mrb[0].mxu0
        %v1131 = vadd.f32 0.0, %v1130
        %v1132 = vpop.f32.mrb[0].mxu0
        %v1133 = vadd.f32 0.0, %v1132
        %1134 = vmatprep.mubr.bf16.mxu0 %v975
        %1135 = vmatmul.mubr.bf16.gmra.mrb[0].mxu0 %v974
        %v1136 = vpop.f32.mrb[0].mxu0
        %v1137 = vadd.f32 0.0, %v1136
        %v1138 = vpop.f32.mrb[0].mxu0
        %v1139 = vadd.f32 0.0, %v1138
        %v1140 = vpop.f32.mrb[0].mxu0
        %v1141 = vadd.f32 0.0, %v1140
        %v1142 = vpop.f32.mrb[0].mxu0
        %v1143 = vadd.f32 0.0, %v1142
        %1144 = vmatprep.mubr.bf16.mxu0 %v977
        %1145 = vmatmul.mubr.bf16.gmra.mrb[0].mxu0 %v976
        %v1146 = vpop.f32.mrb[0].mxu0
        %v1147 = vadd.f32 0.0, %v1146
        %v1148 = vpop.f32.mrb[0].mxu0
        %v1149 = vadd.f32 0.0, %v1148
        %v1150 = vpop.f32.mrb[0].mxu0
        %v1151 = vadd.f32 0.0, %v1150
        %v1152 = vpop.f32.mrb[0].mxu0
        %v1153 = vadd.f32 0.0, %v1152
        %1154 = vmatprep.mubr.bf16.mxu0 %v979
        %1155 = vmatmul.mubr.bf16.gmra.mrb[0].mxu0 %v978
        %v1156 = vpop.f32.mrb[0].mxu0
        %v1157 = vadd.f32 0.0, %v1156
        %v1158 = vpop.f32.mrb[0].mxu0
        %v1159 = vadd.f32 0.0, %v1158
        %v1160 = vpop.f32.mrb[0].mxu0
        %v1161 = vadd.f32 0.0, %v1160
        %v1162 = vpop.f32.mrb[0].mxu0
        %v1163 = vadd.f32 0.0, %v1162
        %1164 = vmatprep.mubr.bf16.mxu0 %v981
        %1165 = vmatmul.mubr.bf16.gmra.mrb[0].mxu0 %v980
        %v1166 = vpop.f32.mrb[0].mxu0
        %v1167 = vadd.f32 0.0, %v1166
        %v1168 = vpop.f32.mrb[0].mxu0
        %v1169 = vadd.f32 0.0, %v1168
        %v1170 = vpop.f32.mrb[0].mxu0
        %v1171 = vadd.f32 0.0, %v1170
        %v1172 = vpop.f32.mrb[0].mxu0
        %v1173 = vadd.f32 0.0, %v1172
        %1174 = vmatprep.mubr.bf16.mxu0 %v983
        %1175 = vmatmul.mubr.bf16.gmra.mrb[0].mxu0 %v982
        %v1176 = vpop.f32.mrb[0].mxu0
        %v1177 = vadd.f32 0.0, %v1176
        %v1178 = vpop.f32.mrb[0].mxu0
        %v1179 = vadd.f32 0.0, %v1178
        %v1180 = vpop.f32.mrb[0].mxu0
        %v1181 = vadd.f32 0.0, %v1180
        %v1182 = vpop.f32.mrb[0].mxu0
        %v1183 = vadd.f32 0.0, %v1182
        %1184 = vmatprep.mubr.bf16.mxu0 %v985
        %1185 = vmatmul.mubr.bf16.gmra.mrb[0].mxu0 %v984
        %v1186 = vpop.f32.mrb[0].mxu0
        %v1187 = vadd.f32 0.0, %v1186
        %v1188 = vpop.f32.mrb[0].mxu0
        %v1189 = vadd.f32 0.0, %v1188
        %v1190 = vpop.f32.mrb[0].mxu0
        %v1191 = vadd.f32 0.0, %v1190
        %v1192 = vpop.f32.mrb[0].mxu0
        %v1193 = vadd.f32 0.0, %v1192
        %1194 = vmatprep.mubr.bf16.mxu0 %v987
        %1195 = vmatmul.mubr.bf16.gmra.mrb[0].mxu0 %v986
        %v1196 = vpop.f32.mrb[0].mxu0
        %v1197 = vadd.f32 0.0, %v1196
        %v1198 = vpop.f32.mrb[0].mxu0
        %v1199 = vadd.f32 0.0, %v1198
        %v1200 = vpop.f32.mrb[0].mxu0
        %v1201 = vadd.f32 0.0, %v1200
        %v1202 = vpop.f32.mrb[0].mxu0
        %v1203 = vadd.f32 0.0, %v1202
        %1204 = vmatprep.mubr.bf16.mxu0 %v989
        %1205 = vmatmul.mubr.bf16.gmra.mrb[0].mxu0 %v988
        %v1206 = vpop.f32.mrb[0].mxu0
        %v1207 = vadd.f32 0.0, %v1206
        %v1208 = vpop.f32.mrb[0].mxu0
        %v1209 = vadd.f32 0.0, %v1208
        %v1210 = vpop.f32.mrb[0].mxu0
        %v1211 = vadd.f32 0.0, %v1210
        %v1212 = vpop.f32.mrb[0].mxu0
        %v1213 = vadd.f32 0.0, %v1212
        %1214 = vdwg.mxu0
        %v1215 = vld [vmem:[#allocation8] sm:$0xff]
        %v1216 = vld [vmem:[#allocation8 + $0x8] sm:$0xff]
        %v1217 = vld [vmem:[#allocation8 + $0x10] sm:$0xff]
        %v1218 = vld [vmem:[#allocation8 + $0x18] sm:$0xff]
        %v1219 = vld [vmem:[#allocation8 + $0x20] sm:$0xff]
        %v1220 = vld [vmem:[#allocation8 + $0x28] sm:$0xff]
        %v1221 = vld [vmem:[#allocation8 + $0x30] sm:$0xff]
        %v1222 = vld [vmem:[#allocation8 + $0x38] sm:$0xff]
        %v1223 = vld [vmem:[#allocation8 + $0x40] sm:$0xff]
        %v1224 = vld [vmem:[#allocation8 + $0x48] sm:$0xff]
        %v1225 = vld [vmem:[#allocation8 + $0x50] sm:$0xff]
        %v1226 = vld [vmem:[#allocation8 + $0x58] sm:$0xff]
        %v1227 = vld [vmem:[#allocation8 + $0x60] sm:$0xff]
        %v1228 = vld [vmem:[#allocation8 + $0x68] sm:$0xff]
        %v1229 = vld [vmem:[#allocation8 + $0x70] sm:$0xff]
        %v1230 = vld [vmem:[#allocation8 + $0x78] sm:$0xff]
        %v1231 = vld [vmem:[#allocation8 + $0x80] sm:$0xff]
        %v1232 = vld [vmem:[#allocation8 + $0x88] sm:$0xff]
        %v1233 = vld [vmem:[#allocation8 + $0x90] sm:$0xff]
        %v1234 = vld [vmem:[#allocation8 + $0x98] sm:$0xff]
        %v1235 = vld [vmem:[#allocation8 + $0xa0] sm:$0xff]
        %v1236 = vld [vmem:[#allocation8 + $0xa8] sm:$0xff]
        %v1237 = vld [vmem:[#allocation8 + $0xb0] sm:$0xff]
        %v1238 = vld [vmem:[#allocation8 + $0xb8] sm:$0xff]
        %v1239 = vld [vmem:[#allocation8 + $0xc0] sm:$0xff]
        %v1240 = vld [vmem:[#allocation8 + $0xc8] sm:$0xff]
        %v1241 = vld [vmem:[#allocation8 + $0xd0] sm:$0xff]
        %v1242 = vld [vmem:[#allocation8 + $0xd8] sm:$0xff]
        %v1243 = vld [vmem:[#allocation8 + $0xe0] sm:$0xff]
        %v1244 = vld [vmem:[#allocation8 + $0xe8] sm:$0xff]
        %v1245 = vld [vmem:[#allocation8 + $0xf0] sm:$0xff]
        %v1246 = vld [vmem:[#allocation8 + $0xf8] sm:$0xff]
        %v1247 = vld [vmem:[#allocation8 + $0x100] sm:$0xff]
        %v1248 = vld [vmem:[#allocation8 + $0x108] sm:$0xff]
        %v1249 = vld [vmem:[#allocation8 + $0x110] sm:$0xff]
        %v1250 = vld [vmem:[#allocation8 + $0x118] sm:$0xff]
        %v1251 = vld [vmem:[#allocation8 + $0x120] sm:$0xff]
        %v1252 = vld [vmem:[#allocation8 + $0x128] sm:$0xff]
        %v1253 = vld [vmem:[#allocation8 + $0x130] sm:$0xff]
        %v1254 = vld [vmem:[#allocation8 + $0x138] sm:$0xff]
        %v1255 = vld [vmem:[#allocation8 + $0x140] sm:$0xff]
        %v1256 = vld [vmem:[#allocation8 + $0x148] sm:$0xff]
        %v1257 = vld [vmem:[#allocation8 + $0x150] sm:$0xff]
        %v1258 = vld [vmem:[#allocation8 + $0x158] sm:$0xff]
        %v1259 = vld [vmem:[#allocation8 + $0x160] sm:$0xff]
        %v1260 = vld [vmem:[#allocation8 + $0x168] sm:$0xff]
        %v1261 = vld [vmem:[#allocation8 + $0x170] sm:$0xff]
        %v1262 = vld [vmem:[#allocation8 + $0x178] sm:$0xff]
        %v1263 = vld [vmem:[#allocation8 + $0x180] sm:$0xff]
        %v1264 = vld [vmem:[#allocation8 + $0x188] sm:$0xff]
        %v1265 = vld [vmem:[#allocation8 + $0x190] sm:$0xff]
        %v1266 = vld [vmem:[#allocation8 + $0x198] sm:$0xff]
        %v1267 = vld [vmem:[#allocation8 + $0x1a0] sm:$0xff]
        %v1268 = vld [vmem:[#allocation8 + $0x1a8] sm:$0xff]
        %v1269 = vld [vmem:[#allocation8 + $0x1b0] sm:$0xff]
        %v1270 = vld [vmem:[#allocation8 + $0x1b8] sm:$0xff]
        %v1271 = vld [vmem:[#allocation8 + $0x1c0] sm:$0xff]
        %v1272 = vld [vmem:[#allocation8 + $0x1c8] sm:$0xff]
        %v1273 = vld [vmem:[#allocation8 + $0x1d0] sm:$0xff]
        %v1274 = vld [vmem:[#allocation8 + $0x1d8] sm:$0xff]
        %v1275 = vld [vmem:[#allocation8 + $0x1e0] sm:$0xff]
        %v1276 = vld [vmem:[#allocation8 + $0x1e8] sm:$0xff]
        %v1277 = vld [vmem:[#allocation8 + $0x1f0] sm:$0xff]
        %v1278 = vld [vmem:[#allocation8 + $0x1f8] sm:$0xff]
        %v1279 = vmul.f32 %v1057, %v1215
        %v1280 = vmul.f32 %v1059, %v1216
        %v1281 = vmul.f32 %v1061, %v1217
        %v1282 = vmul.f32 %v1063, %v1218
        %v1283 = vmul.f32 %v1067, %v1219
        %v1284 = vmul.f32 %v1069, %v1220
        %v1285 = vmul.f32 %v1071, %v1221
        %v1286 = vmul.f32 %v1073, %v1222
        %v1287 = vmul.f32 %v1077, %v1223
        %v1288 = vmul.f32 %v1079, %v1224
        %v1289 = vmul.f32 %v1081, %v1225
        %v1290 = vmul.f32 %v1083, %v1226
        %v1291 = vmul.f32 %v1087, %v1227
        %v1292 = vmul.f32 %v1089, %v1228
        %v1293 = vmul.f32 %v1091, %v1229
        %v1294 = vmul.f32 %v1093, %v1230
        %v1295 = vmul.f32 %v1097, %v1231
        %v1296 = vmul.f32 %v1099, %v1232
        %v1297 = vmul.f32 %v1101, %v1233
        %v1298 = vmul.f32 %v1103, %v1234
        %v1299 = vmul.f32 %v1107, %v1235
        %v1300 = vmul.f32 %v1109, %v1236
        %v1301 = vmul.f32 %v1111, %v1237
        %v1302 = vmul.f32 %v1113, %v1238
        %v1303 = vmul.f32 %v1117, %v1239
        %v1304 = vmul.f32 %v1119, %v1240
        %v1305 = vmul.f32 %v1121, %v1241
        %v1306 = vmul.f32 %v1123, %v1242
        %v1307 = vmul.f32 %v1127, %v1243
        %v1308 = vmul.f32 %v1129, %v1244
        %v1309 = vmul.f32 %v1131, %v1245
        %v1310 = vmul.f32 %v1133, %v1246
        %v1311 = vmul.f32 %v1137, %v1247
        %v1312 = vmul.f32 %v1139, %v1248
        %v1313 = vmul.f32 %v1141, %v1249
        %v1314 = vmul.f32 %v1143, %v1250
        %v1315 = vmul.f32 %v1147, %v1251
        %v1316 = vmul.f32 %v1149, %v1252
        %v1317 = vmul.f32 %v1151, %v1253
        %v1318 = vmul.f32 %v1153, %v1254
        %v1319 = vmul.f32 %v1157, %v1255
        %v1320 = vmul.f32 %v1159, %v1256
        %v1321 = vmul.f32 %v1161, %v1257
        %v1322 = vmul.f32 %v1163, %v1258
        %v1323 = vmul.f32 %v1167, %v1259
        %v1324 = vmul.f32 %v1169, %v1260
        %v1325 = vmul.f32 %v1171, %v1261
        %v1326 = vmul.f32 %v1173, %v1262
        %v1327 = vmul.f32 %v1177, %v1263
        %v1328 = vmul.f32 %v1179, %v1264
        %v1329 = vmul.f32 %v1181, %v1265
        %v1330 = vmul.f32 %v1183, %v1266
        %v1331 = vmul.f32 %v1187, %v1267
        %v1332 = vmul.f32 %v1189, %v1268
        %v1333 = vmul.f32 %v1191, %v1269
        %v1334 = vmul.f32 %v1193, %v1270
        %v1335 = vmul.f32 %v1197, %v1271
        %v1336 = vmul.f32 %v1199, %v1272
        %v1337 = vmul.f32 %v1201, %v1273
        %v1338 = vmul.f32 %v1203, %v1274
        %v1339 = vmul.f32 %v1207, %v1275
        %v1340 = vmul.f32 %v1209, %v1276
        %v1341 = vmul.f32 %v1211, %v1277
        %v1342 = vmul.f32 %v1213, %v1278
        %v1343 = vpack.c.bf16 %v1281, %v1279
        %v1344 = vpack.c.bf16 %v1282, %v1280
        %v1345 = vpack.c.bf16 %v1285, %v1283
        %v1346 = vpack.c.bf16 %v1286, %v1284
        %v1347 = vpack.c.bf16 %v1289, %v1287
        %v1348 = vpack.c.bf16 %v1290, %v1288
        %v1349 = vpack.c.bf16 %v1293, %v1291
        %v1350 = vpack.c.bf16 %v1294, %v1292
        %v1351 = vpack.c.bf16 %v1297, %v1295
        %v1352 = vpack.c.bf16 %v1298, %v1296
        %v1353 = vpack.c.bf16 %v1301, %v1299
        %v1354 = vpack.c.bf16 %v1302, %v1300
        %v1355 = vpack.c.bf16 %v1305, %v1303
        %v1356 = vpack.c.bf16 %v1306, %v1304
        %v1357 = vpack.c.bf16 %v1309, %v1307
        %v1358 = vpack.c.bf16 %v1310, %v1308
        %v1359 = vpack.c.bf16 %v1313, %v1311
        %v1360 = vpack.c.bf16 %v1314, %v1312
        %v1361 = vpack.c.bf16 %v1317, %v1315
        %v1362 = vpack.c.bf16 %v1318, %v1316
        %v1363 = vpack.c.bf16 %v1321, %v1319
        %v1364 = vpack.c.bf16 %v1322, %v1320
        %v1365 = vpack.c.bf16 %v1325, %v1323
        %v1366 = vpack.c.bf16 %v1326, %v1324
        %v1367 = vpack.c.bf16 %v1329, %v1327
        %v1368 = vpack.c.bf16 %v1330, %v1328
        %v1369 = vpack.c.bf16 %v1333, %v1331
        %v1370 = vpack.c.bf16 %v1334, %v1332
        %v1371 = vpack.c.bf16 %v1337, %v1335
        %v1372 = vpack.c.bf16 %v1338, %v1336
        %v1373 = vpack.c.bf16 %v1341, %v1339
        %v1374 = vpack.c.bf16 %v1342, %v1340
        %1375 = vst [vmem:[#allocation2] sm:$0xff] %v1343
        %1376 = vst [vmem:[#allocation2 + $0x8] sm:$0xff] %v1344
        %1377 = vst [vmem:[#allocation2 + $0x20] sm:$0xff] %v1345
        %1378 = vst [vmem:[#allocation2 + $0x28] sm:$0xff] %v1346
        %1379 = vst [vmem:[#allocation2 + $0x40] sm:$0xff] %v1347
        %1380 = vst [vmem:[#allocation2 + $0x48] sm:$0xff] %v1348
        %1381 = vst [vmem:[#allocation2 + $0x60] sm:$0xff] %v1349
        %1382 = vst [vmem:[#allocation2 + $0x68] sm:$0xff] %v1350
        %1383 = vst [vmem:[#allocation2 + $0x80] sm:$0xff] %v1351
        %1384 = vst [vmem:[#allocation2 + $0x88] sm:$0xff] %v1352
        %1385 = vst [vmem:[#allocation2 + $0xa0] sm:$0xff] %v1353
        %1386 = vst [vmem:[#allocation2 + $0xa8] sm:$0xff] %v1354
        %1387 = vst [vmem:[#allocation2 + $0xc0] sm:$0xff] %v1355
        %1388 = vst [vmem:[#allocation2 + $0xc8] sm:$0xff] %v1356
        %1389 = vst [vmem:[#allocation2 + $0xe0] sm:$0xff] %v1357
        %1390 = vst [vmem:[#allocation2 + $0xe8] sm:$0xff] %v1358
        %1391 = vst [vmem:[#allocation2 + $0x100] sm:$0xff] %v1359
        %1392 = vst [vmem:[#allocation2 + $0x108] sm:$0xff] %v1360
        %1393 = vst [vmem:[#allocation2 + $0x120] sm:$0xff] %v1361
        %1394 = vst [vmem:[#allocation2 + $0x128] sm:$0xff] %v1362
        %1395 = vst [vmem:[#allocation2 + $0x140] sm:$0xff] %v1363
        %1396 = vst [vmem:[#allocation2 + $0x148] sm:$0xff] %v1364
        %1397 = vst [vmem:[#allocation2 + $0x160] sm:$0xff] %v1365
        %1398 = vst [vmem:[#allocation2 + $0x168] sm:$0xff] %v1366
        %1399 = vst [vmem:[#allocation2 + $0x180] sm:$0xff] %v1367
        %1400 = vst [vmem:[#allocation2 + $0x188] sm:$0xff] %v1368
        %1401 = vst [vmem:[#allocation2 + $0x1a0] sm:$0xff] %v1369
        %1402 = vst [vmem:[#allocation2 + $0x1a8] sm:$0xff] %v1370
        %1403 = vst [vmem:[#allocation2 + $0x1c0] sm:$0xff] %v1371
        %1404 = vst [vmem:[#allocation2 + $0x1c8] sm:$0xff] %v1372
        %1405 = vst [vmem:[#allocation2 + $0x1e0] sm:$0xff] %v1373
        %1406 = vst [vmem:[#allocation2 + $0x1e8] sm:$0xff] %v1374
        %v1407 = vld [vmem:[#allocation9] sm:$0xff]
        %v1408 = vld [vmem:[#allocation9 + $0x8] sm:$0xff]
        %v1409 = vld [vmem:[#allocation9 + $0x10] sm:$0xff]
        %v1410 = vld [vmem:[#allocation9 + $0x18] sm:$0xff]
        %v1411 = vld [vmem:[#allocation9 + $0x20] sm:$0xff]
        %v1412 = vld [vmem:[#allocation9 + $0x28] sm:$0xff]
        %v1413 = vld [vmem:[#allocation9 + $0x30] sm:$0xff]
        %v1414 = vld [vmem:[#allocation9 + $0x38] sm:$0xff]
        %v1415 = vld [vmem:[#allocation9 + $0x40] sm:$0xff]
        %v1416 = vld [vmem:[#allocation9 + $0x48] sm:$0xff]
        %v1417 = vld [vmem:[#allocation9 + $0x50] sm:$0xff]
        %v1418 = vld [vmem:[#allocation9 + $0x58] sm:$0xff]
        %v1419 = vld [vmem:[#allocation9 + $0x60] sm:$0xff]
        %v1420 = vld [vmem:[#allocation9 + $0x68] sm:$0xff]
        %v1421 = vld [vmem:[#allocation9 + $0x70] sm:$0xff]
        %v1422 = vld [vmem:[#allocation9 + $0x78] sm:$0xff]
        %v1423 = vld [vmem:[#allocation9 + $0x80] sm:$0xff]
        %v1424 = vld [vmem:[#allocation9 + $0x88] sm:$0xff]
        %v1425 = vld [vmem:[#allocation9 + $0x90] sm:$0xff]
        %v1426 = vld [vmem:[#allocation9 + $0x98] sm:$0xff]
        %v1427 = vld [vmem:[#allocation9 + $0xa0] sm:$0xff]
        %v1428 = vld [vmem:[#allocation9 + $0xa8] sm:$0xff]
        %v1429 = vld [vmem:[#allocation9 + $0xb0] sm:$0xff]
        %v1430 = vld [vmem:[#allocation9 + $0xb8] sm:$0xff]
        %v1431 = vld [vmem:[#allocation9 + $0xc0] sm:$0xff]
        %v1432 = vld [vmem:[#allocation9 + $0xc8] sm:$0xff]
        %v1433 = vld [vmem:[#allocation9 + $0xd0] sm:$0xff]
        %v1434 = vld [vmem:[#allocation9 + $0xd8] sm:$0xff]
        %v1435 = vld [vmem:[#allocation9 + $0xe0] sm:$0xff]
        %v1436 = vld [vmem:[#allocation9 + $0xe8] sm:$0xff]
        %v1437 = vld [vmem:[#allocation9 + $0xf0] sm:$0xff]
        %v1438 = vld [vmem:[#allocation9 + $0xf8] sm:$0xff]
        %v1439 = vld [vmem:[#allocation9 + $0x100] sm:$0xff]
        %v1440 = vld [vmem:[#allocation9 + $0x108] sm:$0xff]
        %v1441 = vld [vmem:[#allocation9 + $0x110] sm:$0xff]
        %v1442 = vld [vmem:[#allocation9 + $0x118] sm:$0xff]
        %v1443 = vld [vmem:[#allocation9 + $0x120] sm:$0xff]
        %v1444 = vld [vmem:[#allocation9 + $0x128] sm:$0xff]
        %v1445 = vld [vmem:[#allocation9 + $0x130] sm:$0xff]
        %v1446 = vld [vmem:[#allocation9 + $0x138] sm:$0xff]
        %v1447 = vld [vmem:[#allocation9 + $0x140] sm:$0xff]
        %v1448 = vld [vmem:[#allocation9 + $0x148] sm:$0xff]
        %v1449 = vld [vmem:[#allocation9 + $0x150] sm:$0xff]
        %v1450 = vld [vmem:[#allocation9 + $0x158] sm:$0xff]
        %v1451 = vld [vmem:[#allocation9 + $0x160] sm:$0xff]
        %v1452 = vld [vmem:[#allocation9 + $0x168] sm:$0xff]
        %v1453 = vld [vmem:[#allocation9 + $0x170] sm:$0xff]
        %v1454 = vld [vmem:[#allocation9 + $0x178] sm:$0xff]
        %v1455 = vld [vmem:[#allocation9 + $0x180] sm:$0xff]
        %v1456 = vld [vmem:[#allocation9 + $0x188] sm:$0xff]
        %v1457 = vld [vmem:[#allocation9 + $0x190] sm:$0xff]
        %v1458 = vld [vmem:[#allocation9 + $0x198] sm:$0xff]
        %v1459 = vld [vmem:[#allocation9 + $0x1a0] sm:$0xff]
        %v1460 = vld [vmem:[#allocation9 + $0x1a8] sm:$0xff]
        %v1461 = vld [vmem:[#allocation9 + $0x1b0] sm:$0xff]
        %v1462 = vld [vmem:[#allocation9 + $0x1b8] sm:$0xff]
        %v1463 = vld [vmem:[#allocation9 + $0x1c0] sm:$0xff]
        %v1464 = vld [vmem:[#allocation9 + $0x1c8] sm:$0xff]
        %v1465 = vld [vmem:[#allocation9 + $0x1d0] sm:$0xff]
        %v1466 = vld [vmem:[#allocation9 + $0x1d8] sm:$0xff]
        %v1467 = vld [vmem:[#allocation9 + $0x1e0] sm:$0xff]
        %v1468 = vld [vmem:[#allocation9 + $0x1e8] sm:$0xff]
        %v1469 = vld [vmem:[#allocation9 + $0x1f0] sm:$0xff]
        %v1470 = vld [vmem:[#allocation9 + $0x1f8] sm:$0xff]
        %v1471 = vmul.f32 %v1057, %v1407
        %v1472 = vmul.f32 %v1059, %v1408
        %v1473 = vmul.f32 %v1061, %v1409
        %v1474 = vmul.f32 %v1063, %v1410
        %v1475 = vmul.f32 %v1067, %v1411
        %v1476 = vmul.f32 %v1069, %v1412
        %v1477 = vmul.f32 %v1071, %v1413
        %v1478 = vmul.f32 %v1073, %v1414
        %v1479 = vmul.f32 %v1077, %v1415
        %v1480 = vmul.f32 %v1079, %v1416
        %v1481 = vmul.f32 %v1081, %v1417
        %v1482 = vmul.f32 %v1083, %v1418
        %v1483 = vmul.f32 %v1087, %v1419
        %v1484 = vmul.f32 %v1089, %v1420
        %v1485 = vmul.f32 %v1091, %v1421
        %v1486 = vmul.f32 %v1093, %v1422
        %v1487 = vmul.f32 %v1097, %v1423
        %v1488 = vmul.f32 %v1099, %v1424
        %v1489 = vmul.f32 %v1101, %v1425
        %v1490 = vmul.f32 %v1103, %v1426
        %v1491 = vmul.f32 %v1107, %v1427
        %v1492 = vmul.f32 %v1109, %v1428
        %v1493 = vmul.f32 %v1111, %v1429
        %v1494 = vmul.f32 %v1113, %v1430
        %v1495 = vmul.f32 %v1117, %v1431
        %v1496 = vmul.f32 %v1119, %v1432
        %v1497 = vmul.f32 %v1121, %v1433
        %v1498 = vmul.f32 %v1123, %v1434
        %v1499 = vmul.f32 %v1127, %v1435
        %v1500 = vmul.f32 %v1129, %v1436
        %v1501 = vmul.f32 %v1131, %v1437
        %v1502 = vmul.f32 %v1133, %v1438
        %v1503 = vmul.f32 %v1137, %v1439
        %v1504 = vmul.f32 %v1139, %v1440
        %v1505 = vmul.f32 %v1141, %v1441
        %v1506 = vmul.f32 %v1143, %v1442
        %v1507 = vmul.f32 %v1147, %v1443
        %v1508 = vmul.f32 %v1149, %v1444
        %v1509 = vmul.f32 %v1151, %v1445
        %v1510 = vmul.f32 %v1153, %v1446
        %v1511 = vmul.f32 %v1157, %v1447
        %v1512 = vmul.f32 %v1159, %v1448
        %v1513 = vmul.f32 %v1161, %v1449
        %v1514 = vmul.f32 %v1163, %v1450
        %v1515 = vmul.f32 %v1167, %v1451
        %v1516 = vmul.f32 %v1169, %v1452
        %v1517 = vmul.f32 %v1171, %v1453
        %v1518 = vmul.f32 %v1173, %v1454
        %v1519 = vmul.f32 %v1177, %v1455
        %v1520 = vmul.f32 %v1179, %v1456
        %v1521 = vmul.f32 %v1181, %v1457
        %v1522 = vmul.f32 %v1183, %v1458
        %v1523 = vmul.f32 %v1187, %v1459
        %v1524 = vmul.f32 %v1189, %v1460
        %v1525 = vmul.f32 %v1191, %v1461
        %v1526 = vmul.f32 %v1193, %v1462
        %v1527 = vmul.f32 %v1197, %v1463
        %v1528 = vmul.f32 %v1199, %v1464
        %v1529 = vmul.f32 %v1201, %v1465
        %v1530 = vmul.f32 %v1203, %v1466
        %v1531 = vmul.f32 %v1207, %v1467
        %v1532 = vmul.f32 %v1209, %v1468
        %v1533 = vmul.f32 %v1211, %v1469
        %v1534 = vmul.f32 %v1213, %v1470
        %v1535 = vpack.c.bf16 %v1473, %v1471
        %v1536 = vpack.c.bf16 %v1474, %v1472
        %v1537 = vpack.c.bf16 %v1477, %v1475
        %v1538 = vpack.c.bf16 %v1478, %v1476
        %v1539 = vpack.c.bf16 %v1481, %v1479
        %v1540 = vpack.c.bf16 %v1482, %v1480
        %v1541 = vpack.c.bf16 %v1485, %v1483
        %v1542 = vpack.c.bf16 %v1486, %v1484
        %v1543 = vpack.c.bf16 %v1489, %v1487
        %v1544 = vpack.c.bf16 %v1490, %v1488
        %v1545 = vpack.c.bf16 %v1493, %v1491
        %v1546 = vpack.c.bf16 %v1494, %v1492
        %v1547 = vpack.c.bf16 %v1497, %v1495
        %v1548 = vpack.c.bf16 %v1498, %v1496
        %v1549 = vpack.c.bf16 %v1501, %v1499
        %v1550 = vpack.c.bf16 %v1502, %v1500
        %v1551 = vpack.c.bf16 %v1505, %v1503
        %v1552 = vpack.c.bf16 %v1506, %v1504
        %v1553 = vpack.c.bf16 %v1509, %v1507
        %v1554 = vpack.c.bf16 %v1510, %v1508
        %v1555 = vpack.c.bf16 %v1513, %v1511
        %v1556 = vpack.c.bf16 %v1514, %v1512
        %v1557 = vpack.c.bf16 %v1517, %v1515
        %v1558 = vpack.c.bf16 %v1518, %v1516
        %v1559 = vpack.c.bf16 %v1521, %v1519
        %v1560 = vpack.c.bf16 %v1522, %v1520
        %v1561 = vpack.c.bf16 %v1525, %v1523
        %v1562 = vpack.c.bf16 %v1526, %v1524
        %v1563 = vpack.c.bf16 %v1529, %v1527
        %v1564 = vpack.c.bf16 %v1530, %v1528
        %v1565 = vpack.c.bf16 %v1533, %v1531
        %v1566 = vpack.c.bf16 %v1534, %v1532
        %1567 = vst [vmem:[#allocation2 + $0x10] sm:$0xff] %v1535
        %1568 = vst [vmem:[#allocation2 + $0x18] sm:$0xff] %v1536
        %1569 = vst [vmem:[#allocation2 + $0x30] sm:$0xff] %v1537
        %1570 = vst [vmem:[#allocation2 + $0x38] sm:$0xff] %v1538
        %1571 = vst [vmem:[#allocation2 + $0x50] sm:$0xff] %v1539
        %1572 = vst [vmem:[#allocation2 + $0x58] sm:$0xff] %v1540
        %1573 = vst [vmem:[#allocation2 + $0x70] sm:$0xff] %v1541
        %1574 = vst [vmem:[#allocation2 + $0x78] sm:$0xff] %v1542
        %1575 = vst [vmem:[#allocation2 + $0x90] sm:$0xff] %v1543
        %1576 = vst [vmem:[#allocation2 + $0x98] sm:$0xff] %v1544
        %1577 = vst [vmem:[#allocation2 + $0xb0] sm:$0xff] %v1545
        %1578 = vst [vmem:[#allocation2 + $0xb8] sm:$0xff] %v1546
        %1579 = vst [vmem:[#allocation2 + $0xd0] sm:$0xff] %v1547
        %1580 = vst [vmem:[#allocation2 + $0xd8] sm:$0xff] %v1548
        %1581 = vst [vmem:[#allocation2 + $0xf0] sm:$0xff] %v1549
        %1582 = vst [vmem:[#allocation2 + $0xf8] sm:$0xff] %v1550
        %1583 = vst [vmem:[#allocation2 + $0x110] sm:$0xff] %v1551
        %1584 = vst [vmem:[#allocation2 + $0x118] sm:$0xff] %v1552
        %1585 = vst [vmem:[#allocation2 + $0x130] sm:$0xff] %v1553
        %1586 = vst [vmem:[#allocation2 + $0x138] sm:$0xff] %v1554
        %1587 = vst [vmem:[#allocation2 + $0x150] sm:$0xff] %v1555
        %1588 = vst [vmem:[#allocation2 + $0x158] sm:$0xff] %v1556
        %1589 = vst [vmem:[#allocation2 + $0x170] sm:$0xff] %v1557
        %1590 = vst [vmem:[#allocation2 + $0x178] sm:$0xff] %v1558
        %1591 = vst [vmem:[#allocation2 + $0x190] sm:$0xff] %v1559
        %1592 = vst [vmem:[#allocation2 + $0x198] sm:$0xff] %v1560
        %1593 = vst [vmem:[#allocation2 + $0x1b0] sm:$0xff] %v1561
        %1594 = vst [vmem:[#allocation2 + $0x1b8] sm:$0xff] %v1562
        %1595 = vst [vmem:[#allocation2 + $0x1d0] sm:$0xff] %v1563
        %1596 = vst [vmem:[#allocation2 + $0x1d8] sm:$0xff] %v1564
        %1597 = vst [vmem:[#allocation2 + $0x1f0] sm:$0xff] %v1565
        %1598 = vst [vmem:[#allocation2 + $0x1f8] sm:$0xff] %v1566
        %v1599 = vld [vmem:[#allocation2] sm:$0xff]
        %v1600 = vld [vmem:[#allocation2 + $0x8] sm:$0xff]
        %v1601 = vld [vmem:[#allocation2 + $0x10] sm:$0xff]
        %v1602 = vld [vmem:[#allocation2 + $0x18] sm:$0xff]
        %v1603 = vld [vmem:[#allocation2 + $0x20] sm:$0xff]
        %v1604 = vld [vmem:[#allocation2 + $0x28] sm:$0xff]
        %v1605 = vld [vmem:[#allocation2 + $0x30] sm:$0xff]
        %v1606 = vld [vmem:[#allocation2 + $0x38] sm:$0xff]
        %v1607 = vld [vmem:[#allocation2 + $0x40] sm:$0xff]
        %v1608 = vld [vmem:[#allocation2 + $0x48] sm:$0xff]
        %v1609 = vld [vmem:[#allocation2 + $0x50] sm:$0xff]
        %v1610 = vld [vmem:[#allocation2 + $0x58] sm:$0xff]
        %v1611 = vld [vmem:[#allocation2 + $0x60] sm:$0xff]
        %v1612 = vld [vmem:[#allocation2 + $0x68] sm:$0xff]
        %v1613 = vld [vmem:[#allocation2 + $0x70] sm:$0xff]
        %v1614 = vld [vmem:[#allocation2 + $0x78] sm:$0xff]
        %v1615 = vld [vmem:[#allocation2 + $0x80] sm:$0xff]
        %v1616 = vld [vmem:[#allocation2 + $0x88] sm:$0xff]
        %v1617 = vld [vmem:[#allocation2 + $0x90] sm:$0xff]
        %v1618 = vld [vmem:[#allocation2 + $0x98] sm:$0xff]
        %v1619 = vld [vmem:[#allocation2 + $0xa0] sm:$0xff]
        %v1620 = vld [vmem:[#allocation2 + $0xa8] sm:$0xff]
        %v1621 = vld [vmem:[#allocation2 + $0xb0] sm:$0xff]
        %v1622 = vld [vmem:[#allocation2 + $0xb8] sm:$0xff]
        %v1623 = vld [vmem:[#allocation2 + $0xc0] sm:$0xff]
        %v1624 = vld [vmem:[#allocation2 + $0xc8] sm:$0xff]
        %v1625 = vld [vmem:[#allocation2 + $0xd0] sm:$0xff]
        %v1626 = vld [vmem:[#allocation2 + $0xd8] sm:$0xff]
        %v1627 = vld [vmem:[#allocation2 + $0xe0] sm:$0xff]
        %v1628 = vld [vmem:[#allocation2 + $0xe8] sm:$0xff]
        %v1629 = vld [vmem:[#allocation2 + $0xf0] sm:$0xff]
        %v1630 = vld [vmem:[#allocation2 + $0xf8] sm:$0xff]
        %v1631 = vld [vmem:[#allocation2 + $0x100] sm:$0xff]
        %v1632 = vld [vmem:[#allocation2 + $0x108] sm:$0xff]
        %v1633 = vld [vmem:[#allocation2 + $0x110] sm:$0xff]
        %v1634 = vld [vmem:[#allocation2 + $0x118] sm:$0xff]
        %v1635 = vld [vmem:[#allocation2 + $0x120] sm:$0xff]
        %v1636 = vld [vmem:[#allocation2 + $0x128] sm:$0xff]
        %v1637 = vld [vmem:[#allocation2 + $0x130] sm:$0xff]
        %v1638 = vld [vmem:[#allocation2 + $0x138] sm:$0xff]
        %v1639 = vld [vmem:[#allocation2 + $0x140] sm:$0xff]
        %v1640 = vld [vmem:[#allocation2 + $0x148] sm:$0xff]
        %v1641 = vld [vmem:[#allocation2 + $0x150] sm:$0xff]
        %v1642 = vld [vmem:[#allocation2 + $0x158] sm:$0xff]
        %v1643 = vld [vmem:[#allocation2 + $0x160] sm:$0xff]
        %v1644 = vld [vmem:[#allocation2 + $0x168] sm:$0xff]
        %v1645 = vld [vmem:[#allocation2 + $0x170] sm:$0xff]
        %v1646 = vld [vmem:[#allocation2 + $0x178] sm:$0xff]
        %v1647 = vld [vmem:[#allocation2 + $0x180] sm:$0xff]
        %v1648 = vld [vmem:[#allocation2 + $0x188] sm:$0xff]
        %v1649 = vld [vmem:[#allocation2 + $0x190] sm:$0xff]
        %v1650 = vld [vmem:[#allocation2 + $0x198] sm:$0xff]
        %v1651 = vld [vmem:[#allocation2 + $0x1a0] sm:$0xff]
        %v1652 = vld [vmem:[#allocation2 + $0x1a8] sm:$0xff]
        %v1653 = vld [vmem:[#allocation2 + $0x1b0] sm:$0xff]
        %v1654 = vld [vmem:[#allocation2 + $0x1b8] sm:$0xff]
        %v1655 = vld [vmem:[#allocation2 + $0x1c0] sm:$0xff]
        %v1656 = vld [vmem:[#allocation2 + $0x1c8] sm:$0xff]
        %v1657 = vld [vmem:[#allocation2 + $0x1d0] sm:$0xff]
        %v1658 = vld [vmem:[#allocation2 + $0x1d8] sm:$0xff]
        %v1659 = vld [vmem:[#allocation2 + $0x1e0] sm:$0xff]
        %v1660 = vld [vmem:[#allocation2 + $0x1e8] sm:$0xff]
        %v1661 = vld [vmem:[#allocation2 + $0x1f0] sm:$0xff]
        %v1662 = vld [vmem:[#allocation2 + $0x1f8] sm:$0xff]
        %1663 = vmatprep.subr.bf16.mxu0 %v1600
        %1664 = vmatpush1.bf16.msra.mxu0 %v1599
        %1665 = vmatprep.subr.bf16.mxu0 %v1604
        %1666 = vmatpush1.bf16.msra.mxu0 %v1603
        %1667 = vmatprep.subr.bf16.mxu0 %v1608
        %1668 = vmatpush1.bf16.msra.mxu0 %v1607
        %1669 = vmatprep.subr.bf16.mxu0 %v1612
        %1670 = vmatpush1.bf16.msra.mxu0 %v1611
        %1671 = vmatprep.subr.bf16.mxu0 %v1616
        %1672 = vmatpush1.bf16.msra.mxu0 %v1615
        %1673 = vmatprep.subr.bf16.mxu0 %v1620
        %1674 = vmatpush1.bf16.msra.mxu0 %v1619
        %1675 = vmatprep.subr.bf16.mxu0 %v1624
        %1676 = vmatpush1.bf16.msra.mxu0 %v1623
        %1677 = vmatprep.subr.bf16.mxu0 %v1628
        %1678 = vmatpush1.bf16.msra.mxu0 %v1627
        %1679 = vmatprep.subr.bf16.mxu0 %v1632
        %1680 = vmatpush1.bf16.msra.mxu0 %v1631
        %1681 = vmatprep.subr.bf16.mxu0 %v1636
        %1682 = vmatpush1.bf16.msra.mxu0 %v1635
        %1683 = vmatprep.subr.bf16.mxu0 %v1640
        %1684 = vmatpush1.bf16.msra.mxu0 %v1639
        %1685 = vmatprep.subr.bf16.mxu0 %v1644
        %1686 = vmatpush1.bf16.msra.mxu0 %v1643
        %1687 = vmatprep.subr.bf16.mxu0 %v1648
        %1688 = vmatpush1.bf16.msra.mxu0 %v1647
        %1689 = vmatprep.subr.bf16.mxu0 %v1652
        %1690 = vmatpush1.bf16.msra.mxu0 %v1651
        %1691 = vmatprep.subr.bf16.mxu0 %v1656
        %1692 = vmatpush1.bf16.msra.mxu0 %v1655
        %1693 = vmatprep.subr.bf16.mxu0 %v1660
        %1694 = vmatpush1.bf16.msra.mxu0 %v1659
        %1695 = vmatprep.mubr.bf16.mxu0 %v574
        %1696 = vmatmul.mubr.bf16.gmra.mrb[0].mxu0 %v573
        %v1697 = vpop.f32.mrb[0].mxu0
        %v1698 = vadd.f32 0.0, %v1697
        %v1699 = vpop.f32.mrb[0].mxu0
        %v1700 = vadd.f32 0.0, %v1699
        %v1701 = vpop.f32.mrb[0].mxu0
        %v1702 = vadd.f32 0.0, %v1701
        %v1703 = vpop.f32.mrb[0].mxu0
        %v1704 = vadd.f32 0.0, %v1703
        %1705 = vmatprep.mubr.bf16.mxu0 %v576
        %1706 = vmatmul.mubr.bf16.gmra.mrb[0].mxu0 %v575
        %v1707 = vpop.f32.mrb[0].mxu0
        %v1708 = vadd.f32 0.0, %v1707
        %v1709 = vpop.f32.mrb[0].mxu0
        %v1710 = vadd.f32 0.0, %v1709
        %v1711 = vpop.f32.mrb[0].mxu0
        %v1712 = vadd.f32 0.0, %v1711
        %v1713 = vpop.f32.mrb[0].mxu0
        %v1714 = vadd.f32 0.0, %v1713
        %1715 = vmatprep.mubr.bf16.mxu0 %v578
        %1716 = vmatmul.mubr.bf16.gmra.mrb[0].mxu0 %v577
        %v1717 = vpop.f32.mrb[0].mxu0
        %v1718 = vadd.f32 0.0, %v1717
        %v1719 = vpop.f32.mrb[0].mxu0
        %v1720 = vadd.f32 0.0, %v1719
        %v1721 = vpop.f32.mrb[0].mxu0
        %v1722 = vadd.f32 0.0, %v1721
        %v1723 = vpop.f32.mrb[0].mxu0
        %v1724 = vadd.f32 0.0, %v1723
        %1725 = vmatprep.mubr.bf16.mxu0 %v580
        %1726 = vmatmul.mubr.bf16.gmra.mrb[0].mxu0 %v579
        %v1727 = vpop.f32.mrb[0].mxu0
        %v1728 = vadd.f32 0.0, %v1727
        %v1729 = vpop.f32.mrb[0].mxu0
        %v1730 = vadd.f32 0.0, %v1729
        %v1731 = vpop.f32.mrb[0].mxu0
        %v1732 = vadd.f32 0.0, %v1731
        %v1733 = vpop.f32.mrb[0].mxu0
        %v1734 = vadd.f32 0.0, %v1733
        %1735 = vmatprep.mubr.bf16.mxu0 %v582
        %1736 = vmatmul.mubr.bf16.gmra.mrb[0].mxu0 %v581
        %v1737 = vpop.f32.mrb[0].mxu0
        %v1738 = vadd.f32 0.0, %v1737
        %v1739 = vpop.f32.mrb[0].mxu0
        %v1740 = vadd.f32 0.0, %v1739
        %v1741 = vpop.f32.mrb[0].mxu0
        %v1742 = vadd.f32 0.0, %v1741
        %v1743 = vpop.f32.mrb[0].mxu0
        %v1744 = vadd.f32 0.0, %v1743
        %1745 = vmatprep.mubr.bf16.mxu0 %v584
        %1746 = vmatmul.mubr.bf16.gmra.mrb[0].mxu0 %v583
        %v1747 = vpop.f32.mrb[0].mxu0
        %v1748 = vadd.f32 0.0, %v1747
        %v1749 = vpop.f32.mrb[0].mxu0
        %v1750 = vadd.f32 0.0, %v1749
        %v1751 = vpop.f32.mrb[0].mxu0
        %v1752 = vadd.f32 0.0, %v1751
        %v1753 = vpop.f32.mrb[0].mxu0
        %v1754 = vadd.f32 0.0, %v1753
        %1755 = vmatprep.mubr.bf16.mxu0 %v586
        %1756 = vmatmul.mubr.bf16.gmra.mrb[0].mxu0 %v585
        %v1757 = vpop.f32.mrb[0].mxu0
        %v1758 = vadd.f32 0.0, %v1757
        %v1759 = vpop.f32.mrb[0].mxu0
        %v1760 = vadd.f32 0.0, %v1759
        %v1761 = vpop.f32.mrb[0].mxu0
        %v1762 = vadd.f32 0.0, %v1761
        %v1763 = vpop.f32.mrb[0].mxu0
        %v1764 = vadd.f32 0.0, %v1763
        %1765 = vmatprep.mubr.bf16.mxu0 %v588
        %1766 = vmatmul.mubr.bf16.gmra.mrb[0].mxu0 %v587
        %v1767 = vpop.f32.mrb[0].mxu0
        %v1768 = vadd.f32 0.0, %v1767
        %v1769 = vpop.f32.mrb[0].mxu0
        %v1770 = vadd.f32 0.0, %v1769
        %v1771 = vpop.f32.mrb[0].mxu0
        %v1772 = vadd.f32 0.0, %v1771
        %v1773 = vpop.f32.mrb[0].mxu0
        %v1774 = vadd.f32 0.0, %v1773
        %1775 = vmatprep.mubr.bf16.mxu0 %v590
        %1776 = vmatmul.mubr.bf16.gmra.mrb[0].mxu0 %v589
        %v1777 = vpop.f32.mrb[0].mxu0
        %v1778 = vadd.f32 0.0, %v1777
        %v1779 = vpop.f32.mrb[0].mxu0
        %v1780 = vadd.f32 0.0, %v1779
        %v1781 = vpop.f32.mrb[0].mxu0
        %v1782 = vadd.f32 0.0, %v1781
        %v1783 = vpop.f32.mrb[0].mxu0
        %v1784 = vadd.f32 0.0, %v1783
        %1785 = vmatprep.mubr.bf16.mxu0 %v592
        %1786 = vmatmul.mubr.bf16.gmra.mrb[0].mxu0 %v591
        %v1787 = vpop.f32.mrb[0].mxu0
        %v1788 = vadd.f32 0.0, %v1787
        %v1789 = vpop.f32.mrb[0].mxu0
        %v1790 = vadd.f32 0.0, %v1789
        %v1791 = vpop.f32.mrb[0].mxu0
        %v1792 = vadd.f32 0.0, %v1791
        %v1793 = vpop.f32.mrb[0].mxu0
        %v1794 = vadd.f32 0.0, %v1793
        %1795 = vmatprep.mubr.bf16.mxu0 %v594
        %1796 = vmatmul.mubr.bf16.gmra.mrb[0].mxu0 %v593
        %v1797 = vpop.f32.mrb[0].mxu0
        %v1798 = vadd.f32 0.0, %v1797
        %v1799 = vpop.f32.mrb[0].mxu0
        %v1800 = vadd.f32 0.0, %v1799
        %v1801 = vpop.f32.mrb[0].mxu0
        %v1802 = vadd.f32 0.0, %v1801
        %v1803 = vpop.f32.mrb[0].mxu0
        %v1804 = vadd.f32 0.0, %v1803
        %1805 = vmatprep.mubr.bf16.mxu0 %v596
        %1806 = vmatmul.mubr.bf16.gmra.mrb[0].mxu0 %v595
        %v1807 = vpop.f32.mrb[0].mxu0
        %v1808 = vadd.f32 0.0, %v1807
        %v1809 = vpop.f32.mrb[0].mxu0
        %v1810 = vadd.f32 0.0, %v1809
        %v1811 = vpop.f32.mrb[0].mxu0
        %v1812 = vadd.f32 0.0, %v1811
        %v1813 = vpop.f32.mrb[0].mxu0
        %v1814 = vadd.f32 0.0, %v1813
        %1815 = vmatprep.mubr.bf16.mxu0 %v598
        %1816 = vmatmul.mubr.bf16.gmra.mrb[0].mxu0 %v597
        %v1817 = vpop.f32.mrb[0].mxu0
        %v1818 = vadd.f32 0.0, %v1817
        %v1819 = vpop.f32.mrb[0].mxu0
        %v1820 = vadd.f32 0.0, %v1819
        %v1821 = vpop.f32.mrb[0].mxu0
        %v1822 = vadd.f32 0.0, %v1821
        %v1823 = vpop.f32.mrb[0].mxu0
        %v1824 = vadd.f32 0.0, %v1823
        %1825 = vmatprep.mubr.bf16.mxu0 %v600
        %1826 = vmatmul.mubr.bf16.gmra.mrb[0].mxu0 %v599
        %v1827 = vpop.f32.mrb[0].mxu0
        %v1828 = vadd.f32 0.0, %v1827
        %v1829 = vpop.f32.mrb[0].mxu0
        %v1830 = vadd.f32 0.0, %v1829
        %v1831 = vpop.f32.mrb[0].mxu0
        %v1832 = vadd.f32 0.0, %v1831
        %v1833 = vpop.f32.mrb[0].mxu0
        %v1834 = vadd.f32 0.0, %v1833
        %1835 = vmatprep.mubr.bf16.mxu0 %v602
        %1836 = vmatmul.mubr.bf16.gmra.mrb[0].mxu0 %v601
        %v1837 = vpop.f32.mrb[0].mxu0
        %v1838 = vadd.f32 0.0, %v1837
        %v1839 = vpop.f32.mrb[0].mxu0
        %v1840 = vadd.f32 0.0, %v1839
        %v1841 = vpop.f32.mrb[0].mxu0
        %v1842 = vadd.f32 0.0, %v1841
        %v1843 = vpop.f32.mrb[0].mxu0
        %v1844 = vadd.f32 0.0, %v1843
        %1845 = vmatprep.mubr.bf16.mxu0 %v604
        %1846 = vmatmul.mubr.bf16.gmra.mrb[0].mxu0 %v603
        %v1847 = vpop.f32.mrb[0].mxu0
        %v1848 = vadd.f32 0.0, %v1847
        %v1849 = vpop.f32.mrb[0].mxu0
        %v1850 = vadd.f32 0.0, %v1849
        %v1851 = vpop.f32.mrb[0].mxu0
        %v1852 = vadd.f32 0.0, %v1851
        %v1853 = vpop.f32.mrb[0].mxu0
        %v1854 = vadd.f32 0.0, %v1853
        %1855 = vdwg.mxu0
        %1856 = vmatprep.subr.bf16.mxu0 %v1602
        %1857 = vmatpush1.bf16.msra.mxu0 %v1601
        %1858 = vmatprep.subr.bf16.mxu0 %v1606
        %1859 = vmatpush1.bf16.msra.mxu0 %v1605
        %1860 = vmatprep.subr.bf16.mxu0 %v1610
        %1861 = vmatpush1.bf16.msra.mxu0 %v1609
        %1862 = vmatprep.subr.bf16.mxu0 %v1614
        %1863 = vmatpush1.bf16.msra.mxu0 %v1613
        %1864 = vmatprep.subr.bf16.mxu0 %v1618
        %1865 = vmatpush1.bf16.msra.mxu0 %v1617
        %1866 = vmatprep.subr.bf16.mxu0 %v1622
        %1867 = vmatpush1.bf16.msra.mxu0 %v1621
        %1868 = vmatprep.subr.bf16.mxu0 %v1626
        %1869 = vmatpush1.bf16.msra.mxu0 %v1625
        %1870 = vmatprep.subr.bf16.mxu0 %v1630
        %1871 = vmatpush1.bf16.msra.mxu0 %v1629
        %1872 = vmatprep.subr.bf16.mxu0 %v1634
        %1873 = vmatpush1.bf16.msra.mxu0 %v1633
        %1874 = vmatprep.subr.bf16.mxu0 %v1638
        %1875 = vmatpush1.bf16.msra.mxu0 %v1637
        %1876 = vmatprep.subr.bf16.mxu0 %v1642
        %1877 = vmatpush1.bf16.msra.mxu0 %v1641
        %1878 = vmatprep.subr.bf16.mxu0 %v1646
        %1879 = vmatpush1.bf16.msra.mxu0 %v1645
        %1880 = vmatprep.subr.bf16.mxu0 %v1650
        %1881 = vmatpush1.bf16.msra.mxu0 %v1649
        %1882 = vmatprep.subr.bf16.mxu0 %v1654
        %1883 = vmatpush1.bf16.msra.mxu0 %v1653
        %1884 = vmatprep.subr.bf16.mxu0 %v1658
        %1885 = vmatpush1.bf16.msra.mxu0 %v1657
        %1886 = vmatprep.subr.bf16.mxu0 %v1662
        %1887 = vmatpush1.bf16.msra.mxu0 %v1661
        %1888 = vmatprep.mubr.bf16.mxu0 %v574
        %1889 = vmatmul.mubr.bf16.gmra.mrb[0].mxu0 %v573
        %v1890 = vpop.f32.mrb[0].mxu0
        %v1891 = vadd.f32 0.0, %v1890
        %v1892 = vpop.f32.mrb[0].mxu0
        %v1893 = vadd.f32 0.0, %v1892
        %v1894 = vpop.f32.mrb[0].mxu0
        %v1895 = vadd.f32 0.0, %v1894
        %v1896 = vpop.f32.mrb[0].mxu0
        %v1897 = vadd.f32 0.0, %v1896
        %1898 = vmatprep.mubr.bf16.mxu0 %v576
        %1899 = vmatmul.mubr.bf16.gmra.mrb[0].mxu0 %v575
        %v1900 = vpop.f32.mrb[0].mxu0
        %v1901 = vadd.f32 0.0, %v1900
        %v1902 = vpop.f32.mrb[0].mxu0
        %v1903 = vadd.f32 0.0, %v1902
        %v1904 = vpop.f32.mrb[0].mxu0
        %v1905 = vadd.f32 0.0, %v1904
        %v1906 = vpop.f32.mrb[0].mxu0
        %v1907 = vadd.f32 0.0, %v1906
        %1908 = vmatprep.mubr.bf16.mxu0 %v578
        %1909 = vmatmul.mubr.bf16.gmra.mrb[0].mxu0 %v577
        %v1910 = vpop.f32.mrb[0].mxu0
        %v1911 = vadd.f32 0.0, %v1910
        %v1912 = vpop.f32.mrb[0].mxu0
        %v1913 = vadd.f32 0.0, %v1912
        %v1914 = vpop.f32.mrb[0].mxu0
        %v1915 = vadd.f32 0.0, %v1914
        %v1916 = vpop.f32.mrb[0].mxu0
        %v1917 = vadd.f32 0.0, %v1916
        %1918 = vmatprep.mubr.bf16.mxu0 %v580
        %1919 = vmatmul.mubr.bf16.gmra.mrb[0].mxu0 %v579
        %v1920 = vpop.f32.mrb[0].mxu0
        %v1921 = vadd.f32 0.0, %v1920
        %v1922 = vpop.f32.mrb[0].mxu0
        %v1923 = vadd.f32 0.0, %v1922
        %v1924 = vpop.f32.mrb[0].mxu0
        %v1925 = vadd.f32 0.0, %v1924
        %v1926 = vpop.f32.mrb[0].mxu0
        %v1927 = vadd.f32 0.0, %v1926
        %1928 = vmatprep.mubr.bf16.mxu0 %v582
        %1929 = vmatmul.mubr.bf16.gmra.mrb[0].mxu0 %v581
        %v1930 = vpop.f32.mrb[0].mxu0
        %v1931 = vadd.f32 0.0, %v1930
        %v1932 = vpop.f32.mrb[0].mxu0
        %v1933 = vadd.f32 0.0, %v1932
        %v1934 = vpop.f32.mrb[0].mxu0
        %v1935 = vadd.f32 0.0, %v1934
        %v1936 = vpop.f32.mrb[0].mxu0
        %v1937 = vadd.f32 0.0, %v1936
        %1938 = vmatprep.mubr.bf16.mxu0 %v584
        %1939 = vmatmul.mubr.bf16.gmra.mrb[0].mxu0 %v583
        %v1940 = vpop.f32.mrb[0].mxu0
        %v1941 = vadd.f32 0.0, %v1940
        %v1942 = vpop.f32.mrb[0].mxu0
        %v1943 = vadd.f32 0.0, %v1942
        %v1944 = vpop.f32.mrb[0].mxu0
        %v1945 = vadd.f32 0.0, %v1944
        %v1946 = vpop.f32.mrb[0].mxu0
        %v1947 = vadd.f32 0.0, %v1946
        %1948 = vmatprep.mubr.bf16.mxu0 %v586
        %1949 = vmatmul.mubr.bf16.gmra.mrb[0].mxu0 %v585
        %v1950 = vpop.f32.mrb[0].mxu0
        %v1951 = vadd.f32 0.0, %v1950
        %v1952 = vpop.f32.mrb[0].mxu0
        %v1953 = vadd.f32 0.0, %v1952
        %v1954 = vpop.f32.mrb[0].mxu0
        %v1955 = vadd.f32 0.0, %v1954
        %v1956 = vpop.f32.mrb[0].mxu0
        %v1957 = vadd.f32 0.0, %v1956
        %1958 = vmatprep.mubr.bf16.mxu0 %v588
        %1959 = vmatmul.mubr.bf16.gmra.mrb[0].mxu0 %v587
        %v1960 = vpop.f32.mrb[0].mxu0
        %v1961 = vadd.f32 0.0, %v1960
        %v1962 = vpop.f32.mrb[0].mxu0
        %v1963 = vadd.f32 0.0, %v1962
        %v1964 = vpop.f32.mrb[0].mxu0
        %v1965 = vadd.f32 0.0, %v1964
        %v1966 = vpop.f32.mrb[0].mxu0
        %v1967 = vadd.f32 0.0, %v1966
        %1968 = vmatprep.mubr.bf16.mxu0 %v590
        %1969 = vmatmul.mubr.bf16.gmra.mrb[0].mxu0 %v589
        %v1970 = vpop.f32.mrb[0].mxu0
        %v1971 = vadd.f32 0.0, %v1970
        %v1972 = vpop.f32.mrb[0].mxu0
        %v1973 = vadd.f32 0.0, %v1972
        %v1974 = vpop.f32.mrb[0].mxu0
        %v1975 = vadd.f32 0.0, %v1974
        %v1976 = vpop.f32.mrb[0].mxu0
        %v1977 = vadd.f32 0.0, %v1976
        %1978 = vmatprep.mubr.bf16.mxu0 %v592
        %1979 = vmatmul.mubr.bf16.gmra.mrb[0].mxu0 %v591
        %v1980 = vpop.f32.mrb[0].mxu0
        %v1981 = vadd.f32 0.0, %v1980
        %v1982 = vpop.f32.mrb[0].mxu0
        %v1983 = vadd.f32 0.0, %v1982
        %v1984 = vpop.f32.mrb[0].mxu0
        %v1985 = vadd.f32 0.0, %v1984
        %v1986 = vpop.f32.mrb[0].mxu0
        %v1987 = vadd.f32 0.0, %v1986
        %1988 = vmatprep.mubr.bf16.mxu0 %v594
        %1989 = vmatmul.mubr.bf16.gmra.mrb[0].mxu0 %v593
        %v1990 = vpop.f32.mrb[0].mxu0
        %v1991 = vadd.f32 0.0, %v1990
        %v1992 = vpop.f32.mrb[0].mxu0
        %v1993 = vadd.f32 0.0, %v1992
        %v1994 = vpop.f32.mrb[0].mxu0
        %v1995 = vadd.f32 0.0, %v1994
        %v1996 = vpop.f32.mrb[0].mxu0
        %v1997 = vadd.f32 0.0, %v1996
        %1998 = vmatprep.mubr.bf16.mxu0 %v596
        %1999 = vmatmul.mubr.bf16.gmra.mrb[0].mxu0 %v595
        %v2000 = vpop.f32.mrb[0].mxu0
        %v2001 = vadd.f32 0.0, %v2000
        %v2002 = vpop.f32.mrb[0].mxu0
        %v2003 = vadd.f32 0.0, %v2002
        %v2004 = vpop.f32.mrb[0].mxu0
        %v2005 = vadd.f32 0.0, %v2004
        %v2006 = vpop.f32.mrb[0].mxu0
        %v2007 = vadd.f32 0.0, %v2006
        %2008 = vmatprep.mubr.bf16.mxu0 %v598
        %2009 = vmatmul.mubr.bf16.gmra.mrb[0].mxu0 %v597
        %v2010 = vpop.f32.mrb[0].mxu0
        %v2011 = vadd.f32 0.0, %v2010
        %v2012 = vpop.f32.mrb[0].mxu0
        %v2013 = vadd.f32 0.0, %v2012
        %v2014 = vpop.f32.mrb[0].mxu0
        %v2015 = vadd.f32 0.0, %v2014
        %v2016 = vpop.f32.mrb[0].mxu0
        %v2017 = vadd.f32 0.0, %v2016
        %2018 = vmatprep.mubr.bf16.mxu0 %v600
        %2019 = vmatmul.mubr.bf16.gmra.mrb[0].mxu0 %v599
        %v2020 = vpop.f32.mrb[0].mxu0
        %v2021 = vadd.f32 0.0, %v2020
        %v2022 = vpop.f32.mrb[0].mxu0
        %v2023 = vadd.f32 0.0, %v2022
        %v2024 = vpop.f32.mrb[0].mxu0
        %v2025 = vadd.f32 0.0, %v2024
        %v2026 = vpop.f32.mrb[0].mxu0
        %v2027 = vadd.f32 0.0, %v2026
        %2028 = vmatprep.mubr.bf16.mxu0 %v602
        %2029 = vmatmul.mubr.bf16.gmra.mrb[0].mxu0 %v601
        %v2030 = vpop.f32.mrb[0].mxu0
        %v2031 = vadd.f32 0.0, %v2030
        %v2032 = vpop.f32.mrb[0].mxu0
        %v2033 = vadd.f32 0.0, %v2032
        %v2034 = vpop.f32.mrb[0].mxu0
        %v2035 = vadd.f32 0.0, %v2034
        %v2036 = vpop.f32.mrb[0].mxu0
        %v2037 = vadd.f32 0.0, %v2036
        %2038 = vmatprep.mubr.bf16.mxu0 %v604
        %2039 = vmatmul.mubr.bf16.gmra.mrb[0].mxu0 %v603
        %v2040 = vpop.f32.mrb[0].mxu0
        %v2041 = vadd.f32 0.0, %v2040
        %v2042 = vpop.f32.mrb[0].mxu0
        %v2043 = vadd.f32 0.0, %v2042
        %v2044 = vpop.f32.mrb[0].mxu0
        %v2045 = vadd.f32 0.0, %v2044
        %v2046 = vpop.f32.mrb[0].mxu0
        %v2047 = vadd.f32 0.0, %v2046
        %2048 = vdwg.mxu0
        %v2049 = vpack.c.bf16 %v1702, %v1698
        %v2050 = vpack.c.bf16 %v1704, %v1700
        %v2051 = vpack.c.bf16 %v1712, %v1708
        %v2052 = vpack.c.bf16 %v1714, %v1710
        %v2053 = vpack.c.bf16 %v1722, %v1718
        %v2054 = vpack.c.bf16 %v1724, %v1720
        %v2055 = vpack.c.bf16 %v1732, %v1728
        %v2056 = vpack.c.bf16 %v1734, %v1730
        %v2057 = vpack.c.bf16 %v1742, %v1738
        %v2058 = vpack.c.bf16 %v1744, %v1740
        %v2059 = vpack.c.bf16 %v1752, %v1748
        %v2060 = vpack.c.bf16 %v1754, %v1750
        %v2061 = vpack.c.bf16 %v1762, %v1758
        %v2062 = vpack.c.bf16 %v1764, %v1760
        %v2063 = vpack.c.bf16 %v1772, %v1768
        %v2064 = vpack.c.bf16 %v1774, %v1770
        %v2065 = vpack.c.bf16 %v1782, %v1778
        %v2066 = vpack.c.bf16 %v1784, %v1780
        %v2067 = vpack.c.bf16 %v1792, %v1788
        %v2068 = vpack.c.bf16 %v1794, %v1790
        %v2069 = vpack.c.bf16 %v1802, %v1798
        %v2070 = vpack.c.bf16 %v1804, %v1800
        %v2071 = vpack.c.bf16 %v1812, %v1808
        %v2072 = vpack.c.bf16 %v1814, %v1810
        %v2073 = vpack.c.bf16 %v1822, %v1818
        %v2074 = vpack.c.bf16 %v1824, %v1820
        %v2075 = vpack.c.bf16 %v1832, %v1828
        %v2076 = vpack.c.bf16 %v1834, %v1830
        %v2077 = vpack.c.bf16 %v1842, %v1838
        %v2078 = vpack.c.bf16 %v1844, %v1840
        %v2079 = vpack.c.bf16 %v1852, %v1848
        %v2080 = vpack.c.bf16 %v1854, %v1850
        %2081 = vmatprep.subr.bf16.mxu0 %v959
        %2082 = vmatpush1.bf16.msra.mxu0 %v958
        %2083 = vmatprep.subr.bf16.mxu0 %v961
        %2084 = vmatpush1.bf16.msra.mxu0 %v960
        %2085 = vmatprep.subr.bf16.mxu0 %v963
        %2086 = vmatpush1.bf16.msra.mxu0 %v962
        %2087 = vmatprep.subr.bf16.mxu0 %v965
        %2088 = vmatpush1.bf16.msra.mxu0 %v964
        %2089 = vmatprep.subr.bf16.mxu0 %v967
        %2090 = vmatpush1.bf16.msra.mxu0 %v966
        %2091 = vmatprep.subr.bf16.mxu0 %v969
        %2092 = vmatpush1.bf16.msra.mxu0 %v968
        %2093 = vmatprep.subr.bf16.mxu0 %v971
        %2094 = vmatpush1.bf16.msra.mxu0 %v970
        %2095 = vmatprep.subr.bf16.mxu0 %v973
        %2096 = vmatpush1.bf16.msra.mxu0 %v972
        %2097 = vmatprep.subr.bf16.mxu0 %v975
        %2098 = vmatpush1.bf16.msra.mxu0 %v974
        %2099 = vmatprep.subr.bf16.mxu0 %v977
        %2100 = vmatpush1.bf16.msra.mxu0 %v976
        %2101 = vmatprep.subr.bf16.mxu0 %v979
        %2102 = vmatpush1.bf16.msra.mxu0 %v978
        %2103 = vmatprep.subr.bf16.mxu0 %v981
        %2104 = vmatpush1.bf16.msra.mxu0 %v980
        %2105 = vmatprep.subr.bf16.mxu0 %v983
        %2106 = vmatpush1.bf16.msra.mxu0 %v982
        %2107 = vmatprep.subr.bf16.mxu0 %v985
        %2108 = vmatpush1.bf16.msra.mxu0 %v984
        %2109 = vmatprep.subr.bf16.mxu0 %v987
        %2110 = vmatpush1.bf16.msra.mxu0 %v986
        %2111 = vmatprep.subr.bf16.mxu0 %v989
        %2112 = vmatpush1.bf16.msra.mxu0 %v988
        %2113 = vmatprep.mubr.bf16.mxu0 %v2050
        %2114 = vmatmul.mubr.bf16.gmra.mrb[0].mxu0 %v2049
        %v2115 = vpop.f32.mrb[0].mxu0
        %v2116 = vadd.f32 0.0, %v2115
        %v2117 = vpop.f32.mrb[0].mxu0
        %v2118 = vadd.f32 0.0, %v2117
        %v2119 = vpop.f32.mrb[0].mxu0
        %v2120 = vadd.f32 0.0, %v2119
        %v2121 = vpop.f32.mrb[0].mxu0
        %v2122 = vadd.f32 0.0, %v2121
        %2123 = vmatprep.mubr.bf16.mxu0 %v2052
        %2124 = vmatmul.mubr.bf16.gmra.mrb[0].mxu0 %v2051
        %v2125 = vpop.f32.mrb[0].mxu0
        %v2126 = vadd.f32 0.0, %v2125
        %v2127 = vpop.f32.mrb[0].mxu0
        %v2128 = vadd.f32 0.0, %v2127
        %v2129 = vpop.f32.mrb[0].mxu0
        %v2130 = vadd.f32 0.0, %v2129
        %v2131 = vpop.f32.mrb[0].mxu0
        %v2132 = vadd.f32 0.0, %v2131
        %2133 = vmatprep.mubr.bf16.mxu0 %v2054
        %2134 = vmatmul.mubr.bf16.gmra.mrb[0].mxu0 %v2053
        %v2135 = vpop.f32.mrb[0].mxu0
        %v2136 = vadd.f32 0.0, %v2135
        %v2137 = vpop.f32.mrb[0].mxu0
        %v2138 = vadd.f32 0.0, %v2137
        %v2139 = vpop.f32.mrb[0].mxu0
        %v2140 = vadd.f32 0.0, %v2139
        %v2141 = vpop.f32.mrb[0].mxu0
        %v2142 = vadd.f32 0.0, %v2141
        %2143 = vmatprep.mubr.bf16.mxu0 %v2056
        %2144 = vmatmul.mubr.bf16.gmra.mrb[0].mxu0 %v2055
        %v2145 = vpop.f32.mrb[0].mxu0
        %v2146 = vadd.f32 0.0, %v2145
        %v2147 = vpop.f32.mrb[0].mxu0
        %v2148 = vadd.f32 0.0, %v2147
        %v2149 = vpop.f32.mrb[0].mxu0
        %v2150 = vadd.f32 0.0, %v2149
        %v2151 = vpop.f32.mrb[0].mxu0
        %v2152 = vadd.f32 0.0, %v2151
        %2153 = vmatprep.mubr.bf16.mxu0 %v2058
        %2154 = vmatmul.mubr.bf16.gmra.mrb[0].mxu0 %v2057
        %v2155 = vpop.f32.mrb[0].mxu0
        %v2156 = vadd.f32 0.0, %v2155
        %v2157 = vpop.f32.mrb[0].mxu0
        %v2158 = vadd.f32 0.0, %v2157
        %v2159 = vpop.f32.mrb[0].mxu0
        %v2160 = vadd.f32 0.0, %v2159
        %v2161 = vpop.f32.mrb[0].mxu0
        %v2162 = vadd.f32 0.0, %v2161
        %2163 = vmatprep.mubr.bf16.mxu0 %v2060
        %2164 = vmatmul.mubr.bf16.gmra.mrb[0].mxu0 %v2059
        %v2165 = vpop.f32.mrb[0].mxu0
        %v2166 = vadd.f32 0.0, %v2165
        %v2167 = vpop.f32.mrb[0].mxu0
        %v2168 = vadd.f32 0.0, %v2167
        %v2169 = vpop.f32.mrb[0].mxu0
        %v2170 = vadd.f32 0.0, %v2169
        %v2171 = vpop.f32.mrb[0].mxu0
        %v2172 = vadd.f32 0.0, %v2171
        %2173 = vmatprep.mubr.bf16.mxu0 %v2062
        %2174 = vmatmul.mubr.bf16.gmra.mrb[0].mxu0 %v2061
        %v2175 = vpop.f32.mrb[0].mxu0
        %v2176 = vadd.f32 0.0, %v2175
        %v2177 = vpop.f32.mrb[0].mxu0
        %v2178 = vadd.f32 0.0, %v2177
        %v2179 = vpop.f32.mrb[0].mxu0
        %v2180 = vadd.f32 0.0, %v2179
        %v2181 = vpop.f32.mrb[0].mxu0
        %v2182 = vadd.f32 0.0, %v2181
        %2183 = vmatprep.mubr.bf16.mxu0 %v2064
        %2184 = vmatmul.mubr.bf16.gmra.mrb[0].mxu0 %v2063
        %v2185 = vpop.f32.mrb[0].mxu0
        %v2186 = vadd.f32 0.0, %v2185
        %v2187 = vpop.f32.mrb[0].mxu0
        %v2188 = vadd.f32 0.0, %v2187
        %v2189 = vpop.f32.mrb[0].mxu0
        %v2190 = vadd.f32 0.0, %v2189
        %v2191 = vpop.f32.mrb[0].mxu0
        %v2192 = vadd.f32 0.0, %v2191
        %2193 = vmatprep.mubr.bf16.mxu0 %v2066
        %2194 = vmatmul.mubr.bf16.gmra.mrb[0].mxu0 %v2065
        %v2195 = vpop.f32.mrb[0].mxu0
        %v2196 = vadd.f32 0.0, %v2195
        %v2197 = vpop.f32.mrb[0].mxu0
        %v2198 = vadd.f32 0.0, %v2197
        %v2199 = vpop.f32.mrb[0].mxu0
        %v2200 = vadd.f32 0.0, %v2199
        %v2201 = vpop.f32.mrb[0].mxu0
        %v2202 = vadd.f32 0.0, %v2201
        %2203 = vmatprep.mubr.bf16.mxu0 %v2068
        %2204 = vmatmul.mubr.bf16.gmra.mrb[0].mxu0 %v2067
        %v2205 = vpop.f32.mrb[0].mxu0
        %v2206 = vadd.f32 0.0, %v2205
        %v2207 = vpop.f32.mrb[0].mxu0
        %v2208 = vadd.f32 0.0, %v2207
        %v2209 = vpop.f32.mrb[0].mxu0
        %v2210 = vadd.f32 0.0, %v2209
        %v2211 = vpop.f32.mrb[0].mxu0
        %v2212 = vadd.f32 0.0, %v2211
        %2213 = vmatprep.mubr.bf16.mxu0 %v2070
        %2214 = vmatmul.mubr.bf16.gmra.mrb[0].mxu0 %v2069
        %v2215 = vpop.f32.mrb[0].mxu0
        %v2216 = vadd.f32 0.0, %v2215
        %v2217 = vpop.f32.mrb[0].mxu0
        %v2218 = vadd.f32 0.0, %v2217
        %v2219 = vpop.f32.mrb[0].mxu0
        %v2220 = vadd.f32 0.0, %v2219
        %v2221 = vpop.f32.mrb[0].mxu0
        %v2222 = vadd.f32 0.0, %v2221
        %2223 = vmatprep.mubr.bf16.mxu0 %v2072
        %2224 = vmatmul.mubr.bf16.gmra.mrb[0].mxu0 %v2071
        %v2225 = vpop.f32.mrb[0].mxu0
        %v2226 = vadd.f32 0.0, %v2225
        %v2227 = vpop.f32.mrb[0].mxu0
        %v2228 = vadd.f32 0.0, %v2227
        %v2229 = vpop.f32.mrb[0].mxu0
        %v2230 = vadd.f32 0.0, %v2229
        %v2231 = vpop.f32.mrb[0].mxu0
        %v2232 = vadd.f32 0.0, %v2231
        %2233 = vmatprep.mubr.bf16.mxu0 %v2074
        %2234 = vmatmul.mubr.bf16.gmra.mrb[0].mxu0 %v2073
        %v2235 = vpop.f32.mrb[0].mxu0
        %v2236 = vadd.f32 0.0, %v2235
        %v2237 = vpop.f32.mrb[0].mxu0
        %v2238 = vadd.f32 0.0, %v2237
        %v2239 = vpop.f32.mrb[0].mxu0
        %v2240 = vadd.f32 0.0, %v2239
        %v2241 = vpop.f32.mrb[0].mxu0
        %v2242 = vadd.f32 0.0, %v2241
        %2243 = vmatprep.mubr.bf16.mxu0 %v2076
        %2244 = vmatmul.mubr.bf16.gmra.mrb[0].mxu0 %v2075
        %v2245 = vpop.f32.mrb[0].mxu0
        %v2246 = vadd.f32 0.0, %v2245
        %v2247 = vpop.f32.mrb[0].mxu0
        %v2248 = vadd.f32 0.0, %v2247
        %v2249 = vpop.f32.mrb[0].mxu0
        %v2250 = vadd.f32 0.0, %v2249
        %v2251 = vpop.f32.mrb[0].mxu0
        %v2252 = vadd.f32 0.0, %v2251
        %2253 = vmatprep.mubr.bf16.mxu0 %v2078
        %2254 = vmatmul.mubr.bf16.gmra.mrb[0].mxu0 %v2077
        %v2255 = vpop.f32.mrb[0].mxu0
        %v2256 = vadd.f32 0.0, %v2255
        %v2257 = vpop.f32.mrb[0].mxu0
        %v2258 = vadd.f32 0.0, %v2257
        %v2259 = vpop.f32.mrb[0].mxu0
        %v2260 = vadd.f32 0.0, %v2259
        %v2261 = vpop.f32.mrb[0].mxu0
        %v2262 = vadd.f32 0.0, %v2261
        %2263 = vmatprep.mubr.bf16.mxu0 %v2080
        %2264 = vmatmul.mubr.bf16.gmra.mrb[0].mxu0 %v2079
        %v2265 = vpop.f32.mrb[0].mxu0
        %v2266 = vadd.f32 0.0, %v2265
        %v2267 = vpop.f32.mrb[0].mxu0
        %v2268 = vadd.f32 0.0, %v2267
        %v2269 = vpop.f32.mrb[0].mxu0
        %v2270 = vadd.f32 0.0, %v2269
        %v2271 = vpop.f32.mrb[0].mxu0
        %v2272 = vadd.f32 0.0, %v2271
        %2273 = vdwg.mxu0
        %v2274 = vpack.c.bf16 %v1895, %v1891
        %v2275 = vpack.c.bf16 %v1897, %v1893
        %v2276 = vpack.c.bf16 %v1905, %v1901
        %v2277 = vpack.c.bf16 %v1907, %v1903
        %v2278 = vpack.c.bf16 %v1915, %v1911
        %v2279 = vpack.c.bf16 %v1917, %v1913
        %v2280 = vpack.c.bf16 %v1925, %v1921
        %v2281 = vpack.c.bf16 %v1927, %v1923
        %v2282 = vpack.c.bf16 %v1935, %v1931
        %v2283 = vpack.c.bf16 %v1937, %v1933
        %v2284 = vpack.c.bf16 %v1945, %v1941
        %v2285 = vpack.c.bf16 %v1947, %v1943
        %v2286 = vpack.c.bf16 %v1955, %v1951
        %v2287 = vpack.c.bf16 %v1957, %v1953
        %v2288 = vpack.c.bf16 %v1965, %v1961
        %v2289 = vpack.c.bf16 %v1967, %v1963
        %v2290 = vpack.c.bf16 %v1975, %v1971
        %v2291 = vpack.c.bf16 %v1977, %v1973
        %v2292 = vpack.c.bf16 %v1985, %v1981
        %v2293 = vpack.c.bf16 %v1987, %v1983
        %v2294 = vpack.c.bf16 %v1995, %v1991
        %v2295 = vpack.c.bf16 %v1997, %v1993
        %v2296 = vpack.c.bf16 %v2005, %v2001
        %v2297 = vpack.c.bf16 %v2007, %v2003
        %v2298 = vpack.c.bf16 %v2015, %v2011
        %v2299 = vpack.c.bf16 %v2017, %v2013
        %v2300 = vpack.c.bf16 %v2025, %v2021
        %v2301 = vpack.c.bf16 %v2027, %v2023
        %v2302 = vpack.c.bf16 %v2035, %v2031
        %v2303 = vpack.c.bf16 %v2037, %v2033
        %v2304 = vpack.c.bf16 %v2045, %v2041
        %v2305 = vpack.c.bf16 %v2047, %v2043
        %2306 = vmatprep.subr.bf16.mxu0 %v959
        %2307 = vmatpush1.bf16.msra.mxu0 %v958
        %2308 = vmatprep.subr.bf16.mxu0 %v961
        %2309 = vmatpush1.bf16.msra.mxu0 %v960
        %2310 = vmatprep.subr.bf16.mxu0 %v963
        %2311 = vmatpush1.bf16.msra.mxu0 %v962
        %2312 = vmatprep.subr.bf16.mxu0 %v965
        %2313 = vmatpush1.bf16.msra.mxu0 %v964
        %2314 = vmatprep.subr.bf16.mxu0 %v967
        %2315 = vmatpush1.bf16.msra.mxu0 %v966
        %2316 = vmatprep.subr.bf16.mxu0 %v969
        %2317 = vmatpush1.bf16.msra.mxu0 %v968
        %2318 = vmatprep.subr.bf16.mxu0 %v971
        %2319 = vmatpush1.bf16.msra.mxu0 %v970
        %2320 = vmatprep.subr.bf16.mxu0 %v973
        %2321 = vmatpush1.bf16.msra.mxu0 %v972
        %2322 = vmatprep.subr.bf16.mxu0 %v975
        %2323 = vmatpush1.bf16.msra.mxu0 %v974
        %2324 = vmatprep.subr.bf16.mxu0 %v977
        %2325 = vmatpush1.bf16.msra.mxu0 %v976
        %2326 = vmatprep.subr.bf16.mxu0 %v979
        %2327 = vmatpush1.bf16.msra.mxu0 %v978
        %2328 = vmatprep.subr.bf16.mxu0 %v981
        %2329 = vmatpush1.bf16.msra.mxu0 %v980
        %2330 = vmatprep.subr.bf16.mxu0 %v983
        %2331 = vmatpush1.bf16.msra.mxu0 %v982
        %2332 = vmatprep.subr.bf16.mxu0 %v985
        %2333 = vmatpush1.bf16.msra.mxu0 %v984
        %2334 = vmatprep.subr.bf16.mxu0 %v987
        %2335 = vmatpush1.bf16.msra.mxu0 %v986
        %2336 = vmatprep.subr.bf16.mxu0 %v989
        %2337 = vmatpush1.bf16.msra.mxu0 %v988
        %2338 = vmatprep.mubr.bf16.mxu0 %v2275
        %2339 = vmatmul.mubr.bf16.gmra.mrb[0].mxu0 %v2274
        %v2340 = vpop.f32.mrb[0].mxu0
        %v2341 = vadd.f32 0.0, %v2340
        %v2342 = vpop.f32.mrb[0].mxu0
        %v2343 = vadd.f32 0.0, %v2342
        %v2344 = vpop.f32.mrb[0].mxu0
        %v2345 = vadd.f32 0.0, %v2344
        %v2346 = vpop.f32.mrb[0].mxu0
        %v2347 = vadd.f32 0.0, %v2346
        %2348 = vmatprep.mubr.bf16.mxu0 %v2277
        %2349 = vmatmul.mubr.bf16.gmra.mrb[0].mxu0 %v2276
        %v2350 = vpop.f32.mrb[0].mxu0
        %v2351 = vadd.f32 0.0, %v2350
        %v2352 = vpop.f32.mrb[0].mxu0
        %v2353 = vadd.f32 0.0, %v2352
        %v2354 = vpop.f32.mrb[0].mxu0
        %v2355 = vadd.f32 0.0, %v2354
        %v2356 = vpop.f32.mrb[0].mxu0
        %v2357 = vadd.f32 0.0, %v2356
        %2358 = vmatprep.mubr.bf16.mxu0 %v2279
        %2359 = vmatmul.mubr.bf16.gmra.mrb[0].mxu0 %v2278
        %v2360 = vpop.f32.mrb[0].mxu0
        %v2361 = vadd.f32 0.0, %v2360
        %v2362 = vpop.f32.mrb[0].mxu0
        %v2363 = vadd.f32 0.0, %v2362
        %v2364 = vpop.f32.mrb[0].mxu0
        %v2365 = vadd.f32 0.0, %v2364
        %v2366 = vpop.f32.mrb[0].mxu0
        %v2367 = vadd.f32 0.0, %v2366
        %2368 = vmatprep.mubr.bf16.mxu0 %v2281
        %2369 = vmatmul.mubr.bf16.gmra.mrb[0].mxu0 %v2280
        %v2370 = vpop.f32.mrb[0].mxu0
        %v2371 = vadd.f32 0.0, %v2370
        %v2372 = vpop.f32.mrb[0].mxu0
        %v2373 = vadd.f32 0.0, %v2372
        %v2374 = vpop.f32.mrb[0].mxu0
        %v2375 = vadd.f32 0.0, %v2374
        %v2376 = vpop.f32.mrb[0].mxu0
        %v2377 = vadd.f32 0.0, %v2376
        %2378 = vmatprep.mubr.bf16.mxu0 %v2283
        %2379 = vmatmul.mubr.bf16.gmra.mrb[0].mxu0 %v2282
        %v2380 = vpop.f32.mrb[0].mxu0
        %v2381 = vadd.f32 0.0, %v2380
        %v2382 = vpop.f32.mrb[0].mxu0
        %v2383 = vadd.f32 0.0, %v2382
        %v2384 = vpop.f32.mrb[0].mxu0
        %v2385 = vadd.f32 0.0, %v2384
        %v2386 = vpop.f32.mrb[0].mxu0
        %v2387 = vadd.f32 0.0, %v2386
        %2388 = vmatprep.mubr.bf16.mxu0 %v2285
        %2389 = vmatmul.mubr.bf16.gmra.mrb[0].mxu0 %v2284
        %v2390 = vpop.f32.mrb[0].mxu0
        %v2391 = vadd.f32 0.0, %v2390
        %v2392 = vpop.f32.mrb[0].mxu0
        %v2393 = vadd.f32 0.0, %v2392
        %v2394 = vpop.f32.mrb[0].mxu0
        %v2395 = vadd.f32 0.0, %v2394
        %v2396 = vpop.f32.mrb[0].mxu0
        %v2397 = vadd.f32 0.0, %v2396
        %2398 = vmatprep.mubr.bf16.mxu0 %v2287
        %2399 = vmatmul.mubr.bf16.gmra.mrb[0].mxu0 %v2286
        %v2400 = vpop.f32.mrb[0].mxu0
        %v2401 = vadd.f32 0.0, %v2400
        %v2402 = vpop.f32.mrb[0].mxu0
        %v2403 = vadd.f32 0.0, %v2402
        %v2404 = vpop.f32.mrb[0].mxu0
        %v2405 = vadd.f32 0.0, %v2404
        %v2406 = vpop.f32.mrb[0].mxu0
        %v2407 = vadd.f32 0.0, %v2406
        %2408 = vmatprep.mubr.bf16.mxu0 %v2289
        %2409 = vmatmul.mubr.bf16.gmra.mrb[0].mxu0 %v2288
        %v2410 = vpop.f32.mrb[0].mxu0
        %v2411 = vadd.f32 0.0, %v2410
        %v2412 = vpop.f32.mrb[0].mxu0
        %v2413 = vadd.f32 0.0, %v2412
        %v2414 = vpop.f32.mrb[0].mxu0
        %v2415 = vadd.f32 0.0, %v2414
        %v2416 = vpop.f32.mrb[0].mxu0
        %v2417 = vadd.f32 0.0, %v2416
        %2418 = vmatprep.mubr.bf16.mxu0 %v2291
        %2419 = vmatmul.mubr.bf16.gmra.mrb[0].mxu0 %v2290
        %v2420 = vpop.f32.mrb[0].mxu0
        %v2421 = vadd.f32 0.0, %v2420
        %v2422 = vpop.f32.mrb[0].mxu0
        %v2423 = vadd.f32 0.0, %v2422
        %v2424 = vpop.f32.mrb[0].mxu0
        %v2425 = vadd.f32 0.0, %v2424
        %v2426 = vpop.f32.mrb[0].mxu0
        %v2427 = vadd.f32 0.0, %v2426
        %2428 = vmatprep.mubr.bf16.mxu0 %v2293
        %2429 = vmatmul.mubr.bf16.gmra.mrb[0].mxu0 %v2292
        %v2430 = vpop.f32.mrb[0].mxu0
        %v2431 = vadd.f32 0.0, %v2430
        %v2432 = vpop.f32.mrb[0].mxu0
        %v2433 = vadd.f32 0.0, %v2432
        %v2434 = vpop.f32.mrb[0].mxu0
        %v2435 = vadd.f32 0.0, %v2434
        %v2436 = vpop.f32.mrb[0].mxu0
        %v2437 = vadd.f32 0.0, %v2436
        %2438 = vmatprep.mubr.bf16.mxu0 %v2295
        %2439 = vmatmul.mubr.bf16.gmra.mrb[0].mxu0 %v2294
        %v2440 = vpop.f32.mrb[0].mxu0
        %v2441 = vadd.f32 0.0, %v2440
        %v2442 = vpop.f32.mrb[0].mxu0
        %v2443 = vadd.f32 0.0, %v2442
        %v2444 = vpop.f32.mrb[0].mxu0
        %v2445 = vadd.f32 0.0, %v2444
        %v2446 = vpop.f32.mrb[0].mxu0
        %v2447 = vadd.f32 0.0, %v2446
        %2448 = vmatprep.mubr.bf16.mxu0 %v2297
        %2449 = vmatmul.mubr.bf16.gmra.mrb[0].mxu0 %v2296
        %v2450 = vpop.f32.mrb[0].mxu0
        %v2451 = vadd.f32 0.0, %v2450
        %v2452 = vpop.f32.mrb[0].mxu0
        %v2453 = vadd.f32 0.0, %v2452
        %v2454 = vpop.f32.mrb[0].mxu0
        %v2455 = vadd.f32 0.0, %v2454
        %v2456 = vpop.f32.mrb[0].mxu0
        %v2457 = vadd.f32 0.0, %v2456
        %2458 = vmatprep.mubr.bf16.mxu0 %v2299
        %2459 = vmatmul.mubr.bf16.gmra.mrb[0].mxu0 %v2298
        %v2460 = vpop.f32.mrb[0].mxu0
        %v2461 = vadd.f32 0.0, %v2460
        %v2462 = vpop.f32.mrb[0].mxu0
        %v2463 = vadd.f32 0.0, %v2462
        %v2464 = vpop.f32.mrb[0].mxu0
        %v2465 = vadd.f32 0.0, %v2464
        %v2466 = vpop.f32.mrb[0].mxu0
        %v2467 = vadd.f32 0.0, %v2466
        %2468 = vmatprep.mubr.bf16.mxu0 %v2301
        %2469 = vmatmul.mubr.bf16.gmra.mrb[0].mxu0 %v2300
        %v2470 = vpop.f32.mrb[0].mxu0
        %v2471 = vadd.f32 0.0, %v2470
        %v2472 = vpop.f32.mrb[0].mxu0
        %v2473 = vadd.f32 0.0, %v2472
        %v2474 = vpop.f32.mrb[0].mxu0
        %v2475 = vadd.f32 0.0, %v2474
        %v2476 = vpop.f32.mrb[0].mxu0
        %v2477 = vadd.f32 0.0, %v2476
        %2478 = vmatprep.mubr.bf16.mxu0 %v2303
        %2479 = vmatmul.mubr.bf16.gmra.mrb[0].mxu0 %v2302
        %v2480 = vpop.f32.mrb[0].mxu0
        %v2481 = vadd.f32 0.0, %v2480
        %v2482 = vpop.f32.mrb[0].mxu0
        %v2483 = vadd.f32 0.0, %v2482
        %v2484 = vpop.f32.mrb[0].mxu0
        %v2485 = vadd.f32 0.0, %v2484
        %v2486 = vpop.f32.mrb[0].mxu0
        %v2487 = vadd.f32 0.0, %v2486
        %2488 = vmatprep.mubr.bf16.mxu0 %v2305
        %2489 = vmatmul.mubr.bf16.gmra.mrb[0].mxu0 %v2304
        %v2490 = vpop.f32.mrb[0].mxu0
        %v2491 = vadd.f32 0.0, %v2490
        %v2492 = vpop.f32.mrb[0].mxu0
        %v2493 = vadd.f32 0.0, %v2492
        %v2494 = vpop.f32.mrb[0].mxu0
        %v2495 = vadd.f32 0.0, %v2494
        %v2496 = vpop.f32.mrb[0].mxu0
        %v2497 = vadd.f32 0.0, %v2496
        %2498 = vdwg.mxu0
        %2499 = vst [vmem:[%s316] sm:$0xff] %v2116
        %2500 = vst [vmem:[%s316 + $0x8] sm:$0xff] %v2118
        %2501 = vst [vmem:[%s316 + $0x10] sm:$0xff] %v2120
        %2502 = vst [vmem:[%s316 + $0x18] sm:$0xff] %v2122
        %2503 = vst [vmem:[%s316 + $0x20] sm:$0xff] %v2126
        %2504 = vst [vmem:[%s316 + $0x28] sm:$0xff] %v2128
        %2505 = vst [vmem:[%s316 + $0x30] sm:$0xff] %v2130
        %2506 = vst [vmem:[%s316 + $0x38] sm:$0xff] %v2132
        %2507 = vst [vmem:[%s316 + $0x40] sm:$0xff] %v2136
        %2508 = vst [vmem:[%s316 + $0x48] sm:$0xff] %v2138
        %2509 = vst [vmem:[%s316 + $0x50] sm:$0xff] %v2140
        %2510 = vst [vmem:[%s316 + $0x58] sm:$0xff] %v2142
        %2511 = vst [vmem:[%s316 + $0x60] sm:$0xff] %v2146
        %2512 = vst [vmem:[%s316 + $0x68] sm:$0xff] %v2148
        %2513 = vst [vmem:[%s316 + $0x70] sm:$0xff] %v2150
        %2514 = vst [vmem:[%s316 + $0x78] sm:$0xff] %v2152
        %2515 = vst [vmem:[%s316 + $0x80] sm:$0xff] %v2156
        %2516 = vst [vmem:[%s316 + $0x88] sm:$0xff] %v2158
        %2517 = vst [vmem:[%s316 + $0x90] sm:$0xff] %v2160
        %2518 = vst [vmem:[%s316 + $0x98] sm:$0xff] %v2162
        %2519 = vst [vmem:[%s316 + $0xa0] sm:$0xff] %v2166
        %2520 = vst [vmem:[%s316 + $0xa8] sm:$0xff] %v2168
        %2521 = vst [vmem:[%s316 + $0xb0] sm:$0xff] %v2170
        %2522 = vst [vmem:[%s316 + $0xb8] sm:$0xff] %v2172
        %2523 = vst [vmem:[%s316 + $0xc0] sm:$0xff] %v2176
        %2524 = vst [vmem:[%s316 + $0xc8] sm:$0xff] %v2178
        %2525 = vst [vmem:[%s316 + $0xd0] sm:$0xff] %v2180
        %2526 = vst [vmem:[%s316 + $0xd8] sm:$0xff] %v2182
        %2527 = vst [vmem:[%s316 + $0xe0] sm:$0xff] %v2186
        %2528 = vst [vmem:[%s316 + $0xe8] sm:$0xff] %v2188
        %2529 = vst [vmem:[%s316 + $0xf0] sm:$0xff] %v2190
        %2530 = vst [vmem:[%s316 + $0xf8] sm:$0xff] %v2192
        %2531 = vst [vmem:[%s316 + $0x100] sm:$0xff] %v2196
        %2532 = vst [vmem:[%s316 + $0x108] sm:$0xff] %v2198
        %2533 = vst [vmem:[%s316 + $0x110] sm:$0xff] %v2200
        %2534 = vst [vmem:[%s316 + $0x118] sm:$0xff] %v2202
        %2535 = vst [vmem:[%s316 + $0x120] sm:$0xff] %v2206
        %2536 = vst [vmem:[%s316 + $0x128] sm:$0xff] %v2208
        %2537 = vst [vmem:[%s316 + $0x130] sm:$0xff] %v2210
        %2538 = vst [vmem:[%s316 + $0x138] sm:$0xff] %v2212
        %2539 = vst [vmem:[%s316 + $0x140] sm:$0xff] %v2216
        %2540 = vst [vmem:[%s316 + $0x148] sm:$0xff] %v2218
        %2541 = vst [vmem:[%s316 + $0x150] sm:$0xff] %v2220
        %2542 = vst [vmem:[%s316 + $0x158] sm:$0xff] %v2222
        %2543 = vst [vmem:[%s316 + $0x160] sm:$0xff] %v2226
        %2544 = vst [vmem:[%s316 + $0x168] sm:$0xff] %v2228
        %2545 = vst [vmem:[%s316 + $0x170] sm:$0xff] %v2230
        %2546 = vst [vmem:[%s316 + $0x178] sm:$0xff] %v2232
        %2547 = vst [vmem:[%s316 + $0x180] sm:$0xff] %v2236
        %2548 = vst [vmem:[%s316 + $0x188] sm:$0xff] %v2238
        %2549 = vst [vmem:[%s316 + $0x190] sm:$0xff] %v2240
        %2550 = vst [vmem:[%s316 + $0x198] sm:$0xff] %v2242
        %2551 = vst [vmem:[%s316 + $0x1a0] sm:$0xff] %v2246
        %2552 = vst [vmem:[%s316 + $0x1a8] sm:$0xff] %v2248
        %2553 = vst [vmem:[%s316 + $0x1b0] sm:$0xff] %v2250
        %2554 = vst [vmem:[%s316 + $0x1b8] sm:$0xff] %v2252
        %2555 = vst [vmem:[%s316 + $0x1c0] sm:$0xff] %v2256
        %2556 = vst [vmem:[%s316 + $0x1c8] sm:$0xff] %v2258
        %2557 = vst [vmem:[%s316 + $0x1d0] sm:$0xff] %v2260
        %2558 = vst [vmem:[%s316 + $0x1d8] sm:$0xff] %v2262
        %2559 = vst [vmem:[%s316 + $0x1e0] sm:$0xff] %v2266
        %2560 = vst [vmem:[%s316 + $0x1e8] sm:$0xff] %v2268
        %2561 = vst [vmem:[%s316 + $0x1f0] sm:$0xff] %v2270
        %2562 = vst [vmem:[%s316 + $0x1f8] sm:$0xff] %v2272
        %s2563 = scalar_lea.vmem %s316, 512 [#allocation12]
        %2564 = vst [vmem:[%s2563] sm:$0xff] %v2341
        %2565 = vst [vmem:[%s2563 + $0x8] sm:$0xff] %v2343
        %2566 = vst [vmem:[%s2563 + $0x10] sm:$0xff] %v2345
        %2567 = vst [vmem:[%s2563 + $0x18] sm:$0xff] %v2347
        %2568 = vst [vmem:[%s2563 + $0x20] sm:$0xff] %v2351
        %2569 = vst [vmem:[%s2563 + $0x28] sm:$0xff] %v2353
        %2570 = vst [vmem:[%s2563 + $0x30] sm:$0xff] %v2355
        %2571 = vst [vmem:[%s2563 + $0x38] sm:$0xff] %v2357
        %2572 = vst [vmem:[%s2563 + $0x40] sm:$0xff] %v2361
        %2573 = vst [vmem:[%s2563 + $0x48] sm:$0xff] %v2363
        %2574 = vst [vmem:[%s2563 + $0x50] sm:$0xff] %v2365
        %2575 = vst [vmem:[%s2563 + $0x58] sm:$0xff] %v2367
        %2576 = vst [vmem:[%s2563 + $0x60] sm:$0xff] %v2371
        %2577 = vst [vmem:[%s2563 + $0x68] sm:$0xff] %v2373
        %2578 = vst [vmem:[%s2563 + $0x70] sm:$0xff] %v2375
        %2579 = vst [vmem:[%s2563 + $0x78] sm:$0xff] %v2377
        %2580 = vst [vmem:[%s2563 + $0x80] sm:$0xff] %v2381
        %2581 = vst [vmem:[%s2563 + $0x88] sm:$0xff] %v2383
        %2582 = vst [vmem:[%s2563 + $0x90] sm:$0xff] %v2385
        %2583 = vst [vmem:[%s2563 + $0x98] sm:$0xff] %v2387
        %2584 = vst [vmem:[%s2563 + $0xa0] sm:$0xff] %v2391
        %2585 = vst [vmem:[%s2563 + $0xa8] sm:$0xff] %v2393
        %2586 = vst [vmem:[%s2563 + $0xb0] sm:$0xff] %v2395
        %2587 = vst [vmem:[%s2563 + $0xb8] sm:$0xff] %v2397
        %2588 = vst [vmem:[%s2563 + $0xc0] sm:$0xff] %v2401
        %2589 = vst [vmem:[%s2563 + $0xc8] sm:$0xff] %v2403
        %2590 = vst [vmem:[%s2563 + $0xd0] sm:$0xff] %v2405
        %2591 = vst [vmem:[%s2563 + $0xd8] sm:$0xff] %v2407
        %2592 = vst [vmem:[%s2563 + $0xe0] sm:$0xff] %v2411
        %2593 = vst [vmem:[%s2563 + $0xe8] sm:$0xff] %v2413
        %2594 = vst [vmem:[%s2563 + $0xf0] sm:$0xff] %v2415
        %2595 = vst [vmem:[%s2563 + $0xf8] sm:$0xff] %v2417
        %2596 = vst [vmem:[%s2563 + $0x100] sm:$0xff] %v2421
        %2597 = vst [vmem:[%s2563 + $0x108] sm:$0xff] %v2423
        %2598 = vst [vmem:[%s2563 + $0x110] sm:$0xff] %v2425
        %2599 = vst [vmem:[%s2563 + $0x118] sm:$0xff] %v2427
        %2600 = vst [vmem:[%s2563 + $0x120] sm:$0xff] %v2431
        %2601 = vst [vmem:[%s2563 + $0x128] sm:$0xff] %v2433
        %2602 = vst [vmem:[%s2563 + $0x130] sm:$0xff] %v2435
        %2603 = vst [vmem:[%s2563 + $0x138] sm:$0xff] %v2437
        %2604 = vst [vmem:[%s2563 + $0x140] sm:$0xff] %v2441
        %2605 = vst [vmem:[%s2563 + $0x148] sm:$0xff] %v2443
        %2606 = vst [vmem:[%s2563 + $0x150] sm:$0xff] %v2445
        %2607 = vst [vmem:[%s2563 + $0x158] sm:$0xff] %v2447
        %2608 = vst [vmem:[%s2563 + $0x160] sm:$0xff] %v2451
        %2609 = vst [vmem:[%s2563 + $0x168] sm:$0xff] %v2453
        %2610 = vst [vmem:[%s2563 + $0x170] sm:$0xff] %v2455
        %2611 = vst [vmem:[%s2563 + $0x178] sm:$0xff] %v2457
        %2612 = vst [vmem:[%s2563 + $0x180] sm:$0xff] %v2461
        %2613 = vst [vmem:[%s2563 + $0x188] sm:$0xff] %v2463
        %2614 = vst [vmem:[%s2563 + $0x190] sm:$0xff] %v2465
        %2615 = vst [vmem:[%s2563 + $0x198] sm:$0xff] %v2467
        %2616 = vst [vmem:[%s2563 + $0x1a0] sm:$0xff] %v2471
        %2617 = vst [vmem:[%s2563 + $0x1a8] sm:$0xff] %v2473
        %2618 = vst [vmem:[%s2563 + $0x1b0] sm:$0xff] %v2475
        %2619 = vst [vmem:[%s2563 + $0x1b8] sm:$0xff] %v2477
        %2620 = vst [vmem:[%s2563 + $0x1c0] sm:$0xff] %v2481
        %2621 = vst [vmem:[%s2563 + $0x1c8] sm:$0xff] %v2483
        %2622 = vst [vmem:[%s2563 + $0x1d0] sm:$0xff] %v2485
        %2623 = vst [vmem:[%s2563 + $0x1d8] sm:$0xff] %v2487
        %2624 = vst [vmem:[%s2563 + $0x1e0] sm:$0xff] %v2491
        %2625 = vst [vmem:[%s2563 + $0x1e8] sm:$0xff] %v2493
        %2626 = vst [vmem:[%s2563 + $0x1f0] sm:$0xff] %v2495
        %2627 = vst [vmem:[%s2563 + $0x1f8] sm:$0xff] %v2497
        %s2628 = sand.u32 %s156, 1
        %s2629 = scalar_lea.sflag [#allocation5], %s2628
        %s2630 = sand.u32 %s156, 1
        %s2631 = smul.addr %s2630, 1024
        %s2632 = scalar_lea.vmem [#allocation12], %s2631
        // Predicated region
        $region61: #{tpu_custom_call.1} parent=39 // pred_check
          %p2633 = pneg %p166
        $region62: #{tpu_custom_call.1} parent=39 // pred_check_branch
          %2635 = sbr.rel (%p2633) target = $region64
        $region63: #{tpu_custom_call.1} parent=39 // pred_region
          #allocation14 [shape = 'u32[6]{0}', space=smem, size = 0x18, scoped, tag = 'DMA stride descriptor']
          %s2637 = ssub.s32 16384, 16384
          %2638 = vsyncadd %s2629, %s2637
          %s2639 = smul.addr %s27, 64
          %s2640 = smul.addr %s26, 256
          %s2641 = sadd.s32 %s2639, %s2640
          %s2642 = smul.addr %s2641, 128
          %s2643 = scalar_lea.hbm %s5, %s2642
          %s2645 = sshll.u32 1, 14
          %s2646 = sxor.u32 4294967295, %s2645
          %s2649 = sshll.u32 7, 18
          %s2650 = sxor.u32 4294967295, %s2649
          %s2651 = sand.u32 0, %s2650
          %s2653 = sor.u32 %s2651, 0
          %s2655 = sshll.u32 3, 24
          %s2656 = sxor.u32 4294967295, %s2655
          %s2657 = sand.u32 %s2653, %s2656
          %s2659 = sor.u32 %s2657, 0
          %s2660 = sshll.u32 %s2632, 4
          %s2661 = int_to_ptr.vmem [resolvable:$true] %s2660
          %2667 = sst [smem:[#allocation14]] 8192
          %s2668 = scalar_lea.smem [#allocation14], 1
          %2669 = sst [smem:[%s2668]] 16384
          %s2670 = scalar_lea.smem [#allocation14], 2
          %2671 = sst [smem:[%s2670]] 32
          %s2672 = scalar_lea.smem [#allocation14], 3
          %2673 = sst [smem:[%s2672]] 256
          %s2674 = scalar_lea.smem [#allocation14], 4
          %2675 = sst [smem:[%s2674]] 256
          %s2676 = scalar_lea.smem [#allocation14], 5
          %2677 = sst [smem:[%s2676]] 16
          %2679 = dma.general %s2661, 16384, %s2643, %s2629, [#allocation13], [#allocation14], %s2659, 0
        $region64: #{tpu_custom_call.1} parent=39 // pred_fallthru
          _
      $region40: #{tpu_custom_call.1} parent=5 // pred_fallthru
        _
      %p2680 = scmp.le.s32.totalorder 2, %s17
      // Predicated region
      $region65: #{tpu_custom_call.1} parent=5 // pred_check
        %p2681 = pneg %p2680
      $region66: #{tpu_custom_call.1} parent=5 // pred_check_branch
        %2683 = sbr.rel (%p2681) target = $region68
      $region67: #{tpu_custom_call.1} parent=5 // pred_region
        %s2684 = ssub.s32 %s17, 2
        // Predicated region
        $region69: #{tpu_custom_call.1} parent=67 // pred_check
          %p2685 = pneg %p172
        $region70: #{tpu_custom_call.1} parent=67 // pred_check_branch
          %2687 = sbr.rel (%p2685) target = $region72
        $region71: #{tpu_custom_call.1} parent=67 // pred_region
          %s2688 = sand.u32 %s157, 1
          %s2689 = scalar_lea.sflag [#allocation5], %s2688
          %s2690 = sand.u32 %s157, 1
          %s2691 = smul.addr %s2690, 1024
          %s2692 = scalar_lea.vmem [#allocation12], %s2691
          %2693 = dma.done %s2689, 16384
        $region72: #{tpu_custom_call.1} parent=67 // pred_fallthru
          _
      $region68: #{tpu_custom_call.1} parent=5 // pred_fallthru
        _
    $region6: #{tpu_custom_call.1} parent=1 // loop_footer
      %s21 = sadd.s32 1, %s17
    $region7: #{tpu_custom_call.1} parent=1 // loop_footer_branch
      %16 = sbr.rel target = $region3
    $region8: #{tpu_custom_call.1} parent=1 // loop_exit
      _
    %2694 = vsyncpa [#allocation4], 1
    %s2695 = scalar_lea.sflag [#allocation4], 1
    %2696 = vsyncpa %s2695, 1
    %2697 = vsyncpa [#allocation7], 1
    %2698 = vsyncpa [#allocation10], 1
    %2699 = vsyncpa [#allocation5], 1
    %s2700 = scalar_lea.sflag [#allocation5], 1
    %2701 = vsyncpa %s2700, 1

</llo_original>
